<compile_context>
chip_gen: v7x
topology: tpu7x:2x2x1
jax: 0.10.0
libtpu: 0.0.40
codegen_flags: <defaults>
</compile_context>

<pallas_src>
import functools

import jax
import jax.numpy as jnp
from jax.experimental import pallas as pl
from jax.experimental.pallas import tpu as pltpu

CP = 128                        # padded channel width -> lane-dense stores
BN_EPS = 1e-5
TM_CAP = 2048                   # row-tile cap for pointwise / down kernels
TM_CAP_UP = 1024                # row-tile cap (low-res rows) for the up kernels
VMEM_LIMIT = 32 * 1024 * 1024   # scoped-VMEM budget, safe on v5e / v6e / v7x
BF16 = jnp.bfloat16


def _compiler_params():
    return pltpu.CompilerParams(
        dimension_semantics=("parallel",),   # row tiles independent -> shard across TCs (v7x)
        vmem_limit_bytes=VMEM_LIMIT,
    )


def _choose_tm(m, cap):
    """Largest row tile (multiple of 8, divides m, <= cap) with >=2 grid steps when m>=16."""
    assert m % 8 == 0, f"row count {m} must be a multiple of 8"
    tm = min(m, cap)
    if m >= 16:                       # guarantee grid >= 2 so v7x can use both TensorCores
        tm = min(tm, m // 2)
    tm -= tm % 8
    tm = max(tm, 8)
    while m % tm != 0:
        tm -= 8
    return tm


# ----------------------------------------------------------------------------
# Kernels (bf16 operands, f32 accumulation, bf16/f32 stores)
# ----------------------------------------------------------------------------
def _pointwise_kernel(x_ref, w_ref, o_ref):
    # out = relu( x @ W )     (BN scale pre-folded into W; BN shift is zero in eval mode)
    y = jnp.dot(x_ref[...], w_ref[...], preferred_element_type=jnp.float32)
    o_ref[...] = jnp.maximum(y, 0.0).astype(o_ref.dtype)


def _up_kernel(low_ref, high_ref, w_ref, o_ref, *, dr):
    # Fused: proj = low @ W ; nearest-repeat by dr via lane-group broadcast ; skip-add ; ReLU.
    proj = jnp.dot(low_ref[...], w_ref[...], preferred_element_type=jnp.float32)
    up = high_ref[...].astype(jnp.float32) + jnp.concatenate([proj] * dr, axis=-1)
    o_ref[...] = jnp.maximum(up, 0.0).astype(o_ref.dtype)


def _up_inter_kernel(low_ref, high_ref, wi_ref, w_ref, o_ref, *, dr):
    # Intermediate (Conv1d+BN+ReLU) fused into the first up stage.
    h = jnp.maximum(
        jnp.dot(low_ref[...], wi_ref[...], preferred_element_type=jnp.float32), 0.0
    ).astype(BF16)
    proj = jnp.dot(h, w_ref[...], preferred_element_type=jnp.float32)
    up = high_ref[...].astype(jnp.float32) + jnp.concatenate([proj] * dr, axis=-1)
    o_ref[...] = jnp.maximum(up, 0.0).astype(o_ref.dtype)


def _up_cls_kernel(low_ref, high_ref, w_ref, wc1_ref, wc2_ref, b2_ref, o_ref, *, dr, cp):
    # Last up stage fused with the classifier head; full-res intermediate never hits HBM.
    proj = jnp.dot(low_ref[...], w_ref[...], preferred_element_type=jnp.float32)
    up = high_ref[...].astype(jnp.float32) + jnp.concatenate([proj] * dr, axis=-1)
    up = jnp.maximum(up, 0.0).astype(BF16)
    outs = []
    for k in range(dr):  # static unroll; 128-aligned lane slices are free
        u = up[:, k * cp:(k + 1) * cp]
        h = jnp.maximum(
            jnp.dot(u, wc1_ref[...], preferred_element_type=jnp.float32), 0.0
        ).astype(BF16)
        # TODO(synk): Dropout(0.5) is identity in eval mode; training-mode mask omitted.
        y = jnp.dot(h, wc2_ref[...], preferred_element_type=jnp.float32) + b2_ref[...]
        outs.append(y)
    o_ref[...] = jnp.concatenate(outs, axis=-1).astype(o_ref.dtype)


# ----------------------------------------------------------------------------
# Wrappers (pallas_call with BlockSpecs / grid)
# ----------------------------------------------------------------------------
def ff_layer(x2d, w):
    # Full-width contiguous row reads (pos rows of W are zero, so passing all channels is
    # equivalent to slicing x[:, 3:6]) -> no 12-byte strided DMAs.
    m, cin = x2d.shape
    cout = w.shape[1]
    tm = _choose_tm(m, TM_CAP)
    cost = pl.CostEstimate(
        flops=2 * m * cin * cout, transcendentals=0,
        bytes_accessed=2 * (m * cin + cin * cout + m * cout))
    return pl.pallas_call(
        _pointwise_kernel,
        out_shape=jax.ShapeDtypeStruct((m, cout), BF16),
        grid=(m // tm,),
        in_specs=[pl.BlockSpec((tm, cin), lambda i: (i, 0)),
                  pl.BlockSpec((cin, cout), lambda i: (0, 0))],
        out_specs=pl.BlockSpec((tm, cout), lambda i: (i, 0)),
        compiler_params=_compiler_params(),
        cost_estimate=cost,
    )(x2d, w)


def down_project(x2d, w, dr):
    # Strided ::dr point subsample + projection + ReLU, fetching only the kept rows:
    # the dr group axis is folded into lanes, and the lane-block at index 0 selects
    # exactly the rows g*dr (strided DMA, no over-fetch, dense VMEM layout).
    m_in, cin = x2d.shape
    assert m_in % dr == 0 and cin % 128 == 0
    m_out = m_in // dr
    cout = w.shape[1]
    x_folded = x2d.reshape(m_out, dr * cin)
    tm = _choose_tm(m_out, TM_CAP)
    cost = pl.CostEstimate(
        flops=2 * m_out * cin * cout, transcendentals=0,
        bytes_accessed=2 * (m_out * cin + cin * cout + m_out * cout))
    return pl.pallas_call(
        _pointwise_kernel,
        out_shape=jax.ShapeDtypeStruct((m_out, cout), BF16),
        grid=(m_out // tm,),
        in_specs=[pl.BlockSpec((tm, cin), lambda i: (i, 0)),
                  pl.BlockSpec((cin, cout), lambda i: (0, 0))],
        out_specs=pl.BlockSpec((tm, cout), lambda i: (i, 0)),
        compiler_params=_compiler_params(),
        cost_estimate=cost,
    )(x_folded, w)


def up_project_add(low2d, high2d, w, dr, inter_w=None):
    # Fused: [optional intermediate pointwise ->] projection -> nearest-repeat upsample
    # -> skip add -> ReLU.  Skip & output use a folded (m_low, dr*C) lane layout so the
    # repeat is a lane-group broadcast (no selection matmul) and all stores are lane-dense.
    m_low, cin = low2d.shape
    m_high, cout = high2d.shape
    assert m_high == m_low * dr
    high_f = high2d.reshape(m_low, dr * cout)
    tl = _choose_tm(m_low, TM_CAP_UP)
    flops = 2 * m_low * cin * cout + (2 * m_low * cin * cin if inter_w is not None else 0)
    cost = pl.CostEstimate(
        flops=flops, transcendentals=0,
        bytes_accessed=2 * (m_low * cin + 2 * m_high * cout + 2 * cin * cout))
    if inter_w is None:
        kernel = functools.partial(_up_kernel, dr=dr)
        operands = (low2d, high_f, w)
        in_specs = [pl.BlockSpec((tl, cin), lambda i: (i, 0)),
                    pl.BlockSpec((tl, dr * cout), lambda i: (i, 0)),
                    pl.BlockSpec((cin, cout), lambda i: (0, 0))]
    else:
        kernel = functools.partial(_up_inter_kernel, dr=dr)
        operands = (low2d, high_f, inter_w, w)
        in_specs = [pl.BlockSpec((tl, cin), lambda i: (i, 0)),
                    pl.BlockSpec((tl, dr * cout), lambda i: (i, 0)),
                    pl.BlockSpec((cin, cin), lambda i: (0, 0)),
                    pl.BlockSpec((cin, cout), lambda i: (0, 0))]
    out_f = pl.pallas_call(
        kernel,
        out_shape=jax.ShapeDtypeStruct((m_low, dr * cout), BF16),
        grid=(m_low // tl,),
        in_specs=in_specs,
        out_specs=pl.BlockSpec((tl, dr * cout), lambda i: (i, 0)),
        compiler_params=_compiler_params(),
        cost_estimate=cost,
    )(*operands)
    return out_f.reshape(m_high, cout)


def up_classifier(low2d, high2d, w, wc1, wc2, b2, dr):
    # Last up stage + classifier head fused into one kernel.
    m_low, cin = low2d.shape
    m_high, cout = high2d.shape
    assert m_high == m_low * dr
    high_f = high2d.reshape(m_low, dr * cout)
    tl = _choose_tm(m_low, TM_CAP_UP)
    chid, ccls = wc1.shape[1], wc2.shape[1]
    flops = (2 * m_low * cin * cout + 2 * m_high * cout * chid + 2 * m_high * chid * ccls)
    cost = pl.CostEstimate(
        flops=flops, transcendentals=0,
        bytes_accessed=(2 * (m_low * cin + m_high * cout + cin * cout
                             + cout * chid + chid * ccls) + 4 * m_high * ccls))
    out_f = pl.pallas_call(
        functools.partial(_up_cls_kernel, dr=dr, cp=cout),
        out_shape=jax.ShapeDtypeStruct((m_low, dr * ccls), jnp.float32),
        grid=(m_low // tl,),
        in_specs=[pl.BlockSpec((tl, cin), lambda i: (i, 0)),
                  pl.BlockSpec((tl, dr * cout), lambda i: (i, 0)),
                  pl.BlockSpec((cin, cout), lambda i: (0, 0)),
                  pl.BlockSpec((cout, chid), lambda i: (0, 0)),
                  pl.BlockSpec((chid, ccls), lambda i: (0, 0)),
                  pl.BlockSpec((1, ccls), lambda i: (0, 0))],
        out_specs=pl.BlockSpec((tl, dr * ccls), lambda i: (i, 0)),
        compiler_params=_compiler_params(),
        cost_estimate=cost,
    )(low2d, high_f, w, wc1, wc2, b2)
    return out_f.reshape(m_high, ccls)


# ----------------------------------------------------------------------------
# Parameters (deterministic Xavier-uniform, BN folded, zero-padded to CP lanes, bf16)
# ----------------------------------------------------------------------------
def _xavier(key, shape):
    fan_in, fan_out = shape
    limit = (6.0 / (fan_in + fan_out)) ** 0.5
    return jax.random.uniform(key, shape, jnp.float32, -limit, limit)


def _pad2d(w, rows=CP, cols=CP):
    out = jnp.zeros((rows, cols), jnp.float32)
    return out.at[: w.shape[0], : w.shape[1]].set(w)


def make_params(d_config, num_classes, seed=0):
    keys = jax.random.split(jax.random.PRNGKey(seed), 16)
    d = d_config
    # BatchNorm1d eval-mode with default stats: scale = 1/sqrt(1+eps), shift = 0.
    bn_scale = (1.0 + BN_EPS) ** -0.5
    p = {}
    # ff: Conv1d(d0->d1, k=1, no bias) + BN + ReLU. Weight rows for pos (channels 0..2)
    # are zero so the kernel can read the full 6-channel rows contiguously.
    ff = jnp.zeros((6, CP), jnp.float32)
    ff = ff.at[3:6, : d[1]].set(_xavier(keys[0], (d[0], d[1])) * bn_scale)
    p["ff_w"] = ff.astype(BF16)
    # encoder / decoder stand-in channel projections
    p["ds_w"] = [_pad2d(_xavier(keys[1 + i], (d[1 + i], d[2 + i]))).astype(BF16)
                 for i in range(4)]
    p["us_w"] = [_pad2d(_xavier(keys[6 + i], (d[5 - i], d[4 - i]))).astype(BF16)
                 for i in range(4)]
    # intermediate: Conv1d(d5->d5, no bias) + BN + ReLU
    p["inter_w"] = _pad2d(_xavier(keys[5], (d[5], d[5])) * bn_scale).astype(BF16)
    # classifier: Conv1d(d1->d1, no bias) + BN + ReLU + Dropout + Conv1d(d1->c, bias)
    p["cls_w1"] = _pad2d(_xavier(keys[10], (d[1], d[1])) * bn_scale).astype(BF16)
    p["cls_w2"] = _pad2d(_xavier(keys[11], (d[1], num_classes))).astype(BF16)
    b2 = (jax.random.uniform(keys[12], (1, num_classes), jnp.float32, -1.0, 1.0)
          / jnp.sqrt(jnp.float32(d[1])))
    p["cls_b2"] = _pad2d(b2, rows=1)   # kept f32 (added to the f32 accumulator)
    return p


# ----------------------------------------------------------------------------
# DLPTNet_seg forward (Pallas-backed)
# ----------------------------------------------------------------------------
# TODO(synk): DLPTDownLayer / DLPTUpLayer source (FPS, kNN, decoupled local attention)
# is not provided in the reference, so the down/up blocks are stand-ins: strided point
# subsample / nearest-repeat upsample + channel projection with residual skip.
def dlptnet_seg_forward(x, params, d_config, ds_ratio, num_classes):
    B, N, cin = x.shape
    dr = ds_ratio
    # Flat-row subsample only matches per-batch semantics when N % dr**4 == 0.
    assert N % (dr ** 4) == 0, "N must be divisible by ds_ratio**4 for the stand-in layers"
    M = B * N
    x2d = x.reshape(M, cin).astype(BF16)

    # ff: Conv1d(d0->d1, k=1, no bias) + BN + ReLU   (pos channels zeroed via the weight)
    feat1 = ff_layer(x2d, params["ff_w"])                               # (M, CP) bf16

    # encoder (down path) -- strided subsample fused into each projection kernel
    feat2 = down_project(feat1, params["ds_w"][0], dr)
    feat3 = down_project(feat2, params["ds_w"][1], dr)
    feat4 = down_project(feat3, params["ds_w"][2], dr)
    feat5 = down_project(feat4, params["ds_w"][3], dr)

    # decoder (up path); intermediate fused into the first stage
    feat4 = up_project_add(feat5, feat4, params["us_w"][0], dr, inter_w=params["inter_w"])
    feat3 = up_project_add(feat4, feat3, params["us_w"][1], dr)
    feat2 = up_project_add(feat3, feat2, params["us_w"][2], dr)

    # last up stage fused with the classifier head
    out = up_classifier(feat2, feat1, params["us_w"][3],
                        params["cls_w1"], params["cls_w2"], params["cls_b2"], dr)  # (M, CP) f32
    return out.reshape(B, N, CP)[:, :, :num_classes]


# ----------------------------------------------------------------------------
# Pure-JAX reference (same stand-in semantics, same bf16 boundaries) for validation
# ----------------------------------------------------------------------------
def reference_forward(x, params, d_config, dr, num_classes):
    B, N, cin = x.shape

    def mm(a, w):
        return jnp.dot(a.astype(BF16), w, preferred_element_type=jnp.float32)

    feat = x.reshape(B * N, cin).astype(BF16)
    f = jnp.maximum(mm(feat, params["ff_w"]), 0.0).astype(BF16)
    skips = [f]
    for i in range(4):
        f = jnp.maximum(mm(f[::dr], params["ds_w"][i]), 0.0).astype(BF16)
        skips.append(f)
    f = jnp.maximum(mm(f, params["inter_w"]), 0.0).astype(BF16)
    for i in range(4):
        proj = mm(f, params["us_w"][i])
        up = jnp.repeat(proj, dr, axis=0) + skips[3 - i].astype(jnp.float32)
        f = jnp.maximum(up, 0.0).astype(BF16)
    h = jnp.maximum(mm(f, params["cls_w1"]), 0.0).astype(BF16)
    y = mm(h, params["cls_w2"]) + params["cls_b2"]
    return y.reshape(B, N, CP)[:, :, :num_classes]


if __name__ == "__main__":
    # small, consistent shapes: B=2 point clouds, N=64 points, 6 input dims (xyz + rgb)
    B, N = 2, 64
    d_config = [3, 16, 32, 32, 64, 64]
    ds_ratio = 2
    num_classes = 8

    key = jax.random.PRNGKey(0)
    x = jax.random.normal(key, (B, N, 6), jnp.float32)
    params = make_params(d_config, num_classes, seed=0)

    fwd = jax.jit(functools.partial(dlptnet_seg_forward, d_config=d_config,
                                    ds_ratio=ds_ratio, num_classes=num_classes))
    out = jax.block_until_ready(fwd(x, params))

    assert out.shape == (B, N, num_classes), out.shape
    assert bool(jnp.all(jnp.isfinite(out)))

    ref = reference_forward(x, params, d_config, ds_ratio, num_classes)
    max_err = float(jnp.max(jnp.abs(out - ref)))
    assert max_err < 3e-2, f"mismatch vs pure-JAX reference: {max_err}"
    print("KERNEL_OK")
</pallas_src>

<mosaic_0001>
module attributes {stable_mosaic.version = 11 : i64} {
  func.func @_pointwise_kernel(%arg0: i32, %arg1: memref<64x6xbf16, #tpu.memory_space<vmem>>, %arg2: memref<6x128xbf16, #tpu.memory_space<vmem>>, %arg3: memref<64x128xbf16, #tpu.memory_space<vmem>>) attributes {dimension_semantics = [#tpu.dimension_semantics<parallel>], iteration_bounds = array<i64: 2>, scalar_prefetch = 0 : i64, scratch_operands = 0 : i64, tpu.core_type = #tpu.core_type<tc>, window_params = [{transform_indices = @transform_0, window_bounds = array<i64: 64, 6>}, {pipeline_mode = #tpu.pipeline_mode<synchronous>, transform_indices = @transform_1, window_bounds = array<i64: 6, 128>}, {transform_indices = @transform_2, window_bounds = array<i64: 64, 128>}]} {
    %c0 = arith.constant 0 : index
    %c0_0 = arith.constant 0 : index
    %0 = vector.load %arg1[%c0, %c0_0] : memref<64x6xbf16, #tpu.memory_space<vmem>>, vector<64x6xbf16>
    %c0_1 = arith.constant 0 : index
    %c0_2 = arith.constant 0 : index
    %1 = vector.load %arg2[%c0_1, %c0_2] : memref<6x128xbf16, #tpu.memory_space<vmem>>, vector<6x128xbf16>
    %cst = arith.constant dense<0.000000e+00> : vector<64x128xf32>
    %2 = tpu.matmul %0, %1, %cst {dimension_numbers = #tpu.dot_dimension_numbers<[1], [0], [0], [1], [0, 0, 1, 1], [], []>} : vector<64x6xbf16>, vector<6x128xbf16>, vector<64x128xf32> -> vector<64x128xf32>
    %cst_3 = arith.constant 0.000000e+00 : f32
    %3 = vector.broadcast %cst_3 : f32 to vector<64x128xf32>
    %4 = arith.maximumf %2, %3 : vector<64x128xf32>
    %5 = arith.truncf %4 : vector<64x128xf32> to vector<64x128xbf16>
    %c0_4 = arith.constant 0 : index
    %c0_5 = arith.constant 0 : index
    %6 = vector.load %arg3[%c0_4, %c0_5] : memref<64x128xbf16, #tpu.memory_space<vmem>>, vector<64x128xbf16>
    tpu.vector_store %arg3[%c0_4, %c0_5], %5 {strides = array<i32>} : memref<64x128xbf16, #tpu.memory_space<vmem>>, vector<64x128xbf16>,
    return
  }
  func.func @transform_0(%arg0: i32) -> (i32, i32) {
    %c0_i32 = arith.constant 0 : i32
    %c0_i32_0 = arith.constant 0 : i32
    return %arg0, %c0_i32 : i32, i32
  }
  func.func @transform_1(%arg0: i32) -> (i32, i32) {
    %c0_i32 = arith.constant 0 : i32
    %c0_i32_0 = arith.constant 0 : i32
    %c0_i32_1 = arith.constant 0 : i32
    return %c0_i32, %c0_i32_0 : i32, i32
  }
  func.func @transform_2(%arg0: i32) -> (i32, i32) {
    %c0_i32 = arith.constant 0 : i32
    %c0_i32_0 = arith.constant 0 : i32
    return %arg0, %c0_i32 : i32, i32
  }
}

module attributes {stable_mosaic.version = 11 : i64} {
  func.func @_pointwise_kernel(%arg0: i32, %arg1: memref<16x128xbf16, #tpu.memory_space<vmem>>, %arg2: memref<128x128xbf16, #tpu.memory_space<vmem>>, %arg3: memref<16x128xbf16, #tpu.memory_space<vmem>>) attributes {dimension_semantics = [#tpu.dimension_semantics<parallel>], iteration_bounds = array<i64: 2>, scalar_prefetch = 0 : i64, scratch_operands = 0 : i64, tpu.core_type = #tpu.core_type<tc>, window_params = [{transform_indices = @transform_0, window_bounds = array<i64: 16, 128>}, {pipeline_mode = #tpu.pipeline_mode<synchronous>, transform_indices = @transform_1, window_bounds = array<i64: 128, 128>}, {transform_indices = @transform_2, window_bounds = array<i64: 16, 128>}]} {
    %c0 = arith.constant 0 : index
    %c0_0 = arith.constant 0 : index
    %0 = vector.load %arg1[%c0, %c0_0] : memref<16x128xbf16, #tpu.memory_space<vmem>>, vector<16x128xbf16>
    %c0_1 = arith.constant 0 : index
    %c0_2 = arith.constant 0 : index
    %1 = vector.load %arg2[%c0_1, %c0_2] : memref<128x128xbf16, #tpu.memory_space<vmem>>, vector<128x128xbf16>
    %cst = arith.constant dense<0.000000e+00> : vector<16x128xf32>
    %2 = tpu.matmul %0, %1, %cst {dimension_numbers = #tpu.dot_dimension_numbers<[1], [0], [0], [1], [0, 0, 1, 1], [], []>} : vector<16x128xbf16>, vector<128x128xbf16>, vector<16x128xf32> -> vector<16x128xf32>
    %cst_3 = arith.constant 0.000000e+00 : f32
    %3 = vector.broadcast %cst_3 : f32 to vector<16x128xf32>
    %4 = arith.maximumf %2, %3 : vector<16x128xf32>
    %5 = arith.truncf %4 : vector<16x128xf32> to vector<16x128xbf16>
    %c0_4 = arith.constant 0 : index
    %c0_5 = arith.constant 0 : index
    %6 = vector.load %arg3[%c0_4, %c0_5] : memref<16x128xbf16, #tpu.memory_space<vmem>>, vector<16x128xbf16>
    tpu.vector_store %arg3[%c0_4, %c0_5], %5 {strides = array<i32>} : memref<16x128xbf16, #tpu.memory_space<vmem>>, vector<16x128xbf16>,
    return
  }
  func.func @transform_0(%arg0: i32) -> (i32, i32) {
    %c0_i32 = arith.constant 0 : i32
    %c0_i32_0 = arith.constant 0 : i32
    return %arg0, %c0_i32 : i32, i32
  }
  func.func @transform_1(%arg0: i32) -> (i32, i32) {
    %c0_i32 = arith.constant 0 : i32
    %c0_i32_0 = arith.constant 0 : i32
    %c0_i32_1 = arith.constant 0 : i32
    return %c0_i32, %c0_i32_0 : i32, i32
  }
  func.func @transform_2(%arg0: i32) -> (i32, i32) {
    %c0_i32 = arith.constant 0 : i32
    %c0_i32_0 = arith.constant 0 : i32
    return %arg0, %c0_i32 : i32, i32
  }
}

module attributes {stable_mosaic.version = 11 : i64} {
  func.func @_pointwise_kernel(%arg0: i32, %arg1: memref<32x128xbf16, #tpu.memory_space<vmem>>, %arg2: memref<128x128xbf16, #tpu.memory_space<vmem>>, %arg3: memref<32x128xbf16, #tpu.memory_space<vmem>>) attributes {dimension_semantics = [#tpu.dimension_semantics<parallel>], iteration_bounds = array<i64: 2>, scalar_prefetch = 0 : i64, scratch_operands = 0 : i64, tpu.core_type = #tpu.core_type<tc>, window_params = [{transform_indices = @transform_0, window_bounds = array<i64: 32, 128>}, {pipeline_mode = #tpu.pipeline_mode<synchronous>, transform_indices = @transform_1, window_bounds = array<i64: 128, 128>}, {transform_indices = @transform_2, window_bounds = array<i64: 32, 128>}]} {
    %c0 = arith.constant 0 : index
    %c0_0 = arith.constant 0 : index
    %0 = vector.load %arg1[%c0, %c0_0] : memref<32x128xbf16, #tpu.memory_space<vmem>>, vector<32x128xbf16>
    %c0_1 = arith.constant 0 : index
    %c0_2 = arith.constant 0 : index
    %1 = vector.load %arg2[%c0_1, %c0_2] : memref<128x128xbf16, #tpu.memory_space<vmem>>, vector<128x128xbf16>
    %cst = arith.constant dense<0.000000e+00> : vector<32x128xf32>
    %2 = tpu.matmul %0, %1, %cst {dimension_numbers = #tpu.dot_dimension_numbers<[1], [0], [0], [1], [0, 0, 1, 1], [], []>} : vector<32x128xbf16>, vector<128x128xbf16>, vector<32x128xf32> -> vector<32x128xf32>
    %cst_3 = arith.constant 0.000000e+00 : f32
    %3 = vector.broadcast %cst_3 : f32 to vector<32x128xf32>
    %4 = arith.maximumf %2, %3 : vector<32x128xf32>
    %5 = arith.truncf %4 : vector<32x128xf32> to vector<32x128xbf16>
    %c0_4 = arith.constant 0 : index
    %c0_5 = arith.constant 0 : index
    %6 = vector.load %arg3[%c0_4, %c0_5] : memref<32x128xbf16, #tpu.memory_space<vmem>>, vector<32x128xbf16>
    tpu.vector_store %arg3[%c0_4, %c0_5], %5 {strides = array<i32>} : memref<32x128xbf16, #tpu.memory_space<vmem>>, vector<32x128xbf16>,
    return
  }
  func.func @transform_0(%arg0: i32) -> (i32, i32) {
    %c0_i32 = arith.constant 0 : i32
    %c0_i32_0 = arith.constant 0 : i32
    return %arg0, %c0_i32 : i32, i32
  }
  func.func @transform_1(%arg0: i32) -> (i32, i32) {
    %c0_i32 = arith.constant 0 : i32
    %c0_i32_0 = arith.constant 0 : i32
    %c0_i32_1 = arith.constant 0 : i32
    return %c0_i32, %c0_i32_0 : i32, i32
  }
  func.func @transform_2(%arg0: i32) -> (i32, i32) {
    %c0_i32 = arith.constant 0 : i32
    %c0_i32_0 = arith.constant 0 : i32
    return %arg0, %c0_i32 : i32, i32
  }
}

module attributes {stable_mosaic.version = 11 : i64} {
  func.func @_pointwise_kernel(%arg0: i32, %arg1: memref<8x128xbf16, #tpu.memory_space<vmem>>, %arg2: memref<128x128xbf16, #tpu.memory_space<vmem>>, %arg3: memref<8x128xbf16, #tpu.memory_space<vmem>>) attributes {dimension_semantics = [#tpu.dimension_semantics<parallel>], iteration_bounds = array<i64: 2>, scalar_prefetch = 0 : i64, scratch_operands = 0 : i64, tpu.core_type = #tpu.core_type<tc>, window_params = [{transform_indices = @transform_0, window_bounds = array<i64: 8, 128>}, {pipeline_mode = #tpu.pipeline_mode<synchronous>, transform_indices = @transform_1, window_bounds = array<i64: 128, 128>}, {transform_indices = @transform_2, window_bounds = array<i64: 8, 128>}]} {
    %c0 = arith.constant 0 : index
    %c0_0 = arith.constant 0 : index
    %0 = vector.load %arg1[%c0, %c0_0] : memref<8x128xbf16, #tpu.memory_space<vmem>>, vector<8x128xbf16>
    %c0_1 = arith.constant 0 : index
    %c0_2 = arith.constant 0 : index
    %1 = vector.load %arg2[%c0_1, %c0_2] : memref<128x128xbf16, #tpu.memory_space<vmem>>, vector<128x128xbf16>
    %cst = arith.constant dense<0.000000e+00> : vector<8x128xf32>
    %2 = tpu.matmul %0, %1, %cst {dimension_numbers = #tpu.dot_dimension_numbers<[1], [0], [0], [1], [0, 0, 1, 1], [], []>} : vector<8x128xbf16>, vector<128x128xbf16>, vector<8x128xf32> -> vector<8x128xf32>
    %cst_3 = arith.constant 0.000000e+00 : f32
    %3 = vector.broadcast %cst_3 : f32 to vector<8x128xf32>
    %4 = arith.maximumf %2, %3 : vector<8x128xf32>
    %5 = arith.truncf %4 : vector<8x128xf32> to vector<8x128xbf16>
    %c0_4 = arith.constant 0 : index
    %c0_5 = arith.constant 0 : index
    %6 = vector.load %arg3[%c0_4, %c0_5] : memref<8x128xbf16, #tpu.memory_space<vmem>>, vector<8x128xbf16>
    tpu.vector_store %arg3[%c0_4, %c0_5], %5 {strides = array<i32>} : memref<8x128xbf16, #tpu.memory_space<vmem>>, vector<8x128xbf16>,
    return
  }
  func.func @transform_0(%arg0: i32) -> (i32, i32) {
    %c0_i32 = arith.constant 0 : i32
    %c0_i32_0 = arith.constant 0 : i32
    return %arg0, %c0_i32 : i32, i32
  }
  func.func @transform_1(%arg0: i32) -> (i32, i32) {
    %c0_i32 = arith.constant 0 : i32
    %c0_i32_0 = arith.constant 0 : i32
    %c0_i32_1 = arith.constant 0 : i32
    return %c0_i32, %c0_i32_0 : i32, i32
  }
  func.func @transform_2(%arg0: i32) -> (i32, i32) {
    %c0_i32 = arith.constant 0 : i32
    %c0_i32_0 = arith.constant 0 : i32
    return %arg0, %c0_i32 : i32, i32
  }
}

module attributes {stable_mosaic.version = 11 : i64} {
  func.func @_pointwise_kernel(%arg0: i32, %arg1: memref<8x128xbf16, #tpu.memory_space<vmem>>, %arg2: memref<128x128xbf16, #tpu.memory_space<vmem>>, %arg3: memref<8x128xbf16, #tpu.memory_space<vmem>>) attributes {dimension_semantics = [#tpu.dimension_semantics<parallel>], iteration_bounds = array<i64: 1>, scalar_prefetch = 0 : i64, scratch_operands = 0 : i64, tpu.core_type = #tpu.core_type<tc>, window_params = [{transform_indices = @transform_0, window_bounds = array<i64: 8, 128>}, {pipeline_mode = #tpu.pipeline_mode<synchronous>, transform_indices = @transform_1, window_bounds = array<i64: 128, 128>}, {transform_indices = @transform_2, window_bounds = array<i64: 8, 128>}]} {
    %c0 = arith.constant 0 : index
    %c0_0 = arith.constant 0 : index
    %0 = vector.load %arg1[%c0, %c0_0] : memref<8x128xbf16, #tpu.memory_space<vmem>>, vector<8x128xbf16>
    %c0_1 = arith.constant 0 : index
    %c0_2 = arith.constant 0 : index
    %1 = vector.load %arg2[%c0_1, %c0_2] : memref<128x128xbf16, #tpu.memory_space<vmem>>, vector<128x128xbf16>
    %cst = arith.constant dense<0.000000e+00> : vector<8x128xf32>
    %2 = tpu.matmul %0, %1, %cst {dimension_numbers = #tpu.dot_dimension_numbers<[1], [0], [0], [1], [0, 0, 1, 1], [], []>} : vector<8x128xbf16>, vector<128x128xbf16>, vector<8x128xf32> -> vector<8x128xf32>
    %cst_3 = arith.constant 0.000000e+00 : f32
    %3 = vector.broadcast %cst_3 : f32 to vector<8x128xf32>
    %4 = arith.maximumf %2, %3 : vector<8x128xf32>
    %5 = arith.truncf %4 : vector<8x128xf32> to vector<8x128xbf16>
    %c0_4 = arith.constant 0 : index
    %c0_5 = arith.constant 0 : index
    %6 = vector.load %arg3[%c0_4, %c0_5] : memref<8x128xbf16, #tpu.memory_space<vmem>>, vector<8x128xbf16>
    tpu.vector_store %arg3[%c0_4, %c0_5], %5 {strides = array<i32>} : memref<8x128xbf16, #tpu.memory_space<vmem>>, vector<8x128xbf16>,
    return
  }
  func.func @transform_0(%arg0: i32) -> (i32, i32) {
    %c0_i32 = arith.constant 0 : i32
    %c0_i32_0 = arith.constant 0 : i32
    return %arg0, %c0_i32 : i32, i32
  }
  func.func @transform_1(%arg0: i32) -> (i32, i32) {
    %c0_i32 = arith.constant 0 : i32
    %c0_i32_0 = arith.constant 0 : i32
    %c0_i32_1 = arith.constant 0 : i32
    return %c0_i32, %c0_i32_0 : i32, i32
  }
  func.func @transform_2(%arg0: i32) -> (i32, i32) {
    %c0_i32 = arith.constant 0 : i32
    %c0_i32_0 = arith.constant 0 : i32
    return %arg0, %c0_i32 : i32, i32
  }
}

module attributes {stable_mosaic.version = 11 : i64} {
  func.func @_up_inter_kernel(%arg0: i32, %arg1: memref<8x128xbf16, #tpu.memory_space<vmem>>, %arg2: memref<8x256xbf16, #tpu.memory_space<vmem>>, %arg3: memref<128x128xbf16, #tpu.memory_space<vmem>>, %arg4: memref<128x128xbf16, #tpu.memory_space<vmem>>, %arg5: memref<8x256xbf16, #tpu.memory_space<vmem>>) attributes {dimension_semantics = [#tpu.dimension_semantics<parallel>], iteration_bounds = array<i64: 1>, scalar_prefetch = 0 : i64, scratch_operands = 0 : i64, tpu.core_type = #tpu.core_type<tc>, window_params = [{transform_indices = @transform_0, window_bounds = array<i64: 8, 128>}, {transform_indices = @transform_1, window_bounds = array<i64: 8, 256>}, {pipeline_mode = #tpu.pipeline_mode<synchronous>, transform_indices = @transform_2, window_bounds = array<i64: 128, 128>}, {pipeline_mode = #tpu.pipeline_mode<synchronous>, transform_indices = @transform_3, window_bounds = array<i64: 128, 128>}, {transform_indices = @transform_4, window_bounds = array<i64: 8, 256>}]} {
    %c0 = arith.constant 0 : index
    %c0_0 = arith.constant 0 : index
    %0 = vector.load %arg1[%c0, %c0_0] : memref<8x128xbf16, #tpu.memory_space<vmem>>, vector<8x128xbf16>
    %c0_1 = arith.constant 0 : index
    %c0_2 = arith.constant 0 : index
    %1 = vector.load %arg3[%c0_1, %c0_2] : memref<128x128xbf16, #tpu.memory_space<vmem>>, vector<128x128xbf16>
    %cst = arith.constant dense<0.000000e+00> : vector<8x128xf32>
    %2 = tpu.matmul %0, %1, %cst {dimension_numbers = #tpu.dot_dimension_numbers<[1], [0], [0], [1], [0, 0, 1, 1], [], []>} : vector<8x128xbf16>, vector<128x128xbf16>, vector<8x128xf32> -> vector<8x128xf32>
    %cst_3 = arith.constant 0.000000e+00 : f32
    %3 = vector.broadcast %cst_3 : f32 to vector<8x128xf32>
    %4 = arith.maximumf %2, %3 : vector<8x128xf32>
    %5 = arith.truncf %4 : vector<8x128xf32> to vector<8x128xbf16>
    %c0_4 = arith.constant 0 : index
    %c0_5 = arith.constant 0 : index
    %6 = vector.load %arg4[%c0_4, %c0_5] : memref<128x128xbf16, #tpu.memory_space<vmem>>, vector<128x128xbf16>
    %cst_6 = arith.constant dense<0.000000e+00> : vector<8x128xf32>
    %7 = tpu.matmul %5, %6, %cst_6 {dimension_numbers = #tpu.dot_dimension_numbers<[1], [0], [0], [1], [0, 0, 1, 1], [], []>} : vector<8x128xbf16>, vector<128x128xbf16>, vector<8x128xf32> -> vector<8x128xf32>
    %c0_7 = arith.constant 0 : index
    %c0_8 = arith.constant 0 : index
    %8 = vector.load %arg2[%c0_7, %c0_8] : memref<8x256xbf16, #tpu.memory_space<vmem>>, vector<8x256xbf16>
    %9 = arith.extf %8 : vector<8x256xbf16> to vector<8x256xf32>
    %10 = tpu.concatenate %7, %7 in 1 : vector<8x128xf32>, vector<8x128xf32> -> vector<8x256xf32>
    %11 = arith.addf %9, %10 : vector<8x256xf32>
    %cst_9 = arith.constant 0.000000e+00 : f32
    %12 = vector.broadcast %cst_9 : f32 to vector<8x256xf32>
    %13 = arith.maximumf %11, %12 : vector<8x256xf32>
    %14 = arith.truncf %13 : vector<8x256xf32> to vector<8x256xbf16>
    %c0_10 = arith.constant 0 : index
    %c0_11 = arith.constant 0 : index
    %15 = vector.load %arg5[%c0_10, %c0_11] : memref<8x256xbf16, #tpu.memory_space<vmem>>, vector<8x256xbf16>
    tpu.vector_store %arg5[%c0_10, %c0_11], %14 {strides = array<i32>} : memref<8x256xbf16, #tpu.memory_space<vmem>>, vector<8x256xbf16>,
    return
  }
  func.func @transform_0(%arg0: i32) -> (i32, i32) {
    %c0_i32 = arith.constant 0 : i32
    %c0_i32_0 = arith.constant 0 : i32
    return %arg0, %c0_i32 : i32, i32
  }
  func.func @transform_1(%arg0: i32) -> (i32, i32) {
    %c0_i32 = arith.constant 0 : i32
    %c0_i32_0 = arith.constant 0 : i32
    return %arg0, %c0_i32 : i32, i32
  }
  func.func @transform_2(%arg0: i32) -> (i32, i32) {
    %c0_i32 = arith.constant 0 : i32
    %c0_i32_0 = arith.constant 0 : i32
    %c0_i32_1 = arith.constant 0 : i32
    return %c0_i32, %c0_i32_0 : i32, i32
  }
  func.func @transform_3(%arg0: i32) -> (i32, i32) {
    %c0_i32 = arith.constant 0 : i32
    %c0_i32_0 = arith.constant 0 : i32
    %c0_i32_1 = arith.constant 0 : i32
    return %c0_i32, %c0_i32_0 : i32, i32
  }
  func.func @transform_4(%arg0: i32) -> (i32, i32) {
    %c0_i32 = arith.constant 0 : i32
    %c0_i32_0 = arith.constant 0 : i32
    return %arg0, %c0_i32 : i32, i32
  }
}

module attributes {stable_mosaic.version = 11 : i64} {
  func.func @_up_kernel(%arg0: i32, %arg1: memref<16x128xbf16, #tpu.memory_space<vmem>>, %arg2: memref<16x256xbf16, #tpu.memory_space<vmem>>, %arg3: memref<128x128xbf16, #tpu.memory_space<vmem>>, %arg4: memref<16x256xbf16, #tpu.memory_space<vmem>>) attributes {dimension_semantics = [#tpu.dimension_semantics<parallel>], iteration_bounds = array<i64: 2>, scalar_prefetch = 0 : i64, scratch_operands = 0 : i64, tpu.core_type = #tpu.core_type<tc>, window_params = [{transform_indices = @transform_0, window_bounds = array<i64: 16, 128>}, {transform_indices = @transform_1, window_bounds = array<i64: 16, 256>}, {pipeline_mode = #tpu.pipeline_mode<synchronous>, transform_indices = @transform_2, window_bounds = array<i64: 128, 128>}, {transform_indices = @transform_3, window_bounds = array<i64: 16, 256>}]} {
    %c0 = arith.constant 0 : index
    %c0_0 = arith.constant 0 : index
    %0 = vector.load %arg1[%c0, %c0_0] : memref<16x128xbf16, #tpu.memory_space<vmem>>, vector<16x128xbf16>
    %c0_1 = arith.constant 0 : index
    %c0_2 = arith.constant 0 : index
    %1 = vector.load %arg3[%c0_1, %c0_2] : memref<128x128xbf16, #tpu.memory_space<vmem>>, vector<128x128xbf16>
    %cst = arith.constant dense<0.000000e+00> : vector<16x128xf32>
    %2 = tpu.matmul %0, %1, %cst {dimension_numbers = #tpu.dot_dimension_numbers<[1], [0], [0], [1], [0, 0, 1, 1], [], []>} : vector<16x128xbf16>, vector<128x128xbf16>, vector<16x128xf32> -> vector<16x128xf32>
    %c0_3 = arith.constant 0 : index
    %c0_4 = arith.constant 0 : index
    %3 = vector.load %arg2[%c0_3, %c0_4] : memref<16x256xbf16, #tpu.memory_space<vmem>>, vector<16x256xbf16>
    %4 = arith.extf %3 : vector<16x256xbf16> to vector<16x256xf32>
    %5 = tpu.concatenate %2, %2 in 1 : vector<16x128xf32>, vector<16x128xf32> -> vector<16x256xf32>
    %6 = arith.addf %4, %5 : vector<16x256xf32>
    %cst_5 = arith.constant 0.000000e+00 : f32
    %7 = vector.broadcast %cst_5 : f32 to vector<16x256xf32>
    %8 = arith.maximumf %6, %7 : vector<16x256xf32>
    %9 = arith.truncf %8 : vector<16x256xf32> to vector<16x256xbf16>
    %c0_6 = arith.constant 0 : index
    %c0_7 = arith.constant 0 : index
    %10 = vector.load %arg4[%c0_6, %c0_7] : memref<16x256xbf16, #tpu.memory_space<vmem>>, vector<16x256xbf16>
    tpu.vector_store %arg4[%c0_6, %c0_7], %9 {strides = array<i32>} : memref<16x256xbf16, #tpu.memory_space<vmem>>, vector<16x256xbf16>,
    return
  }
  func.func @transform_0(%arg0: i32) -> (i32, i32) {
    %c0_i32 = arith.constant 0 : i32
    %c0_i32_0 = arith.constant 0 : i32
    return %arg0, %c0_i32 : i32, i32
  }
  func.func @transform_1(%arg0: i32) -> (i32, i32) {
    %c0_i32 = arith.constant 0 : i32
    %c0_i32_0 = arith.constant 0 : i32
    return %arg0, %c0_i32 : i32, i32
  }
  func.func @transform_2(%arg0: i32) -> (i32, i32) {
    %c0_i32 = arith.constant 0 : i32
    %c0_i32_0 = arith.constant 0 : i32
    %c0_i32_1 = arith.constant 0 : i32
    return %c0_i32, %c0_i32_0 : i32, i32
  }
  func.func @transform_3(%arg0: i32) -> (i32, i32) {
    %c0_i32 = arith.constant 0 : i32
    %c0_i32_0 = arith.constant 0 : i32
    return %arg0, %c0_i32 : i32, i32
  }
}

module attributes {stable_mosaic.version = 11 : i64} {
  func.func @_up_kernel(%arg0: i32, %arg1: memref<8x128xbf16, #tpu.memory_space<vmem>>, %arg2: memref<8x256xbf16, #tpu.memory_space<vmem>>, %arg3: memref<128x128xbf16, #tpu.memory_space<vmem>>, %arg4: memref<8x256xbf16, #tpu.memory_space<vmem>>) attributes {dimension_semantics = [#tpu.dimension_semantics<parallel>], iteration_bounds = array<i64: 2>, scalar_prefetch = 0 : i64, scratch_operands = 0 : i64, tpu.core_type = #tpu.core_type<tc>, window_params = [{transform_indices = @transform_0, window_bounds = array<i64: 8, 128>}, {transform_indices = @transform_1, window_bounds = array<i64: 8, 256>}, {pipeline_mode = #tpu.pipeline_mode<synchronous>, transform_indices = @transform_2, window_bounds = array<i64: 128, 128>}, {transform_indices = @transform_3, window_bounds = array<i64: 8, 256>}]} {
    %c0 = arith.constant 0 : index
    %c0_0 = arith.constant 0 : index
    %0 = vector.load %arg1[%c0, %c0_0] : memref<8x128xbf16, #tpu.memory_space<vmem>>, vector<8x128xbf16>
    %c0_1 = arith.constant 0 : index
    %c0_2 = arith.constant 0 : index
    %1 = vector.load %arg3[%c0_1, %c0_2] : memref<128x128xbf16, #tpu.memory_space<vmem>>, vector<128x128xbf16>
    %cst = arith.constant dense<0.000000e+00> : vector<8x128xf32>
    %2 = tpu.matmul %0, %1, %cst {dimension_numbers = #tpu.dot_dimension_numbers<[1], [0], [0], [1], [0, 0, 1, 1], [], []>} : vector<8x128xbf16>, vector<128x128xbf16>, vector<8x128xf32> -> vector<8x128xf32>
    %c0_3 = arith.constant 0 : index
    %c0_4 = arith.constant 0 : index
    %3 = vector.load %arg2[%c0_3, %c0_4] : memref<8x256xbf16, #tpu.memory_space<vmem>>, vector<8x256xbf16>
    %4 = arith.extf %3 : vector<8x256xbf16> to vector<8x256xf32>
    %5 = tpu.concatenate %2, %2 in 1 : vector<8x128xf32>, vector<8x128xf32> -> vector<8x256xf32>
    %6 = arith.addf %4, %5 : vector<8x256xf32>
    %cst_5 = arith.constant 0.000000e+00 : f32
    %7 = vector.broadcast %cst_5 : f32 to vector<8x256xf32>
    %8 = arith.maximumf %6, %7 : vector<8x256xf32>
    %9 = arith.truncf %8 : vector<8x256xf32> to vector<8x256xbf16>
    %c0_6 = arith.constant 0 : index
    %c0_7 = arith.constant 0 : index
    %10 = vector.load %arg4[%c0_6, %c0_7] : memref<8x256xbf16, #tpu.memory_space<vmem>>, vector<8x256xbf16>
    tpu.vector_store %arg4[%c0_6, %c0_7], %9 {strides = array<i32>} : memref<8x256xbf16, #tpu.memory_space<vmem>>, vector<8x256xbf16>,
    return
  }
  func.func @transform_0(%arg0: i32) -> (i32, i32) {
    %c0_i32 = arith.constant 0 : i32
    %c0_i32_0 = arith.constant 0 : i32
    return %arg0, %c0_i32 : i32, i32
  }
  func.func @transform_1(%arg0: i32) -> (i32, i32) {
    %c0_i32 = arith.constant 0 : i32
    %c0_i32_0 = arith.constant 0 : i32
    return %arg0, %c0_i32 : i32, i32
  }
  func.func @transform_2(%arg0: i32) -> (i32, i32) {
    %c0_i32 = arith.constant 0 : i32
    %c0_i32_0 = arith.constant 0 : i32
    %c0_i32_1 = arith.constant 0 : i32
    return %c0_i32, %c0_i32_0 : i32, i32
  }
  func.func @transform_3(%arg0: i32) -> (i32, i32) {
    %c0_i32 = arith.constant 0 : i32
    %c0_i32_0 = arith.constant 0 : i32
    return %arg0, %c0_i32 : i32, i32
  }
}

module attributes {stable_mosaic.version = 11 : i64} {
  func.func @_up_cls_kernel(%arg0: i32, %arg1: memref<32x128xbf16, #tpu.memory_space<vmem>>, %arg2: memref<32x256xbf16, #tpu.memory_space<vmem>>, %arg3: memref<128x128xbf16, #tpu.memory_space<vmem>>, %arg4: memref<128x128xbf16, #tpu.memory_space<vmem>>, %arg5: memref<128x128xbf16, #tpu.memory_space<vmem>>, %arg6: memref<1x128xf32, #tpu.memory_space<vmem>>, %arg7: memref<32x256xf32, #tpu.memory_space<vmem>>) attributes {dimension_semantics = [#tpu.dimension_semantics<parallel>], iteration_bounds = array<i64: 2>, scalar_prefetch = 0 : i64, scratch_operands = 0 : i64, tpu.core_type = #tpu.core_type<tc>, window_params = [{transform_indices = @transform_0, window_bounds = array<i64: 32, 128>}, {transform_indices = @transform_1, window_bounds = array<i64: 32, 256>}, {pipeline_mode = #tpu.pipeline_mode<synchronous>, transform_indices = @transform_2, window_bounds = array<i64: 128, 128>}, {pipeline_mode = #tpu.pipeline_mode<synchronous>, transform_indices = @transform_3, window_bounds = array<i64: 128, 128>}, {pipeline_mode = #tpu.pipeline_mode<synchronous>, transform_indices = @transform_4, window_bounds = array<i64: 128, 128>}, {pipeline_mode = #tpu.pipeline_mode<synchronous>, transform_indices = @transform_5, window_bounds = array<i64: 1, 128>}, {transform_indices = @transform_6, window_bounds = array<i64: 32, 256>}]} {
    %c0 = arith.constant 0 : index
    %c0_0 = arith.constant 0 : index
    %0 = vector.load %arg1[%c0, %c0_0] : memref<32x128xbf16, #tpu.memory_space<vmem>>, vector<32x128xbf16>
    %c0_1 = arith.constant 0 : index
    %c0_2 = arith.constant 0 : index
    %1 = vector.load %arg3[%c0_1, %c0_2] : memref<128x128xbf16, #tpu.memory_space<vmem>>, vector<128x128xbf16>
    %cst = arith.constant dense<0.000000e+00> : vector<32x128xf32>
    %2 = tpu.matmul %0, %1, %cst {dimension_numbers = #tpu.dot_dimension_numbers<[1], [0], [0], [1], [0, 0, 1, 1], [], []>} : vector<32x128xbf16>, vector<128x128xbf16>, vector<32x128xf32> -> vector<32x128xf32>
    %c0_3 = arith.constant 0 : index
    %c0_4 = arith.constant 0 : index
    %3 = vector.load %arg2[%c0_3, %c0_4] : memref<32x256xbf16, #tpu.memory_space<vmem>>, vector<32x256xbf16>
    %4 = arith.extf %3 : vector<32x256xbf16> to vector<32x256xf32>
    %5 = tpu.concatenate %2, %2 in 1 : vector<32x128xf32>, vector<32x128xf32> -> vector<32x256xf32>
    %6 = arith.addf %4, %5 : vector<32x256xf32>
    %cst_5 = arith.constant 0.000000e+00 : f32
    %7 = vector.broadcast %cst_5 : f32 to vector<32x256xf32>
    %8 = arith.maximumf %6, %7 : vector<32x256xf32>
    %9 = arith.truncf %8 : vector<32x256xf32> to vector<32x256xbf16>
    %10 = vector.extract_strided_slice %9 {offsets = [0, 0], sizes = [32, 128], strides = [1, 1]} : vector<32x256xbf16> to vector<32x128xbf16>
    %c0_6 = arith.constant 0 : index
    %c0_7 = arith.constant 0 : index
    %11 = vector.load %arg4[%c0_6, %c0_7] : memref<128x128xbf16, #tpu.memory_space<vmem>>, vector<128x128xbf16>
    %cst_8 = arith.constant dense<0.000000e+00> : vector<32x128xf32>
    %12 = tpu.matmul %10, %11, %cst_8 {dimension_numbers = #tpu.dot_dimension_numbers<[1], [0], [0], [1], [0, 0, 1, 1], [], []>} : vector<32x128xbf16>, vector<128x128xbf16>, vector<32x128xf32> -> vector<32x128xf32>
    %cst_9 = arith.constant 0.000000e+00 : f32
    %13 = vector.broadcast %cst_9 : f32 to vector<32x128xf32>
    %14 = arith.maximumf %12, %13 : vector<32x128xf32>
    %15 = arith.truncf %14 : vector<32x128xf32> to vector<32x128xbf16>
    %c0_10 = arith.constant 0 : index
    %c0_11 = arith.constant 0 : index
    %16 = vector.load %arg5[%c0_10, %c0_11] : memref<128x128xbf16, #tpu.memory_space<vmem>>, vector<128x128xbf16>
    %cst_12 = arith.constant dense<0.000000e+00> : vector<32x128xf32>
    %17 = tpu.matmul %15, %16, %cst_12 {dimension_numbers = #tpu.dot_dimension_numbers<[1], [0], [0], [1], [0, 0, 1, 1], [], []>} : vector<32x128xbf16>, vector<128x128xbf16>, vector<32x128xf32> -> vector<32x128xf32>
    %c0_13 = arith.constant 0 : index
    %c0_14 = arith.constant 0 : index
    %18 = vector.load %arg6[%c0_13, %c0_14] : memref<1x128xf32, #tpu.memory_space<vmem>>, vector<1x128xf32>
    %19 = vector.broadcast %18 : vector<1x128xf32> to vector<32x128xf32>
    %20 = arith.addf %17, %19 : vector<32x128xf32>
    %21 = vector.extract_strided_slice %9 {offsets = [0, 128], sizes = [32, 128], strides = [1, 1]} : vector<32x256xbf16> to vector<32x128xbf16>
    %c0_15 = arith.constant 0 : index
    %c0_16 = arith.constant 0 : index
    %22 = vector.load %arg4[%c0_15, %c0_16] : memref<128x128xbf16, #tpu.memory_space<vmem>>, vector<128x128xbf16>
    %cst_17 = arith.constant dense<0.000000e+00> : vector<32x128xf32>
    %23 = tpu.matmul %21, %22, %cst_17 {dimension_numbers = #tpu.dot_dimension_numbers<[1], [0], [0], [1], [0, 0, 1, 1], [], []>} : vector<32x128xbf16>, vector<128x128xbf16>, vector<32x128xf32> -> vector<32x128xf32>
    %cst_18 = arith.constant 0.000000e+00 : f32
    %24 = vector.broadcast %cst_18 : f32 to vector<32x128xf32>
    %25 = arith.maximumf %23, %24 : vector<32x128xf32>
    %26 = arith.truncf %25 : vector<32x128xf32> to vector<32x128xbf16>
    %c0_19 = arith.constant 0 : index
    %c0_20 = arith.constant 0 : index
    %27 = vector.load %arg5[%c0_19, %c0_20] : memref<128x128xbf16, #tpu.memory_space<vmem>>, vector<128x128xbf16>
    %cst_21 = arith.constant dense<0.000000e+00> : vector<32x128xf32>
    %28 = tpu.matmul %26, %27, %cst_21 {dimension_numbers = #tpu.dot_dimension_numbers<[1], [0], [0], [1], [0, 0, 1, 1], [], []>} : vector<32x128xbf16>, vector<128x128xbf16>, vector<32x128xf32> -> vector<32x128xf32>
    %c0_22 = arith.constant 0 : index
    %c0_23 = arith.constant 0 : index
    %29 = vector.load %arg6[%c0_22, %c0_23] : memref<1x128xf32, #tpu.memory_space<vmem>>, vector<1x128xf32>
    %30 = vector.broadcast %29 : vector<1x128xf32> to vector<32x128xf32>
    %31 = arith.addf %28, %30 : vector<32x128xf32>
    %32 = tpu.concatenate %20, %31 in 1 : vector<32x128xf32>, vector<32x128xf32> -> vector<32x256xf32>
    %c0_24 = arith.constant 0 : index
    %c0_25 = arith.constant 0 : index
    %33 = vector.load %arg7[%c0_24, %c0_25] : memref<32x256xf32, #tpu.memory_space<vmem>>, vector<32x256xf32>
    tpu.vector_store %arg7[%c0_24, %c0_25], %32 {strides = array<i32>} : memref<32x256xf32, #tpu.memory_space<vmem>>, vector<32x256xf32>,
    return
  }
  func.func @transform_0(%arg0: i32) -> (i32, i32) {
    %c0_i32 = arith.constant 0 : i32
    %c0_i32_0 = arith.constant 0 : i32
    return %arg0, %c0_i32 : i32, i32
  }
  func.func @transform_1(%arg0: i32) -> (i32, i32) {
    %c0_i32 = arith.constant 0 : i32
    %c0_i32_0 = arith.constant 0 : i32
    return %arg0, %c0_i32 : i32, i32
  }
  func.func @transform_2(%arg0: i32) -> (i32, i32) {
    %c0_i32 = arith.constant 0 : i32
    %c0_i32_0 = arith.constant 0 : i32
    %c0_i32_1 = arith.constant 0 : i32
    return %c0_i32, %c0_i32_0 : i32, i32
  }
  func.func @transform_3(%arg0: i32) -> (i32, i32) {
    %c0_i32 = arith.constant 0 : i32
    %c0_i32_0 = arith.constant 0 : i32
    %c0_i32_1 = arith.constant 0 : i32
    return %c0_i32, %c0_i32_0 : i32, i32
  }
  func.func @transform_4(%arg0: i32) -> (i32, i32) {
    %c0_i32 = arith.constant 0 : i32
    %c0_i32_0 = arith.constant 0 : i32
    %c0_i32_1 = arith.constant 0 : i32
    return %c0_i32, %c0_i32_0 : i32, i32
  }
  func.func @transform_5(%arg0: i32) -> (i32, i32) {
    %c0_i32 = arith.constant 0 : i32
    %c0_i32_0 = arith.constant 0 : i32
    %c0_i32_1 = arith.constant 0 : i32
    return %c0_i32, %c0_i32_0 : i32, i32
  }
  func.func @transform_6(%arg0: i32) -> (i32, i32) {
    %c0_i32 = arith.constant 0 : i32
    %c0_i32_0 = arith.constant 0 : i32
    return %arg0, %c0_i32 : i32, i32
  }
}

</mosaic_0001>

<llo_original>
// kernel: dlptnet_seg_forward.9
$region0: #{dlptnet_seg_forward.9}
  #allocation0 [shape = 'u32[]', space=smem, size = 0x4, offset = 0x4, fixed_abs, tag = 'smem constant byte address 0x4 - core index']
  #allocation1 [shape = 'u32[144,128]{1,0:T(1,128)}', space=vmem, size = 0x12000, scoped, tag = 'internal scratch']
  %s0 = inlined_call_operand.vmem [shape: bf16[128,6], index: 0, kind: input, shape index: {}]
  %s1 = inlined_call_operand.vmem [shape: bf16[6,128], index: 1, kind: input, shape index: {}]
  %s2 = inlined_call_operand.vmem [shape: bf16[128,128], index: 2, kind: output, shape index: {}]
  %s3 = sld [smem:[#allocation0]]
  $region41: #{dlptnet_seg_forward.9} parent=0
    _
  %s5 = ssub.s32 1, %s3
  %s6 = scalar_select 0, %s5, %s3
  loop: start=0, step=1, limit=4
  $region2: #{dlptnet_seg_forward.9} parent=0 // loop_pre_header
    _
  $region3: #{dlptnet_seg_forward.9} parent=0 // loop_header
    %s8 = sphi 0, %s12
    %p9 = scmp.ge.s32.totalorder %s8, 4
    %s18 = sphi 0, %s20
    %s21 = sphi 0, %s18
    %s22 = sphi 0, %s21
    %s38 = sphi 0, %s22
    %s42 = sphi 0, %s42
    %s44 = sphi 0, %s42
    %s45 = sphi 0, %s44
    %s59 = sphi 0, %s45
    %s65 = sphi 0, %s67
    %s68 = sphi 0, %s65
    %s69 = sphi 0, %s68
    %s85 = sphi 0, %s69
  $region4: #{dlptnet_seg_forward.9} parent=0 // loop_header_branch
    %11 = sbr.rel (%p9) target = $region8
  $region5: #{dlptnet_seg_forward.9} parent=0 // loop_body
    %s13 = ssub.s32 %s8, 1
    %s14 = ssub.s32 %s8, 2
    %s15 = sadd.s32 %s8, 1
    %s16 = ssub.s32 %s8, %s15
    %p17 = scmp.eq.s32.totalorder %s16, 0
    %s19 = sadd.s32 %s18, 1
    %s20 = scalar_select %p17, %s18, %s19
    %p23 = pneg %p17
    %p24 = scmp.eq.s32.totalorder %s8, 1
    %p25 = por %p23, %p24
    %p26 = scmp.ne.s32.totalorder %s18, %s21
    %p27 = scmp.eq.s32.totalorder %s8, 0
    %p28 = por %p26, %p27
    %p29 = scmp.ne.s32.totalorder %s18, %s21
    %p30 = scmp.eq.s32.totalorder %s13, 1
    %p31 = por %p29, %p30
    %p32 = scmp.ne.s32.totalorder %s21, %s22
    %p33 = scmp.eq.s32.totalorder %s13, 0
    %p34 = por %p32, %p33
    %p35 = scmp.ne.s32.totalorder %s21, %s22
    %p36 = scmp.eq.s32.totalorder %s14, 1
    %p37 = por %p35, %p36
    %p39 = scmp.ne.s32.totalorder %s22, %s38
    %p40 = scmp.eq.s32.totalorder %s14, 0
    %p41 = por %p39, %p40
    %s43 = sadd.s32 %s42, 1
    %p46 = scmp.eq.s32.totalorder %s8, 1
    %p47 = scmp.ne.s32.totalorder %s42, %s44
    %p48 = scmp.eq.s32.totalorder %s8, 0
    %p49 = por %p47, %p48
    %p50 = scmp.ne.s32.totalorder %s42, %s44
    %p51 = scmp.eq.s32.totalorder %s13, 1
    %p52 = por %p50, %p51
    %p53 = scmp.ne.s32.totalorder %s44, %s45
    %p54 = scmp.eq.s32.totalorder %s13, 0
    %p55 = por %p53, %p54
    %p56 = scmp.ne.s32.totalorder %s44, %s45
    %p57 = scmp.eq.s32.totalorder %s14, 1
    %p58 = por %p56, %p57
    %p60 = scmp.ne.s32.totalorder %s45, %s59
    %p61 = scmp.eq.s32.totalorder %s14, 0
    %p62 = por %p60, %p61
    %s63 = ssub.s32 %s8, %s15
    %p64 = scmp.eq.s32.totalorder %s63, 0
    %s66 = sadd.s32 %s65, 1
    %s67 = scalar_select %p64, %s65, %s66
    %p70 = pneg %p64
    %p71 = scmp.eq.s32.totalorder %s8, 1
    %p72 = por %p70, %p71
    %p73 = scmp.ne.s32.totalorder %s65, %s68
    %p74 = scmp.eq.s32.totalorder %s8, 0
    %p75 = por %p73, %p74
    %p76 = scmp.ne.s32.totalorder %s65, %s68
    %p77 = scmp.eq.s32.totalorder %s13, 1
    %p78 = por %p76, %p77
    %p79 = scmp.ne.s32.totalorder %s68, %s69
    %p80 = scmp.eq.s32.totalorder %s13, 0
    %p81 = por %p79, %p80
    %p82 = scmp.ne.s32.totalorder %s68, %s69
    %p83 = scmp.eq.s32.totalorder %s14, 1
    %p84 = por %p82, %p83
    %p86 = scmp.ne.s32.totalorder %s69, %s85
    %p87 = scmp.eq.s32.totalorder %s14, 0
    %p88 = por %p86, %p87
    %p89 = scmp.le.s32.totalorder 1, %s8
    %p90 = scmp.lt.s32.totalorder %s8, 3
    %p91 = pnand %p89, %p90
    %p92 = pneg %p91
    // Predicated region
    $region9: #{dlptnet_seg_forward.9} parent=5 // pred_check
      _
    $region10: #{dlptnet_seg_forward.9} parent=5 // pred_check_branch
      %94 = sbr.rel (%p91) target = $region12
    $region11: #{dlptnet_seg_forward.9} parent=5 // pred_region
      %s95 = ssub.s32 %s8, 1
      // Predicated region
      $region13: #{dlptnet_seg_forward.9} parent=11 // pred_check
        %p96 = pneg %p55
      $region14: #{dlptnet_seg_forward.9} parent=11 // pred_check_branch
        %98 = sbr.rel (%p96) target = $region16
      $region15: #{dlptnet_seg_forward.9} parent=11 // pred_region
        _
      $region16: #{dlptnet_seg_forward.9} parent=11 // pred_fallthru
        _
    $region12: #{dlptnet_seg_forward.9} parent=5 // pred_fallthru
      _
    %p99 = scmp.lt.s32.totalorder %s8, 2
    // Predicated region
    $region17: #{dlptnet_seg_forward.9} parent=5 // pred_check
      %p100 = pneg %p99
    $region18: #{dlptnet_seg_forward.9} parent=5 // pred_check_branch
      %102 = sbr.rel (%p100) target = $region20
    $region19: #{dlptnet_seg_forward.9} parent=5 // pred_region
      // Predicated region
      $region21: #{dlptnet_seg_forward.9} parent=19 // pred_check
        %p103 = pneg %p28
      $region22: #{dlptnet_seg_forward.9} parent=19 // pred_check_branch
        %105 = sbr.rel (%p103) target = $region24
      $region23: #{dlptnet_seg_forward.9} parent=19 // pred_region
        %s106 = smul.u32 8, %s8
        %p107 = scmp.lt.s32.totalorder %s106, 15
        %s108 = scalar_select %p107, %s106, 15
        %s109 = smul.addr %s108, 4
        %s110 = scalar_lea.vmem %s0, %s109
        %s111 = smul.u32 8, %s8
      $region24: #{dlptnet_seg_forward.9} parent=19 // pred_fallthru
        _
    $region20: #{dlptnet_seg_forward.9} parent=5 // pred_fallthru
      _
    %p112 = scmp.le.s32.totalorder 1, %s8
    %p113 = scmp.lt.s32.totalorder %s8, 3
    %p114 = pnand %p112, %p113
    %p115 = pneg %p114
    // Predicated region
    $region25: #{dlptnet_seg_forward.9} parent=5 // pred_check
      _
    $region26: #{dlptnet_seg_forward.9} parent=5 // pred_check_branch
      %117 = sbr.rel (%p114) target = $region28
    $region27: #{dlptnet_seg_forward.9} parent=5 // pred_region
      %s118 = ssub.s32 %s8, 1
      %s119 = smul.u32 8, %s13
      %p120 = scmp.lt.s32.totalorder %s119, 15
      %s121 = scalar_select %p120, %s119, 15
      %s122 = smul.addr %s121, 4
      %s123 = scalar_lea.vmem %s0, %s122
      %p124 = pneg %p34
      %p125 = pneg %p31
      %p126 = pneg %p55
      %p127 = pneg %p52
      %p128 = pneg %p81
      %p129 = pneg %p78
      %s130 = smul.u32 8, %s13
      %p131 = scmp.lt.s32.totalorder %s130, 15
      %s132 = scalar_select %p131, %s130, 15
      %s133 = smul.addr %s132, 4
      %s134 = scalar_lea.vmem %s2, %s133
      %s135 = smul.u32 8, %s13
      %p136 = scmp.lt.s32.totalorder %s135, 15
      %s137 = scalar_select %p136, %s135, 15
      %s138 = smul.addr %s137, 4
      %s139 = scalar_lea.vmem %s0, %s138
      %s140 = smul.u32 8, %s13
      %s141 = smul.u32 8, %s13
      %p142 = scmp.lt.s32.totalorder %s141, 15
      %s143 = scalar_select %p142, %s141, 15
      %s144 = smul.addr %s143, 4
      %s145 = scalar_lea.vmem %s2, %s144
      %s146 = smul.u32 8, %s13
      %v148 = vld [vmem:[%s139] sm:$0xf]
      %v149 = vld [vmem:[%s139 + $0x4] sm:$0xf]
      %v150 = vld [vmem:[%s139 + $0x8] sm:$0xf]
      %v151 = vld [vmem:[%s139 + $0xc] sm:$0xf]
      %v152 = vld [vmem:[%s139 + $0x10] sm:$0xf]
      %v153 = vld [vmem:[%s139 + $0x14] sm:$0xf]
      %v154 = vld [vmem:[%s139 + $0x18] sm:$0xf]
      %v155 = vld [vmem:[%s139 + $0x1c] sm:$0xf]
      %v156 = vld [vmem:[%s1] sm:$0x7]
      %v165 = vunpack.c.l.b16 %v148
      %v166 = vunpack.c.l.b16 %v149
      %v167 = vunpack.c.l.b16 %v150
      %v168 = vunpack.c.l.b16 %v151
      %v169 = vunpack.c.l.b16 %v152
      %v170 = vunpack.c.l.b16 %v153
      %v171 = vunpack.c.l.b16 %v154
      %v172 = vunpack.c.l.b16 %v155
      %v173 = vpack.c.b16 %v166, %v165
      %v174 = vpack.c.b16 %v168, %v167
      %v175 = vpack.c.b16 %v170, %v169
      %v176 = vpack.c.b16 %v172, %v171
      %vm177 = vcmask 48128
      %v179 = vsel %vm177, %v173, 0
      %v182 = vsel %vm177, %v174, 0
      %v185 = vsel %vm177, %v175, 0
      %v188 = vsel %vm177, %v176, 0
      %vm190 = vcmask 1042432
      %v192 = vsel %vm190, %v156, 0
      %194 = vmatprep.subr.bf16.mxu0 0
      %195 = vmatpush1.bf16.msra.mxu0 %v192
      %196 = vmatprep.subr.bf16.mxu0 0
      %197 = vmatpush1.bf16.msra.mxu0 0
      %198 = vmatprep.subr.bf16.mxu0 0
      %199 = vmatpush1.bf16.msra.mxu0 0
      %200 = vmatprep.subr.bf16.mxu0 0
      %201 = vmatpush1.bf16.msra.mxu0 0
      %202 = vmatprep.subr.bf16.mxu0 0
      %203 = vmatpush1.bf16.msra.mxu0 0
      %204 = vmatprep.subr.bf16.mxu0 0
      %205 = vmatpush1.bf16.msra.mxu0 0
      %206 = vmatprep.subr.bf16.mxu0 0
      %207 = vmatpush1.bf16.msra.mxu0 0
      %208 = vmatprep.subr.bf16.mxu0 0
      %209 = vmatpush1.bf16.msra.mxu0 0
      %210 = vmatprep.subr.bf16.mxu0 0
      %211 = vmatpush1.bf16.msra.mxu0 0
      %212 = vmatprep.subr.bf16.mxu0 0
      %213 = vmatpush1.bf16.msra.mxu0 0
      %214 = vmatprep.subr.bf16.mxu0 0
      %215 = vmatpush1.bf16.msra.mxu0 0
      %216 = vmatprep.subr.bf16.mxu0 0
      %217 = vmatpush1.bf16.msra.mxu0 0
      %218 = vmatprep.subr.bf16.mxu0 0
      %219 = vmatpush1.bf16.msra.mxu0 0
      %220 = vmatprep.subr.bf16.mxu0 0
      %221 = vmatpush1.bf16.msra.mxu0 0
      %222 = vmatprep.subr.bf16.mxu0 0
      %223 = vmatpush1.bf16.msra.mxu0 0
      %224 = vmatprep.subr.bf16.mxu0 0
      %225 = vmatpush1.bf16.msra.mxu0 0
      %226 = vmatprep.mubr.bf16.mxu0 0
      %227 = vmatmul.mubr.bf16.gmra.mrb[0].mxu0 %v179
      %v228 = vpop.f32.mrb[0].mxu0
      %v229 = vadd.f32 0.0, %v228
      %v230 = vpop.f32.mrb[0].mxu0
      %v231 = vpop.f32.mrb[0].mxu0
      %v232 = vadd.f32 0.0, %v231
      %v233 = vpop.f32.mrb[0].mxu0
      %234 = vmatprep.mubr.bf16.mxu0 0
      %235 = vmatmul.mubr.bf16.gmra.mrb[0].mxu0 %v182
      %v236 = vpop.f32.mrb[0].mxu0
      %v237 = vadd.f32 0.0, %v236
      %v238 = vpop.f32.mrb[0].mxu0
      %v239 = vpop.f32.mrb[0].mxu0
      %v240 = vadd.f32 0.0, %v239
      %v241 = vpop.f32.mrb[0].mxu0
      %242 = vmatprep.mubr.bf16.mxu0 0
      %243 = vmatmul.mubr.bf16.gmra.mrb[0].mxu0 %v185
      %v244 = vpop.f32.mrb[0].mxu0
      %v245 = vadd.f32 0.0, %v244
      %v246 = vpop.f32.mrb[0].mxu0
      %v247 = vpop.f32.mrb[0].mxu0
      %v248 = vadd.f32 0.0, %v247
      %v249 = vpop.f32.mrb[0].mxu0
      %250 = vmatprep.mubr.bf16.mxu0 0
      %251 = vmatmul.mubr.bf16.gmra.mrb[0].mxu0 %v188
      %v252 = vpop.f32.mrb[0].mxu0
      %v253 = vadd.f32 0.0, %v252
      %v254 = vpop.f32.mrb[0].mxu0
      %v255 = vpop.f32.mrb[0].mxu0
      %v256 = vadd.f32 0.0, %v255
      %v257 = vpop.f32.mrb[0].mxu0
      %258 = vdwg.mxu0
      %v259 = vmax.f32 %v229, 0.0
      %v260 = vmax.f32 %v232, 0.0
      %v261 = vmax.f32 %v237, 0.0
      %v262 = vmax.f32 %v240, 0.0
      %v263 = vmax.f32 %v245, 0.0
      %v264 = vmax.f32 %v248, 0.0
      %v265 = vmax.f32 %v253, 0.0
      %v266 = vmax.f32 %v256, 0.0
      %v267 = vpack.c.bf16 %v260, %v259
      %v268 = vpack.c.bf16 %v262, %v261
      %v269 = vpack.c.bf16 %v264, %v263
      %v270 = vpack.c.bf16 %v266, %v265
      %v275 = vunpack.c.l.b16 %v267
      %v276 = vunpack.c.h.b16 %v267
      %v277 = vunpack.c.l.b16 %v268
      %v278 = vunpack.c.h.b16 %v268
      %v279 = vunpack.c.l.b16 %v269
      %v280 = vunpack.c.h.b16 %v269
      %v281 = vunpack.c.l.b16 %v270
      %v282 = vunpack.c.h.b16 %v270
      %v283 = vpack.c.b16 %v275, %v275
      %v284 = vpack.c.b16 %v276, %v276
      %v285 = vpack.c.b16 %v277, %v277
      %v286 = vpack.c.b16 %v278, %v278
      %v287 = vpack.c.b16 %v279, %v279
      %v288 = vpack.c.b16 %v280, %v280
      %v289 = vpack.c.b16 %v281, %v281
      %v290 = vpack.c.b16 %v282, %v282
      %299 = vst [vmem:[%s145] sm:$0xf] %v283
      %300 = vst [vmem:[%s145 + $0x4] sm:$0xf] %v284
      %301 = vst [vmem:[%s145 + $0x8] sm:$0xf] %v285
      %302 = vst [vmem:[%s145 + $0xc] sm:$0xf] %v286
      %303 = vst [vmem:[%s145 + $0x10] sm:$0xf] %v287
      %304 = vst [vmem:[%s145 + $0x14] sm:$0xf] %v288
      %305 = vst [vmem:[%s145 + $0x18] sm:$0xf] %v289
      %306 = vst [vmem:[%s145 + $0x1c] sm:$0xf] %v290
      %s307 = smul.u32 8, %s13
      %p308 = scmp.lt.s32.totalorder %s307, 15
      %s309 = scalar_select %p308, %s307, 15
      %s310 = smul.addr %s309, 4
      %s311 = scalar_lea.vmem %s2, %s310
      // Predicated region
      $region29: #{dlptnet_seg_forward.9} parent=27 // pred_check
        %p312 = pneg %p78
      $region30: #{dlptnet_seg_forward.9} parent=27 // pred_check_branch
        %314 = sbr.rel (%p312) target = $region32
      $region31: #{dlptnet_seg_forward.9} parent=27 // pred_region
        %s315 = smul.u32 8, %s13
      $region32: #{dlptnet_seg_forward.9} parent=27 // pred_fallthru
        _
    $region28: #{dlptnet_seg_forward.9} parent=5 // pred_fallthru
      _
    %p316 = scmp.le.s32.totalorder 2, %s8
    // Predicated region
    $region33: #{dlptnet_seg_forward.9} parent=5 // pred_check
      %p317 = pneg %p316
    $region34: #{dlptnet_seg_forward.9} parent=5 // pred_check_branch
      %319 = sbr.rel (%p317) target = $region36
    $region35: #{dlptnet_seg_forward.9} parent=5 // pred_region
      %s320 = ssub.s32 %s8, 2
      // Predicated region
      $region37: #{dlptnet_seg_forward.9} parent=35 // pred_check
        %p321 = pneg %p84
      $region38: #{dlptnet_seg_forward.9} parent=35 // pred_check_branch
        %323 = sbr.rel (%p321) target = $region40
      $region39: #{dlptnet_seg_forward.9} parent=35 // pred_region
        %s324 = smul.u32 8, %s14
        %p325 = scmp.lt.s32.totalorder %s324, 15
        %s326 = scalar_select %p325, %s324, 15
        %s327 = smul.addr %s326, 4
        %s328 = scalar_lea.vmem %s2, %s327
      $region40: #{dlptnet_seg_forward.9} parent=35 // pred_fallthru
        _
    $region36: #{dlptnet_seg_forward.9} parent=5 // pred_fallthru
      _
  $region6: #{dlptnet_seg_forward.9} parent=0 // loop_footer
    %s12 = sadd.s32 1, %s8
  $region7: #{dlptnet_seg_forward.9} parent=0 // loop_footer_branch
    %7 = sbr.rel target = $region3
  $region8: #{dlptnet_seg_forward.9} parent=0 // loop_exit
    _

// kernel: dlptnet_seg_forward.10
$region0: #{dlptnet_seg_forward.10}
  #allocation0 [shape = 'u32[]', space=smem, size = 0x4, offset = 0x4, fixed_abs, tag = 'smem constant byte address 0x4 - core index']
  #allocation1 [shape = 'u32[144,128]{1,0:T(1,128)}', space=vmem, size = 0x12000, scoped, tag = 'internal scratch']
  %s0 = inlined_call_operand.vmem [shape: bf16[64,256], index: 0, kind: input, shape index: {}]
  %s1 = inlined_call_operand.vmem [shape: bf16[128,128], index: 1, kind: input, shape index: {}]
  %s2 = inlined_call_operand.vmem [shape: bf16[64,128], index: 2, kind: output, shape index: {}]
  %s3 = sld [smem:[#allocation0]]
  $region82: #{dlptnet_seg_forward.10} parent=0
    _
  %s5 = ssub.s32 1, %s3
  %s6 = scalar_select 0, %s5, %s3
  $region1: #{dlptnet_seg_forward.10} parent=0
    #allocation2 [shape = 'u8[16384]{0}', space=vmem, size = 0x4000, scoped, tag = 'input window, operand 0']
    loop: start=0, step=1, limit=4
    $region2: #{dlptnet_seg_forward.10} parent=1 // loop_pre_header
      _
    $region3: #{dlptnet_seg_forward.10} parent=1 // loop_header
      %s8 = sphi 0, %s12
      %p9 = scmp.ge.s32.totalorder %s8, 4
      %s18 = sphi 0, %s20
      %s21 = sphi 0, %s18
      %s22 = sphi 0, %s21
      %s38 = sphi 0, %s22
      %s42 = sphi 0, %s42
      %s44 = sphi 0, %s42
      %s45 = sphi 0, %s44
      %s59 = sphi 0, %s45
      %s65 = sphi 0, %s67
      %s68 = sphi 0, %s65
      %s69 = sphi 0, %s68
      %s85 = sphi 0, %s69
    $region4: #{dlptnet_seg_forward.10} parent=1 // loop_header_branch
      %11 = sbr.rel (%p9) target = $region8
    $region5: #{dlptnet_seg_forward.10} parent=1 // loop_body
      %s13 = ssub.s32 %s8, 1
      %s14 = ssub.s32 %s8, 2
      %s15 = sadd.s32 %s8, 1
      %s16 = ssub.s32 %s8, %s15
      %p17 = scmp.eq.s32.totalorder %s16, 0
      %s19 = sadd.s32 %s18, 1
      %s20 = scalar_select %p17, %s18, %s19
      %p23 = pneg %p17
      %p24 = scmp.eq.s32.totalorder %s8, 1
      %p25 = por %p23, %p24
      %p26 = scmp.ne.s32.totalorder %s18, %s21
      %p27 = scmp.eq.s32.totalorder %s8, 0
      %p28 = por %p26, %p27
      %p29 = scmp.ne.s32.totalorder %s18, %s21
      %p30 = scmp.eq.s32.totalorder %s13, 1
      %p31 = por %p29, %p30
      %p32 = scmp.ne.s32.totalorder %s21, %s22
      %p33 = scmp.eq.s32.totalorder %s13, 0
      %p34 = por %p32, %p33
      %p35 = scmp.ne.s32.totalorder %s21, %s22
      %p36 = scmp.eq.s32.totalorder %s14, 1
      %p37 = por %p35, %p36
      %p39 = scmp.ne.s32.totalorder %s22, %s38
      %p40 = scmp.eq.s32.totalorder %s14, 0
      %p41 = por %p39, %p40
      %s43 = sadd.s32 %s42, 1
      %p46 = scmp.eq.s32.totalorder %s8, 1
      %p47 = scmp.ne.s32.totalorder %s42, %s44
      %p48 = scmp.eq.s32.totalorder %s8, 0
      %p49 = por %p47, %p48
      %p50 = scmp.ne.s32.totalorder %s42, %s44
      %p51 = scmp.eq.s32.totalorder %s13, 1
      %p52 = por %p50, %p51
      %p53 = scmp.ne.s32.totalorder %s44, %s45
      %p54 = scmp.eq.s32.totalorder %s13, 0
      %p55 = por %p53, %p54
      %p56 = scmp.ne.s32.totalorder %s44, %s45
      %p57 = scmp.eq.s32.totalorder %s14, 1
      %p58 = por %p56, %p57
      %p60 = scmp.ne.s32.totalorder %s45, %s59
      %p61 = scmp.eq.s32.totalorder %s14, 0
      %p62 = por %p60, %p61
      %s63 = ssub.s32 %s8, %s15
      %p64 = scmp.eq.s32.totalorder %s63, 0
      %s66 = sadd.s32 %s65, 1
      %s67 = scalar_select %p64, %s65, %s66
      %p70 = pneg %p64
      %p71 = scmp.eq.s32.totalorder %s8, 1
      %p72 = por %p70, %p71
      %p73 = scmp.ne.s32.totalorder %s65, %s68
      %p74 = scmp.eq.s32.totalorder %s8, 0
      %p75 = por %p73, %p74
      %p76 = scmp.ne.s32.totalorder %s65, %s68
      %p77 = scmp.eq.s32.totalorder %s13, 1
      %p78 = por %p76, %p77
      %p79 = scmp.ne.s32.totalorder %s68, %s69
      %p80 = scmp.eq.s32.totalorder %s13, 0
      %p81 = por %p79, %p80
      %p82 = scmp.ne.s32.totalorder %s68, %s69
      %p83 = scmp.eq.s32.totalorder %s14, 1
      %p84 = por %p82, %p83
      %p86 = scmp.ne.s32.totalorder %s69, %s85
      %p87 = scmp.eq.s32.totalorder %s14, 0
      %p88 = por %p86, %p87
      %p89 = scmp.le.s32.totalorder 1, %s8
      %p90 = scmp.lt.s32.totalorder %s8, 3
      %p91 = pnand %p89, %p90
      %p92 = pneg %p91
      // Predicated region
      $region9: #{dlptnet_seg_forward.10} parent=5 // pred_check
        _
      $region10: #{dlptnet_seg_forward.10} parent=5 // pred_check_branch
        %94 = sbr.rel (%p91) target = $region12
      $region11: #{dlptnet_seg_forward.10} parent=5 // pred_region
        %s95 = ssub.s32 %s8, 1
        // Predicated region
        $region13: #{dlptnet_seg_forward.10} parent=11 // pred_check
          %p96 = pneg %p55
        $region14: #{dlptnet_seg_forward.10} parent=11 // pred_check_branch
          %98 = sbr.rel (%p96) target = $region16
        $region15: #{dlptnet_seg_forward.10} parent=11 // pred_region
          _
        $region16: #{dlptnet_seg_forward.10} parent=11 // pred_fallthru
          _
      $region12: #{dlptnet_seg_forward.10} parent=5 // pred_fallthru
        _
      %p99 = scmp.lt.s32.totalorder %s8, 2
      // Predicated region
      $region17: #{dlptnet_seg_forward.10} parent=5 // pred_check
        %p100 = pneg %p99
      $region18: #{dlptnet_seg_forward.10} parent=5 // pred_check_branch
        %102 = sbr.rel (%p100) target = $region20
      $region19: #{dlptnet_seg_forward.10} parent=5 // pred_region
        // Predicated region
        $region21: #{dlptnet_seg_forward.10} parent=19 // pred_check
          %p103 = pneg %p28
        $region22: #{dlptnet_seg_forward.10} parent=19 // pred_check_branch
          %105 = sbr.rel (%p103) target = $region24
        $region23: #{dlptnet_seg_forward.10} parent=19 // pred_region
          %s106 = sand.u32 %s18, 1
          %s107 = sand.u32 %s18, 1
          %s108 = smul.addr %s107, 16
          %s109 = scalar_lea.vmem [#allocation2], %s108
          %s110 = smul.u32 4, %s8
          %s111 = smul.addr %s110, 2
          %s112 = smul.addr %s111, 4
          %s113 = scalar_lea.vmem %s0, %s112
          // Predicated region
          $region25: #{dlptnet_seg_forward.10} parent=23 // pred_check
            _
          $region26: #{dlptnet_seg_forward.10} parent=23 // pred_check_branch
            %115 = sbr.rel (0) target = $region28
          $region27: #{dlptnet_seg_forward.10} parent=23 // pred_region
            // Predicated region
            $region29: #{dlptnet_seg_forward.10} parent=27 // pred_check
              _
            $region30: #{dlptnet_seg_forward.10} parent=27 // pred_check_branch
              %117 = sbr.rel target = $region32
            $region31: #{dlptnet_seg_forward.10} parent=27 // pred_region
              // Predicated region
              $region44: #{dlptnet_seg_forward.10} parent=31 // pred_check
                _
              $region45: #{dlptnet_seg_forward.10} parent=31 // pred_check_branch
                %138 = sbr.rel (0) target = $region47
              $region46: #{dlptnet_seg_forward.10} parent=31 // pred_region
                loop: start=0, step=1, limit=1
                $region48: #{dlptnet_seg_forward.10} parent=46 // loop_pre_header
                  _
                $region49: #{dlptnet_seg_forward.10} parent=46 // loop_header
                  %s140 = sphi 0, %s144
                  %p141 = scmp.ge.s32.totalorder %s140, 1
                  %s145 = sphi %s113, %s113
                  %s146 = sphi %s109, %s109
                $region50: #{dlptnet_seg_forward.10} parent=46 // loop_header_branch
                  %143 = sbr.rel (%p141) target = $region54
                $region51: #{dlptnet_seg_forward.10} parent=46 // loop_body
                  _
                $region52: #{dlptnet_seg_forward.10} parent=46 // loop_footer
                  %s144 = sadd.s32 1, %s140
                $region53: #{dlptnet_seg_forward.10} parent=46 // loop_footer_branch
                  %139 = sbr.rel target = $region49
                $region54: #{dlptnet_seg_forward.10} parent=46 // loop_exit
                  _
                loop: start=0, step=1, limit=1
                $region55: #{dlptnet_seg_forward.10} parent=46 // loop_pre_header
                  _
                $region56: #{dlptnet_seg_forward.10} parent=46 // loop_header
                  %s149 = sphi 0, %s153
                  %p150 = scmp.ge.s32.totalorder %s149, 1
                  %s154 = sphi %s113, %s113
                  %s155 = sphi %s109, %s109
                $region57: #{dlptnet_seg_forward.10} parent=46 // loop_header_branch
                  %152 = sbr.rel (%p150) target = $region61
                $region58: #{dlptnet_seg_forward.10} parent=46 // loop_body
                  %v156 = vld [vmem:[%s154] sm:$0xf]
                  %157 = vst [vmem:[%s155] sm:$0xf] %v156
                  %v158 = vld [vmem:[%s154 + $0x8] sm:$0xf]
                  %159 = vst [vmem:[%s155 + $0x4] sm:$0xf] %v158
                  %v160 = vld [vmem:[%s154 + $0x10] sm:$0xf]
                  %161 = vst [vmem:[%s155 + $0x8] sm:$0xf] %v160
                  %v162 = vld [vmem:[%s154 + $0x18] sm:$0xf]
                  %163 = vst [vmem:[%s155 + $0xc] sm:$0xf] %v162
                $region59: #{dlptnet_seg_forward.10} parent=46 // loop_footer
                  %s153 = sadd.s32 1, %s149
                $region60: #{dlptnet_seg_forward.10} parent=46 // loop_footer_branch
                  %148 = sbr.rel target = $region56
                $region61: #{dlptnet_seg_forward.10} parent=46 // loop_exit
                  _
              $region47: #{dlptnet_seg_forward.10} parent=31 // pred_fallthru
                _
            $region32: #{dlptnet_seg_forward.10} parent=27 // pred_fallthru
              _
            // Predicated region
            $region33: #{dlptnet_seg_forward.10} parent=27 // pred_check
              _
            $region34: #{dlptnet_seg_forward.10} parent=27 // pred_check_branch
              %119 = sbr.rel (0) target = $region36
            $region35: #{dlptnet_seg_forward.10} parent=27 // pred_region
              loop: start=0, step=1, limit=1
              $region37: #{dlptnet_seg_forward.10} parent=35 // loop_pre_header
                _
              $region38: #{dlptnet_seg_forward.10} parent=35 // loop_header
                %s122 = sphi 0, %s126
                %p123 = scmp.ge.s32.totalorder %s122, 1
                %s127 = sphi %s113, %s113
                %s128 = sphi %s109, %s109
              $region39: #{dlptnet_seg_forward.10} parent=35 // loop_header_branch
                %125 = sbr.rel (%p123) target = $region43
              $region40: #{dlptnet_seg_forward.10} parent=35 // loop_body
                %v129 = vld [vmem:[%s127] sm:$0xf]
                %130 = vst [vmem:[%s128] sm:$0xf] %v129
                %v131 = vld [vmem:[%s127 + $0x8] sm:$0xf]
                %132 = vst [vmem:[%s128 + $0x4] sm:$0xf] %v131
                %v133 = vld [vmem:[%s127 + $0x10] sm:$0xf]
                %134 = vst [vmem:[%s128 + $0x8] sm:$0xf] %v133
                %v135 = vld [vmem:[%s127 + $0x18] sm:$0xf]
                %136 = vst [vmem:[%s128 + $0xc] sm:$0xf] %v135
              $region41: #{dlptnet_seg_forward.10} parent=35 // loop_footer
                %s126 = sadd.s32 1, %s122
              $region42: #{dlptnet_seg_forward.10} parent=35 // loop_footer_branch
                %121 = sbr.rel target = $region38
              $region43: #{dlptnet_seg_forward.10} parent=35 // loop_exit
                _
            $region36: #{dlptnet_seg_forward.10} parent=27 // pred_fallthru
              _
          $region28: #{dlptnet_seg_forward.10} parent=23 // pred_fallthru
            _
          %164 = vnop
        $region24: #{dlptnet_seg_forward.10} parent=19 // pred_fallthru
          _
      $region20: #{dlptnet_seg_forward.10} parent=5 // pred_fallthru
        _
      %p165 = scmp.le.s32.totalorder 1, %s8
      %p166 = scmp.lt.s32.totalorder %s8, 3
      %p167 = pnand %p165, %p166
      %p168 = pneg %p167
      // Predicated region
      $region62: #{dlptnet_seg_forward.10} parent=5 // pred_check
        _
      $region63: #{dlptnet_seg_forward.10} parent=5 // pred_check_branch
        %170 = sbr.rel (%p167) target = $region65
      $region64: #{dlptnet_seg_forward.10} parent=5 // pred_region
        %s171 = ssub.s32 %s8, 1
        %s172 = sand.u32 %s21, 1
        %s173 = sand.u32 %s21, 1
        %s174 = smul.addr %s173, 16
        %s175 = scalar_lea.vmem [#allocation2], %s174
        // Predicated region
        $region66: #{dlptnet_seg_forward.10} parent=64 // pred_check
          %p176 = pneg %p34
        $region67: #{dlptnet_seg_forward.10} parent=64 // pred_check_branch
          %178 = sbr.rel (%p176) target = $region69
        $region68: #{dlptnet_seg_forward.10} parent=64 // pred_region
          _
        $region69: #{dlptnet_seg_forward.10} parent=64 // pred_fallthru
          _
        %s179 = sand.u32 %s21, 1
        %s180 = sand.u32 %s21, 1
        %s181 = smul.addr %s180, 16
        %s182 = scalar_lea.vmem [#allocation2], %s181
        %p183 = pneg %p34
        %p184 = pneg %p31
        %p185 = pneg %p55
        %p186 = pneg %p52
        %p187 = pneg %p81
        %p188 = pneg %p78
        %s189 = smul.u32 4, %s13
        %p190 = scmp.lt.s32.totalorder %s189, 7
        %s191 = scalar_select %p190, %s189, 7
        %s192 = smul.addr %s191, 4
        %s193 = scalar_lea.vmem %s2, %s192
        %s194 = smul.u32 4, %s13
        %s195 = smul.u32 4, %s13
        %p196 = scmp.lt.s32.totalorder %s195, 7
        %s197 = scalar_select %p196, %s195, 7
        %s198 = smul.addr %s197, 4
        %s199 = scalar_lea.vmem %s2, %s198
        %s200 = smul.u32 4, %s13
        %v202 = vld [vmem:[%s175] sm:$0xf]
        %v203 = vld [vmem:[%s175 + $0x4] sm:$0xf]
        %v204 = vld [vmem:[%s175 + $0x8] sm:$0xf]
        %v205 = vld [vmem:[%s175 + $0xc] sm:$0xf]
        %v206 = vld [vmem:[%s1] sm:$0xf]
        %v207 = vld [vmem:[%s1 + $0x4] sm:$0xf]
        %v208 = vld [vmem:[%s1 + $0x8] sm:$0xf]
        %v209 = vld [vmem:[%s1 + $0xc] sm:$0xf]
        %v210 = vld [vmem:[%s1 + $0x10] sm:$0xf]
        %v211 = vld [vmem:[%s1 + $0x14] sm:$0xf]
        %v212 = vld [vmem:[%s1 + $0x18] sm:$0xf]
        %v213 = vld [vmem:[%s1 + $0x1c] sm:$0xf]
        %v214 = vld [vmem:[%s1 + $0x20] sm:$0xf]
        %v215 = vld [vmem:[%s1 + $0x24] sm:$0xf]
        %v216 = vld [vmem:[%s1 + $0x28] sm:$0xf]
        %v217 = vld [vmem:[%s1 + $0x2c] sm:$0xf]
        %v218 = vld [vmem:[%s1 + $0x30] sm:$0xf]
        %v219 = vld [vmem:[%s1 + $0x34] sm:$0xf]
        %v220 = vld [vmem:[%s1 + $0x38] sm:$0xf]
        %v221 = vld [vmem:[%s1 + $0x3c] sm:$0xf]
        %v226 = vunpack.c.l.b16 %v202
        %v227 = vunpack.c.l.b16 %v203
        %v228 = vunpack.c.l.b16 %v204
        %v229 = vunpack.c.l.b16 %v205
        %v230 = vpack.c.b16 %v227, %v226
        %v231 = vpack.c.b16 %v229, %v228
        %v250 = vunpack.c.l.b16 %v206
        %v251 = vunpack.c.l.b16 %v207
        %v252 = vunpack.c.l.b16 %v208
        %v253 = vunpack.c.l.b16 %v209
        %v254 = vunpack.c.l.b16 %v210
        %v255 = vunpack.c.l.b16 %v211
        %v256 = vunpack.c.l.b16 %v212
        %v257 = vunpack.c.l.b16 %v213
        %v258 = vunpack.c.l.b16 %v214
        %v259 = vunpack.c.l.b16 %v215
        %v260 = vunpack.c.l.b16 %v216
        %v261 = vunpack.c.l.b16 %v217
        %v262 = vunpack.c.l.b16 %v218
        %v263 = vunpack.c.l.b16 %v219
        %v264 = vunpack.c.l.b16 %v220
        %v265 = vunpack.c.l.b16 %v221
        %v266 = vpack.c.b16 %v251, %v250
        %v267 = vpack.c.b16 %v253, %v252
        %v268 = vpack.c.b16 %v255, %v254
        %v269 = vpack.c.b16 %v257, %v256
        %v270 = vpack.c.b16 %v259, %v258
        %v271 = vpack.c.b16 %v261, %v260
        %v272 = vpack.c.b16 %v263, %v262
        %v273 = vpack.c.b16 %v265, %v264
        %282 = vmatprep.subr.bf16.mxu0 0
        %283 = vmatpush1.bf16.msra.mxu0 %v266
        %284 = vmatprep.subr.bf16.mxu0 0
        %285 = vmatpush1.bf16.msra.mxu0 %v267
        %286 = vmatprep.subr.bf16.mxu0 0
        %287 = vmatpush1.bf16.msra.mxu0 %v268
        %288 = vmatprep.subr.bf16.mxu0 0
        %289 = vmatpush1.bf16.msra.mxu0 %v269
        %290 = vmatprep.subr.bf16.mxu0 0
        %291 = vmatpush1.bf16.msra.mxu0 %v270
        %292 = vmatprep.subr.bf16.mxu0 0
        %293 = vmatpush1.bf16.msra.mxu0 %v271
        %294 = vmatprep.subr.bf16.mxu0 0
        %295 = vmatpush1.bf16.msra.mxu0 %v272
        %296 = vmatprep.subr.bf16.mxu0 0
        %297 = vmatpush1.bf16.msra.mxu0 %v273
        %298 = vmatprep.subr.bf16.mxu0 0
        %299 = vmatpush1.bf16.msra.mxu0 0
        %300 = vmatprep.subr.bf16.mxu0 0
        %301 = vmatpush1.bf16.msra.mxu0 0
        %302 = vmatprep.subr.bf16.mxu0 0
        %303 = vmatpush1.bf16.msra.mxu0 0
        %304 = vmatprep.subr.bf16.mxu0 0
        %305 = vmatpush1.bf16.msra.mxu0 0
        %306 = vmatprep.subr.bf16.mxu0 0
        %307 = vmatpush1.bf16.msra.mxu0 0
        %308 = vmatprep.subr.bf16.mxu0 0
        %309 = vmatpush1.bf16.msra.mxu0 0
        %310 = vmatprep.subr.bf16.mxu0 0
        %311 = vmatpush1.bf16.msra.mxu0 0
        %312 = vmatprep.subr.bf16.mxu0 0
        %313 = vmatpush1.bf16.msra.mxu0 0
        %314 = vmatprep.mubr.bf16.mxu0 0
        %315 = vmatmul.mubr.bf16.gmra.mrb[0].mxu0 %v230
        %v316 = vpop.f32.mrb[0].mxu0
        %v317 = vadd.f32 0.0, %v316
        %v318 = vpop.f32.mrb[0].mxu0
        %v319 = vpop.f32.mrb[0].mxu0
        %v320 = vadd.f32 0.0, %v319
        %v321 = vpop.f32.mrb[0].mxu0
        %322 = vmatprep.mubr.bf16.mxu0 0
        %323 = vmatmul.mubr.bf16.gmra.mrb[0].mxu0 %v231
        %v324 = vpop.f32.mrb[0].mxu0
        %v325 = vadd.f32 0.0, %v324
        %v326 = vpop.f32.mrb[0].mxu0
        %v327 = vpop.f32.mrb[0].mxu0
        %v328 = vadd.f32 0.0, %v327
        %v329 = vpop.f32.mrb[0].mxu0
        %330 = vdwg.mxu0
        %v331 = vmax.f32 %v317, 0.0
        %v332 = vmax.f32 %v320, 0.0
        %v333 = vmax.f32 %v325, 0.0
        %v334 = vmax.f32 %v328, 0.0
        %v335 = vpack.c.bf16 %v332, %v331
        %v336 = vpack.c.bf16 %v334, %v333
        %v339 = vunpack.c.l.b16 %v335
        %v340 = vunpack.c.h.b16 %v335
        %v341 = vunpack.c.l.b16 %v336
        %v342 = vunpack.c.h.b16 %v336
        %v343 = vpack.c.b16 %v339, %v339
        %v344 = vpack.c.b16 %v340, %v340
        %v345 = vpack.c.b16 %v341, %v341
        %v346 = vpack.c.b16 %v342, %v342
        %351 = vst [vmem:[%s199] sm:$0xf] %v343
        %352 = vst [vmem:[%s199 + $0x4] sm:$0xf] %v344
        %353 = vst [vmem:[%s199 + $0x8] sm:$0xf] %v345
        %354 = vst [vmem:[%s199 + $0xc] sm:$0xf] %v346
        %s355 = smul.u32 4, %s13
        %p356 = scmp.lt.s32.totalorder %s355, 7
        %s357 = scalar_select %p356, %s355, 7
        %s358 = smul.addr %s357, 4
        %s359 = scalar_lea.vmem %s2, %s358
        // Predicated region
        $region70: #{dlptnet_seg_forward.10} parent=64 // pred_check
          %p360 = pneg %p78
        $region71: #{dlptnet_seg_forward.10} parent=64 // pred_check_branch
          %362 = sbr.rel (%p360) target = $region73
        $region72: #{dlptnet_seg_forward.10} parent=64 // pred_region
          %s363 = smul.u32 4, %s13
        $region73: #{dlptnet_seg_forward.10} parent=64 // pred_fallthru
          _
      $region65: #{dlptnet_seg_forward.10} parent=5 // pred_fallthru
        _
      %p364 = scmp.le.s32.totalorder 2, %s8
      // Predicated region
      $region74: #{dlptnet_seg_forward.10} parent=5 // pred_check
        %p365 = pneg %p364
      $region75: #{dlptnet_seg_forward.10} parent=5 // pred_check_branch
        %367 = sbr.rel (%p365) target = $region77
      $region76: #{dlptnet_seg_forward.10} parent=5 // pred_region
        %s368 = ssub.s32 %s8, 2
        // Predicated region
        $region78: #{dlptnet_seg_forward.10} parent=76 // pred_check
          %p369 = pneg %p84
        $region79: #{dlptnet_seg_forward.10} parent=76 // pred_check_branch
          %371 = sbr.rel (%p369) target = $region81
        $region80: #{dlptnet_seg_forward.10} parent=76 // pred_region
          %s372 = smul.u32 4, %s14
          %p373 = scmp.lt.s32.totalorder %s372, 7
          %s374 = scalar_select %p373, %s372, 7
          %s375 = smul.addr %s374, 4
          %s376 = scalar_lea.vmem %s2, %s375
        $region81: #{dlptnet_seg_forward.10} parent=76 // pred_fallthru
          _
      $region77: #{dlptnet_seg_forward.10} parent=5 // pred_fallthru
        _
    $region6: #{dlptnet_seg_forward.10} parent=1 // loop_footer
      %s12 = sadd.s32 1, %s8
    $region7: #{dlptnet_seg_forward.10} parent=1 // loop_footer_branch
      %7 = sbr.rel target = $region3
    $region8: #{dlptnet_seg_forward.10} parent=1 // loop_exit
      _

// kernel: dlptnet_seg_forward.11
$region0: #{dlptnet_seg_forward.11}
  #allocation0 [shape = 'u32[]', space=smem, size = 0x4, offset = 0x4, fixed_abs, tag = 'smem constant byte address 0x4 - core index']
  #allocation1 [shape = 'u32[144,128]{1,0:T(1,128)}', space=vmem, size = 0x12000, scoped, tag = 'internal scratch']
  %s0 = inlined_call_operand.vmem [shape: bf16[32,256], index: 0, kind: input, shape index: {}]
  %s1 = inlined_call_operand.vmem [shape: bf16[128,128], index: 1, kind: input, shape index: {}]
  %s2 = inlined_call_operand.vmem [shape: bf16[32,128], index: 2, kind: output, shape index: {}]
  %s3 = sld [smem:[#allocation0]]
  $region82: #{dlptnet_seg_forward.11} parent=0
    _
  %s5 = ssub.s32 1, %s3
  %s6 = scalar_select 0, %s5, %s3
  $region1: #{dlptnet_seg_forward.11} parent=0
    #allocation2 [shape = 'u8[8192]{0}', space=vmem, size = 0x2000, scoped, tag = 'input window, operand 0']
    loop: start=0, step=1, limit=4
    $region2: #{dlptnet_seg_forward.11} parent=1 // loop_pre_header
      _
    $region3: #{dlptnet_seg_forward.11} parent=1 // loop_header
      %s8 = sphi 0, %s12
      %p9 = scmp.ge.s32.totalorder %s8, 4
      %s18 = sphi 0, %s20
      %s21 = sphi 0, %s18
      %s22 = sphi 0, %s21
      %s38 = sphi 0, %s22
      %s42 = sphi 0, %s42
      %s44 = sphi 0, %s42
      %s45 = sphi 0, %s44
      %s59 = sphi 0, %s45
      %s65 = sphi 0, %s67
      %s68 = sphi 0, %s65
      %s69 = sphi 0, %s68
      %s85 = sphi 0, %s69
    $region4: #{dlptnet_seg_forward.11} parent=1 // loop_header_branch
      %11 = sbr.rel (%p9) target = $region8
    $region5: #{dlptnet_seg_forward.11} parent=1 // loop_body
      %s13 = ssub.s32 %s8, 1
      %s14 = ssub.s32 %s8, 2
      %s15 = sadd.s32 %s8, 1
      %s16 = ssub.s32 %s8, %s15
      %p17 = scmp.eq.s32.totalorder %s16, 0
      %s19 = sadd.s32 %s18, 1
      %s20 = scalar_select %p17, %s18, %s19
      %p23 = pneg %p17
      %p24 = scmp.eq.s32.totalorder %s8, 1
      %p25 = por %p23, %p24
      %p26 = scmp.ne.s32.totalorder %s18, %s21
      %p27 = scmp.eq.s32.totalorder %s8, 0
      %p28 = por %p26, %p27
      %p29 = scmp.ne.s32.totalorder %s18, %s21
      %p30 = scmp.eq.s32.totalorder %s13, 1
      %p31 = por %p29, %p30
      %p32 = scmp.ne.s32.totalorder %s21, %s22
      %p33 = scmp.eq.s32.totalorder %s13, 0
      %p34 = por %p32, %p33
      %p35 = scmp.ne.s32.totalorder %s21, %s22
      %p36 = scmp.eq.s32.totalorder %s14, 1
      %p37 = por %p35, %p36
      %p39 = scmp.ne.s32.totalorder %s22, %s38
      %p40 = scmp.eq.s32.totalorder %s14, 0
      %p41 = por %p39, %p40
      %s43 = sadd.s32 %s42, 1
      %p46 = scmp.eq.s32.totalorder %s8, 1
      %p47 = scmp.ne.s32.totalorder %s42, %s44
      %p48 = scmp.eq.s32.totalorder %s8, 0
      %p49 = por %p47, %p48
      %p50 = scmp.ne.s32.totalorder %s42, %s44
      %p51 = scmp.eq.s32.totalorder %s13, 1
      %p52 = por %p50, %p51
      %p53 = scmp.ne.s32.totalorder %s44, %s45
      %p54 = scmp.eq.s32.totalorder %s13, 0
      %p55 = por %p53, %p54
      %p56 = scmp.ne.s32.totalorder %s44, %s45
      %p57 = scmp.eq.s32.totalorder %s14, 1
      %p58 = por %p56, %p57
      %p60 = scmp.ne.s32.totalorder %s45, %s59
      %p61 = scmp.eq.s32.totalorder %s14, 0
      %p62 = por %p60, %p61
      %s63 = ssub.s32 %s8, %s15
      %p64 = scmp.eq.s32.totalorder %s63, 0
      %s66 = sadd.s32 %s65, 1
      %s67 = scalar_select %p64, %s65, %s66
      %p70 = pneg %p64
      %p71 = scmp.eq.s32.totalorder %s8, 1
      %p72 = por %p70, %p71
      %p73 = scmp.ne.s32.totalorder %s65, %s68
      %p74 = scmp.eq.s32.totalorder %s8, 0
      %p75 = por %p73, %p74
      %p76 = scmp.ne.s32.totalorder %s65, %s68
      %p77 = scmp.eq.s32.totalorder %s13, 1
      %p78 = por %p76, %p77
      %p79 = scmp.ne.s32.totalorder %s68, %s69
      %p80 = scmp.eq.s32.totalorder %s13, 0
      %p81 = por %p79, %p80
      %p82 = scmp.ne.s32.totalorder %s68, %s69
      %p83 = scmp.eq.s32.totalorder %s14, 1
      %p84 = por %p82, %p83
      %p86 = scmp.ne.s32.totalorder %s69, %s85
      %p87 = scmp.eq.s32.totalorder %s14, 0
      %p88 = por %p86, %p87
      %p89 = scmp.le.s32.totalorder 1, %s8
      %p90 = scmp.lt.s32.totalorder %s8, 3
      %p91 = pnand %p89, %p90
      %p92 = pneg %p91
      // Predicated region
      $region9: #{dlptnet_seg_forward.11} parent=5 // pred_check
        _
      $region10: #{dlptnet_seg_forward.11} parent=5 // pred_check_branch
        %94 = sbr.rel (%p91) target = $region12
      $region11: #{dlptnet_seg_forward.11} parent=5 // pred_region
        %s95 = ssub.s32 %s8, 1
        // Predicated region
        $region13: #{dlptnet_seg_forward.11} parent=11 // pred_check
          %p96 = pneg %p55
        $region14: #{dlptnet_seg_forward.11} parent=11 // pred_check_branch
          %98 = sbr.rel (%p96) target = $region16
        $region15: #{dlptnet_seg_forward.11} parent=11 // pred_region
          _
        $region16: #{dlptnet_seg_forward.11} parent=11 // pred_fallthru
          _
      $region12: #{dlptnet_seg_forward.11} parent=5 // pred_fallthru
        _
      %p99 = scmp.lt.s32.totalorder %s8, 2
      // Predicated region
      $region17: #{dlptnet_seg_forward.11} parent=5 // pred_check
        %p100 = pneg %p99
      $region18: #{dlptnet_seg_forward.11} parent=5 // pred_check_branch
        %102 = sbr.rel (%p100) target = $region20
      $region19: #{dlptnet_seg_forward.11} parent=5 // pred_region
        // Predicated region
        $region21: #{dlptnet_seg_forward.11} parent=19 // pred_check
          %p103 = pneg %p28
        $region22: #{dlptnet_seg_forward.11} parent=19 // pred_check_branch
          %105 = sbr.rel (%p103) target = $region24
        $region23: #{dlptnet_seg_forward.11} parent=19 // pred_region
          %s106 = sand.u32 %s18, 1
          %s107 = sand.u32 %s18, 1
          %s108 = smul.addr %s107, 8
          %s109 = scalar_lea.vmem [#allocation2], %s108
          %s110 = smul.u32 2, %s8
          %s111 = smul.addr %s110, 2
          %s112 = smul.addr %s111, 4
          %s113 = scalar_lea.vmem %s0, %s112
          // Predicated region
          $region25: #{dlptnet_seg_forward.11} parent=23 // pred_check
            _
          $region26: #{dlptnet_seg_forward.11} parent=23 // pred_check_branch
            %115 = sbr.rel (0) target = $region28
          $region27: #{dlptnet_seg_forward.11} parent=23 // pred_region
            // Predicated region
            $region29: #{dlptnet_seg_forward.11} parent=27 // pred_check
              _
            $region30: #{dlptnet_seg_forward.11} parent=27 // pred_check_branch
              %117 = sbr.rel target = $region32
            $region31: #{dlptnet_seg_forward.11} parent=27 // pred_region
              // Predicated region
              $region44: #{dlptnet_seg_forward.11} parent=31 // pred_check
                _
              $region45: #{dlptnet_seg_forward.11} parent=31 // pred_check_branch
                %134 = sbr.rel (0) target = $region47
              $region46: #{dlptnet_seg_forward.11} parent=31 // pred_region
                loop: start=0, step=1, limit=1
                $region48: #{dlptnet_seg_forward.11} parent=46 // loop_pre_header
                  _
                $region49: #{dlptnet_seg_forward.11} parent=46 // loop_header
                  %s136 = sphi 0, %s140
                  %p137 = scmp.ge.s32.totalorder %s136, 1
                  %s141 = sphi %s113, %s113
                  %s142 = sphi %s109, %s109
                $region50: #{dlptnet_seg_forward.11} parent=46 // loop_header_branch
                  %139 = sbr.rel (%p137) target = $region54
                $region51: #{dlptnet_seg_forward.11} parent=46 // loop_body
                  _
                $region52: #{dlptnet_seg_forward.11} parent=46 // loop_footer
                  %s140 = sadd.s32 1, %s136
                $region53: #{dlptnet_seg_forward.11} parent=46 // loop_footer_branch
                  %135 = sbr.rel target = $region49
                $region54: #{dlptnet_seg_forward.11} parent=46 // loop_exit
                  _
                loop: start=0, step=1, limit=1
                $region55: #{dlptnet_seg_forward.11} parent=46 // loop_pre_header
                  _
                $region56: #{dlptnet_seg_forward.11} parent=46 // loop_header
                  %s145 = sphi 0, %s149
                  %p146 = scmp.ge.s32.totalorder %s145, 1
                  %s150 = sphi %s113, %s113
                  %s151 = sphi %s109, %s109
                $region57: #{dlptnet_seg_forward.11} parent=46 // loop_header_branch
                  %148 = sbr.rel (%p146) target = $region61
                $region58: #{dlptnet_seg_forward.11} parent=46 // loop_body
                  %v152 = vld [vmem:[%s150] sm:$0xf]
                  %153 = vst [vmem:[%s151] sm:$0xf] %v152
                  %v154 = vld [vmem:[%s150 + $0x8] sm:$0xf]
                  %155 = vst [vmem:[%s151 + $0x4] sm:$0xf] %v154
                $region59: #{dlptnet_seg_forward.11} parent=46 // loop_footer
                  %s149 = sadd.s32 1, %s145
                $region60: #{dlptnet_seg_forward.11} parent=46 // loop_footer_branch
                  %144 = sbr.rel target = $region56
                $region61: #{dlptnet_seg_forward.11} parent=46 // loop_exit
                  _
              $region47: #{dlptnet_seg_forward.11} parent=31 // pred_fallthru
                _
            $region32: #{dlptnet_seg_forward.11} parent=27 // pred_fallthru
              _
            // Predicated region
            $region33: #{dlptnet_seg_forward.11} parent=27 // pred_check
              _
            $region34: #{dlptnet_seg_forward.11} parent=27 // pred_check_branch
              %119 = sbr.rel (0) target = $region36
            $region35: #{dlptnet_seg_forward.11} parent=27 // pred_region
              loop: start=0, step=1, limit=1
              $region37: #{dlptnet_seg_forward.11} parent=35 // loop_pre_header
                _
              $region38: #{dlptnet_seg_forward.11} parent=35 // loop_header
                %s122 = sphi 0, %s126
                %p123 = scmp.ge.s32.totalorder %s122, 1
                %s127 = sphi %s113, %s113
                %s128 = sphi %s109, %s109
              $region39: #{dlptnet_seg_forward.11} parent=35 // loop_header_branch
                %125 = sbr.rel (%p123) target = $region43
              $region40: #{dlptnet_seg_forward.11} parent=35 // loop_body
                %v129 = vld [vmem:[%s127] sm:$0xf]
                %130 = vst [vmem:[%s128] sm:$0xf] %v129
                %v131 = vld [vmem:[%s127 + $0x8] sm:$0xf]
                %132 = vst [vmem:[%s128 + $0x4] sm:$0xf] %v131
              $region41: #{dlptnet_seg_forward.11} parent=35 // loop_footer
                %s126 = sadd.s32 1, %s122
              $region42: #{dlptnet_seg_forward.11} parent=35 // loop_footer_branch
                %121 = sbr.rel target = $region38
              $region43: #{dlptnet_seg_forward.11} parent=35 // loop_exit
                _
            $region36: #{dlptnet_seg_forward.11} parent=27 // pred_fallthru
              _
          $region28: #{dlptnet_seg_forward.11} parent=23 // pred_fallthru
            _
          %156 = vnop
        $region24: #{dlptnet_seg_forward.11} parent=19 // pred_fallthru
          _
      $region20: #{dlptnet_seg_forward.11} parent=5 // pred_fallthru
        _
      %p157 = scmp.le.s32.totalorder 1, %s8
      %p158 = scmp.lt.s32.totalorder %s8, 3
      %p159 = pnand %p157, %p158
      %p160 = pneg %p159
      // Predicated region
      $region62: #{dlptnet_seg_forward.11} parent=5 // pred_check
        _
      $region63: #{dlptnet_seg_forward.11} parent=5 // pred_check_branch
        %162 = sbr.rel (%p159) target = $region65
      $region64: #{dlptnet_seg_forward.11} parent=5 // pred_region
        %s163 = ssub.s32 %s8, 1
        %s164 = sand.u32 %s21, 1
        %s165 = sand.u32 %s21, 1
        %s166 = smul.addr %s165, 8
        %s167 = scalar_lea.vmem [#allocation2], %s166
        // Predicated region
        $region66: #{dlptnet_seg_forward.11} parent=64 // pred_check
          %p168 = pneg %p34
        $region67: #{dlptnet_seg_forward.11} parent=64 // pred_check_branch
          %170 = sbr.rel (%p168) target = $region69
        $region68: #{dlptnet_seg_forward.11} parent=64 // pred_region
          _
        $region69: #{dlptnet_seg_forward.11} parent=64 // pred_fallthru
          _
        %s171 = sand.u32 %s21, 1
        %s172 = sand.u32 %s21, 1
        %s173 = smul.addr %s172, 8
        %s174 = scalar_lea.vmem [#allocation2], %s173
        %p175 = pneg %p34
        %p176 = pneg %p31
        %p177 = pneg %p55
        %p178 = pneg %p52
        %p179 = pneg %p81
        %p180 = pneg %p78
        %s181 = smul.u32 2, %s13
        %p182 = scmp.lt.s32.totalorder %s181, 3
        %s183 = scalar_select %p182, %s181, 3
        %s184 = smul.addr %s183, 4
        %s185 = scalar_lea.vmem %s2, %s184
        %s186 = smul.u32 2, %s13
        %s187 = smul.u32 2, %s13
        %p188 = scmp.lt.s32.totalorder %s187, 3
        %s189 = scalar_select %p188, %s187, 3
        %s190 = smul.addr %s189, 4
        %s191 = scalar_lea.vmem %s2, %s190
        %s192 = smul.u32 2, %s13
        %v194 = vld [vmem:[%s167] sm:$0xf]
        %v195 = vld [vmem:[%s167 + $0x4] sm:$0xf]
        %v196 = vld [vmem:[%s1] sm:$0xf]
        %v197 = vld [vmem:[%s1 + $0x4] sm:$0xf]
        %v198 = vld [vmem:[%s1 + $0x8] sm:$0xf]
        %v199 = vld [vmem:[%s1 + $0xc] sm:$0xf]
        %v200 = vld [vmem:[%s1 + $0x10] sm:$0xf]
        %v201 = vld [vmem:[%s1 + $0x14] sm:$0xf]
        %v202 = vld [vmem:[%s1 + $0x18] sm:$0xf]
        %v203 = vld [vmem:[%s1 + $0x1c] sm:$0xf]
        %v204 = vld [vmem:[%s1 + $0x20] sm:$0xf]
        %v205 = vld [vmem:[%s1 + $0x24] sm:$0xf]
        %v206 = vld [vmem:[%s1 + $0x28] sm:$0xf]
        %v207 = vld [vmem:[%s1 + $0x2c] sm:$0xf]
        %v208 = vld [vmem:[%s1 + $0x30] sm:$0xf]
        %v209 = vld [vmem:[%s1 + $0x34] sm:$0xf]
        %v210 = vld [vmem:[%s1 + $0x38] sm:$0xf]
        %v211 = vld [vmem:[%s1 + $0x3c] sm:$0xf]
        %v214 = vunpack.c.l.b16 %v194
        %v215 = vunpack.c.l.b16 %v195
        %v216 = vpack.c.b16 %v215, %v214
        %v234 = vunpack.c.l.b16 %v196
        %v235 = vunpack.c.l.b16 %v197
        %v236 = vunpack.c.l.b16 %v198
        %v237 = vunpack.c.l.b16 %v199
        %v238 = vunpack.c.l.b16 %v200
        %v239 = vunpack.c.l.b16 %v201
        %v240 = vunpack.c.l.b16 %v202
        %v241 = vunpack.c.l.b16 %v203
        %v242 = vunpack.c.l.b16 %v204
        %v243 = vunpack.c.l.b16 %v205
        %v244 = vunpack.c.l.b16 %v206
        %v245 = vunpack.c.l.b16 %v207
        %v246 = vunpack.c.l.b16 %v208
        %v247 = vunpack.c.l.b16 %v209
        %v248 = vunpack.c.l.b16 %v210
        %v249 = vunpack.c.l.b16 %v211
        %v250 = vpack.c.b16 %v235, %v234
        %v251 = vpack.c.b16 %v237, %v236
        %v252 = vpack.c.b16 %v239, %v238
        %v253 = vpack.c.b16 %v241, %v240
        %v254 = vpack.c.b16 %v243, %v242
        %v255 = vpack.c.b16 %v245, %v244
        %v256 = vpack.c.b16 %v247, %v246
        %v257 = vpack.c.b16 %v249, %v248
        %266 = vmatprep.subr.bf16.mxu0 0
        %267 = vmatpush1.bf16.msra.mxu0 %v250
        %268 = vmatprep.subr.bf16.mxu0 0
        %269 = vmatpush1.bf16.msra.mxu0 %v251
        %270 = vmatprep.subr.bf16.mxu0 0
        %271 = vmatpush1.bf16.msra.mxu0 %v252
        %272 = vmatprep.subr.bf16.mxu0 0
        %273 = vmatpush1.bf16.msra.mxu0 %v253
        %274 = vmatprep.subr.bf16.mxu0 0
        %275 = vmatpush1.bf16.msra.mxu0 %v254
        %276 = vmatprep.subr.bf16.mxu0 0
        %277 = vmatpush1.bf16.msra.mxu0 %v255
        %278 = vmatprep.subr.bf16.mxu0 0
        %279 = vmatpush1.bf16.msra.mxu0 %v256
        %280 = vmatprep.subr.bf16.mxu0 0
        %281 = vmatpush1.bf16.msra.mxu0 %v257
        %282 = vmatprep.subr.bf16.mxu0 0
        %283 = vmatpush1.bf16.msra.mxu0 0
        %284 = vmatprep.subr.bf16.mxu0 0
        %285 = vmatpush1.bf16.msra.mxu0 0
        %286 = vmatprep.subr.bf16.mxu0 0
        %287 = vmatpush1.bf16.msra.mxu0 0
        %288 = vmatprep.subr.bf16.mxu0 0
        %289 = vmatpush1.bf16.msra.mxu0 0
        %290 = vmatprep.subr.bf16.mxu0 0
        %291 = vmatpush1.bf16.msra.mxu0 0
        %292 = vmatprep.subr.bf16.mxu0 0
        %293 = vmatpush1.bf16.msra.mxu0 0
        %294 = vmatprep.subr.bf16.mxu0 0
        %295 = vmatpush1.bf16.msra.mxu0 0
        %296 = vmatprep.subr.bf16.mxu0 0
        %297 = vmatpush1.bf16.msra.mxu0 0
        %298 = vmatprep.mubr.bf16.mxu0 0
        %299 = vmatmul.mubr.bf16.gmra.mrb[0].mxu0 %v216
        %v300 = vpop.f32.mrb[0].mxu0
        %v301 = vadd.f32 0.0, %v300
        %v302 = vpop.f32.mrb[0].mxu0
        %v303 = vpop.f32.mrb[0].mxu0
        %v304 = vadd.f32 0.0, %v303
        %v305 = vpop.f32.mrb[0].mxu0
        %306 = vdwg.mxu0
        %v307 = vmax.f32 %v301, 0.0
        %v308 = vmax.f32 %v304, 0.0
        %v309 = vpack.c.bf16 %v308, %v307
        %v311 = vunpack.c.l.b16 %v309
        %v312 = vunpack.c.h.b16 %v309
        %v313 = vpack.c.b16 %v311, %v311
        %v314 = vpack.c.b16 %v312, %v312
        %317 = vst [vmem:[%s191] sm:$0xf] %v313
        %318 = vst [vmem:[%s191 + $0x4] sm:$0xf] %v314
        %s319 = smul.u32 2, %s13
        %p320 = scmp.lt.s32.totalorder %s319, 3
        %s321 = scalar_select %p320, %s319, 3
        %s322 = smul.addr %s321, 4
        %s323 = scalar_lea.vmem %s2, %s322
        // Predicated region
        $region70: #{dlptnet_seg_forward.11} parent=64 // pred_check
          %p324 = pneg %p78
        $region71: #{dlptnet_seg_forward.11} parent=64 // pred_check_branch
          %326 = sbr.rel (%p324) target = $region73
        $region72: #{dlptnet_seg_forward.11} parent=64 // pred_region
          %s327 = smul.u32 2, %s13
        $region73: #{dlptnet_seg_forward.11} parent=64 // pred_fallthru
          _
      $region65: #{dlptnet_seg_forward.11} parent=5 // pred_fallthru
        _
      %p328 = scmp.le.s32.totalorder 2, %s8
      // Predicated region
      $region74: #{dlptnet_seg_forward.11} parent=5 // pred_check
        %p329 = pneg %p328
      $region75: #{dlptnet_seg_forward.11} parent=5 // pred_check_branch
        %331 = sbr.rel (%p329) target = $region77
      $region76: #{dlptnet_seg_forward.11} parent=5 // pred_region
        %s332 = ssub.s32 %s8, 2
        // Predicated region
        $region78: #{dlptnet_seg_forward.11} parent=76 // pred_check
          %p333 = pneg %p84
        $region79: #{dlptnet_seg_forward.11} parent=76 // pred_check_branch
          %335 = sbr.rel (%p333) target = $region81
        $region80: #{dlptnet_seg_forward.11} parent=76 // pred_region
          %s336 = smul.u32 2, %s14
          %p337 = scmp.lt.s32.totalorder %s336, 3
          %s338 = scalar_select %p337, %s336, 3
          %s339 = smul.addr %s338, 4
          %s340 = scalar_lea.vmem %s2, %s339
        $region81: #{dlptnet_seg_forward.11} parent=76 // pred_fallthru
          _
      $region77: #{dlptnet_seg_forward.11} parent=5 // pred_fallthru
        _
    $region6: #{dlptnet_seg_forward.11} parent=1 // loop_footer
      %s12 = sadd.s32 1, %s8
    $region7: #{dlptnet_seg_forward.11} parent=1 // loop_footer_branch
      %7 = sbr.rel target = $region3
    $region8: #{dlptnet_seg_forward.11} parent=1 // loop_exit
      _

// kernel: dlptnet_seg_forward.12
$region0: #{dlptnet_seg_forward.12}
  #allocation0 [shape = 'u32[]', space=smem, size = 0x4, offset = 0x4, fixed_abs, tag = 'smem constant byte address 0x4 - core index']
  #allocation1 [shape = 'u32[144,128]{1,0:T(1,128)}', space=vmem, size = 0x12000, scoped, tag = 'internal scratch']
  %s0 = inlined_call_operand.vmem [shape: bf16[16,256], index: 0, kind: input, shape index: {}]
  %s1 = inlined_call_operand.vmem [shape: bf16[128,128], index: 1, kind: input, shape index: {}]
  %s2 = inlined_call_operand.vmem [shape: bf16[16,128], index: 2, kind: output, shape index: {}]
  %s3 = sld [smem:[#allocation0]]
  $region41: #{dlptnet_seg_forward.12} parent=0
    _
  %s5 = ssub.s32 1, %s3
  %s6 = scalar_select 0, %s5, %s3
  loop: start=0, step=1, limit=4
  $region2: #{dlptnet_seg_forward.12} parent=0 // loop_pre_header
    _
  $region3: #{dlptnet_seg_forward.12} parent=0 // loop_header
    %s8 = sphi 0, %s12
    %p9 = scmp.ge.s32.totalorder %s8, 4
    %s18 = sphi 0, %s20
    %s21 = sphi 0, %s18
    %s22 = sphi 0, %s21
    %s38 = sphi 0, %s22
    %s42 = sphi 0, %s42
    %s44 = sphi 0, %s42
    %s45 = sphi 0, %s44
    %s59 = sphi 0, %s45
    %s65 = sphi 0, %s67
    %s68 = sphi 0, %s65
    %s69 = sphi 0, %s68
    %s85 = sphi 0, %s69
  $region4: #{dlptnet_seg_forward.12} parent=0 // loop_header_branch
    %11 = sbr.rel (%p9) target = $region8
  $region5: #{dlptnet_seg_forward.12} parent=0 // loop_body
    %s13 = ssub.s32 %s8, 1
    %s14 = ssub.s32 %s8, 2
    %s15 = sadd.s32 %s8, 1
    %s16 = ssub.s32 %s8, %s15
    %p17 = scmp.eq.s32.totalorder %s16, 0
    %s19 = sadd.s32 %s18, 1
    %s20 = scalar_select %p17, %s18, %s19
    %p23 = pneg %p17
    %p24 = scmp.eq.s32.totalorder %s8, 1
    %p25 = por %p23, %p24
    %p26 = scmp.ne.s32.totalorder %s18, %s21
    %p27 = scmp.eq.s32.totalorder %s8, 0
    %p28 = por %p26, %p27
    %p29 = scmp.ne.s32.totalorder %s18, %s21
    %p30 = scmp.eq.s32.totalorder %s13, 1
    %p31 = por %p29, %p30
    %p32 = scmp.ne.s32.totalorder %s21, %s22
    %p33 = scmp.eq.s32.totalorder %s13, 0
    %p34 = por %p32, %p33
    %p35 = scmp.ne.s32.totalorder %s21, %s22
    %p36 = scmp.eq.s32.totalorder %s14, 1
    %p37 = por %p35, %p36
    %p39 = scmp.ne.s32.totalorder %s22, %s38
    %p40 = scmp.eq.s32.totalorder %s14, 0
    %p41 = por %p39, %p40
    %s43 = sadd.s32 %s42, 1
    %p46 = scmp.eq.s32.totalorder %s8, 1
    %p47 = scmp.ne.s32.totalorder %s42, %s44
    %p48 = scmp.eq.s32.totalorder %s8, 0
    %p49 = por %p47, %p48
    %p50 = scmp.ne.s32.totalorder %s42, %s44
    %p51 = scmp.eq.s32.totalorder %s13, 1
    %p52 = por %p50, %p51
    %p53 = scmp.ne.s32.totalorder %s44, %s45
    %p54 = scmp.eq.s32.totalorder %s13, 0
    %p55 = por %p53, %p54
    %p56 = scmp.ne.s32.totalorder %s44, %s45
    %p57 = scmp.eq.s32.totalorder %s14, 1
    %p58 = por %p56, %p57
    %p60 = scmp.ne.s32.totalorder %s45, %s59
    %p61 = scmp.eq.s32.totalorder %s14, 0
    %p62 = por %p60, %p61
    %s63 = ssub.s32 %s8, %s15
    %p64 = scmp.eq.s32.totalorder %s63, 0
    %s66 = sadd.s32 %s65, 1
    %s67 = scalar_select %p64, %s65, %s66
    %p70 = pneg %p64
    %p71 = scmp.eq.s32.totalorder %s8, 1
    %p72 = por %p70, %p71
    %p73 = scmp.ne.s32.totalorder %s65, %s68
    %p74 = scmp.eq.s32.totalorder %s8, 0
    %p75 = por %p73, %p74
    %p76 = scmp.ne.s32.totalorder %s65, %s68
    %p77 = scmp.eq.s32.totalorder %s13, 1
    %p78 = por %p76, %p77
    %p79 = scmp.ne.s32.totalorder %s68, %s69
    %p80 = scmp.eq.s32.totalorder %s13, 0
    %p81 = por %p79, %p80
    %p82 = scmp.ne.s32.totalorder %s68, %s69
    %p83 = scmp.eq.s32.totalorder %s14, 1
    %p84 = por %p82, %p83
    %p86 = scmp.ne.s32.totalorder %s69, %s85
    %p87 = scmp.eq.s32.totalorder %s14, 0
    %p88 = por %p86, %p87
    %p89 = scmp.le.s32.totalorder 1, %s8
    %p90 = scmp.lt.s32.totalorder %s8, 3
    %p91 = pnand %p89, %p90
    %p92 = pneg %p91
    // Predicated region
    $region9: #{dlptnet_seg_forward.12} parent=5 // pred_check
      _
    $region10: #{dlptnet_seg_forward.12} parent=5 // pred_check_branch
      %94 = sbr.rel (%p91) target = $region12
    $region11: #{dlptnet_seg_forward.12} parent=5 // pred_region
      %s95 = ssub.s32 %s8, 1
      // Predicated region
      $region13: #{dlptnet_seg_forward.12} parent=11 // pred_check
        %p96 = pneg %p55
      $region14: #{dlptnet_seg_forward.12} parent=11 // pred_check_branch
        %98 = sbr.rel (%p96) target = $region16
      $region15: #{dlptnet_seg_forward.12} parent=11 // pred_region
        _
      $region16: #{dlptnet_seg_forward.12} parent=11 // pred_fallthru
        _
    $region12: #{dlptnet_seg_forward.12} parent=5 // pred_fallthru
      _
    %p99 = scmp.lt.s32.totalorder %s8, 2
    // Predicated region
    $region17: #{dlptnet_seg_forward.12} parent=5 // pred_check
      %p100 = pneg %p99
    $region18: #{dlptnet_seg_forward.12} parent=5 // pred_check_branch
      %102 = sbr.rel (%p100) target = $region20
    $region19: #{dlptnet_seg_forward.12} parent=5 // pred_region
      // Predicated region
      $region21: #{dlptnet_seg_forward.12} parent=19 // pred_check
        %p103 = pneg %p28
      $region22: #{dlptnet_seg_forward.12} parent=19 // pred_check_branch
        %105 = sbr.rel (%p103) target = $region24
      $region23: #{dlptnet_seg_forward.12} parent=19 // pred_region
        %p106 = scmp.lt.s32.totalorder %s8, 1
        %s107 = scalar_select %p106, %s8, 1
        %s108 = smul.addr %s107, 2
        %s109 = smul.addr %s108, 4
        %s110 = scalar_lea.vmem %s0, %s109
      $region24: #{dlptnet_seg_forward.12} parent=19 // pred_fallthru
        _
    $region20: #{dlptnet_seg_forward.12} parent=5 // pred_fallthru
      _
    %p111 = scmp.le.s32.totalorder 1, %s8
    %p112 = scmp.lt.s32.totalorder %s8, 3
    %p113 = pnand %p111, %p112
    %p114 = pneg %p113
    // Predicated region
    $region25: #{dlptnet_seg_forward.12} parent=5 // pred_check
      _
    $region26: #{dlptnet_seg_forward.12} parent=5 // pred_check_branch
      %116 = sbr.rel (%p113) target = $region28
    $region27: #{dlptnet_seg_forward.12} parent=5 // pred_region
      %s117 = ssub.s32 %s8, 1
      %p118 = scmp.lt.s32.totalorder %s13, 1
      %s119 = scalar_select %p118, %s13, 1
      %s120 = smul.addr %s119, 2
      %s121 = smul.addr %s120, 4
      %s122 = scalar_lea.vmem %s0, %s121
      %p123 = pneg %p34
      %p124 = pneg %p31
      %p125 = pneg %p55
      %p126 = pneg %p52
      %p127 = pneg %p81
      %p128 = pneg %p78
      %p129 = scmp.lt.s32.totalorder %s13, 1
      %s130 = scalar_select %p129, %s13, 1
      %s131 = smul.addr %s130, 4
      %s132 = scalar_lea.vmem %s2, %s131
      %p133 = scmp.lt.s32.totalorder %s13, 1
      %s134 = scalar_select %p133, %s13, 1
      %s135 = smul.addr %s134, 2
      %s136 = smul.addr %s135, 4
      %s137 = scalar_lea.vmem %s0, %s136
      %p138 = scmp.lt.s32.totalorder %s13, 1
      %s139 = scalar_select %p138, %s13, 1
      %s140 = smul.addr %s139, 4
      %s141 = scalar_lea.vmem %s2, %s140
      %v143 = vld [vmem:[%s137] sm:$0xf]
      %v144 = vld [vmem:[%s1] sm:$0xf]
      %v145 = vld [vmem:[%s1 + $0x4] sm:$0xf]
      %v146 = vld [vmem:[%s1 + $0x8] sm:$0xf]
      %v147 = vld [vmem:[%s1 + $0xc] sm:$0xf]
      %v148 = vld [vmem:[%s1 + $0x10] sm:$0xf]
      %v149 = vld [vmem:[%s1 + $0x14] sm:$0xf]
      %v150 = vld [vmem:[%s1 + $0x18] sm:$0xf]
      %v151 = vld [vmem:[%s1 + $0x1c] sm:$0xf]
      %v152 = vld [vmem:[%s1 + $0x20] sm:$0xf]
      %v153 = vld [vmem:[%s1 + $0x24] sm:$0xf]
      %v154 = vld [vmem:[%s1 + $0x28] sm:$0xf]
      %v155 = vld [vmem:[%s1 + $0x2c] sm:$0xf]
      %v156 = vld [vmem:[%s1 + $0x30] sm:$0xf]
      %v157 = vld [vmem:[%s1 + $0x34] sm:$0xf]
      %v158 = vld [vmem:[%s1 + $0x38] sm:$0xf]
      %v159 = vld [vmem:[%s1 + $0x3c] sm:$0xf]
      %v176 = vunpack.c.l.b16 %v144
      %v177 = vunpack.c.l.b16 %v145
      %v178 = vunpack.c.l.b16 %v146
      %v179 = vunpack.c.l.b16 %v147
      %v180 = vunpack.c.l.b16 %v148
      %v181 = vunpack.c.l.b16 %v149
      %v182 = vunpack.c.l.b16 %v150
      %v183 = vunpack.c.l.b16 %v151
      %v184 = vunpack.c.l.b16 %v152
      %v185 = vunpack.c.l.b16 %v153
      %v186 = vunpack.c.l.b16 %v154
      %v187 = vunpack.c.l.b16 %v155
      %v188 = vunpack.c.l.b16 %v156
      %v189 = vunpack.c.l.b16 %v157
      %v190 = vunpack.c.l.b16 %v158
      %v191 = vunpack.c.l.b16 %v159
      %v192 = vpack.c.b16 %v177, %v176
      %v193 = vpack.c.b16 %v179, %v178
      %v194 = vpack.c.b16 %v181, %v180
      %v195 = vpack.c.b16 %v183, %v182
      %v196 = vpack.c.b16 %v185, %v184
      %v197 = vpack.c.b16 %v187, %v186
      %v198 = vpack.c.b16 %v189, %v188
      %v199 = vpack.c.b16 %v191, %v190
      %208 = vmatprep.subr.bf16.mxu0 0
      %209 = vmatpush1.bf16.msra.mxu0 %v192
      %210 = vmatprep.subr.bf16.mxu0 0
      %211 = vmatpush1.bf16.msra.mxu0 %v193
      %212 = vmatprep.subr.bf16.mxu0 0
      %213 = vmatpush1.bf16.msra.mxu0 %v194
      %214 = vmatprep.subr.bf16.mxu0 0
      %215 = vmatpush1.bf16.msra.mxu0 %v195
      %216 = vmatprep.subr.bf16.mxu0 0
      %217 = vmatpush1.bf16.msra.mxu0 %v196
      %218 = vmatprep.subr.bf16.mxu0 0
      %219 = vmatpush1.bf16.msra.mxu0 %v197
      %220 = vmatprep.subr.bf16.mxu0 0
      %221 = vmatpush1.bf16.msra.mxu0 %v198
      %222 = vmatprep.subr.bf16.mxu0 0
      %223 = vmatpush1.bf16.msra.mxu0 %v199
      %224 = vmatprep.subr.bf16.mxu0 0
      %225 = vmatpush1.bf16.msra.mxu0 0
      %226 = vmatprep.subr.bf16.mxu0 0
      %227 = vmatpush1.bf16.msra.mxu0 0
      %228 = vmatprep.subr.bf16.mxu0 0
      %229 = vmatpush1.bf16.msra.mxu0 0
      %230 = vmatprep.subr.bf16.mxu0 0
      %231 = vmatpush1.bf16.msra.mxu0 0
      %232 = vmatprep.subr.bf16.mxu0 0
      %233 = vmatpush1.bf16.msra.mxu0 0
      %234 = vmatprep.subr.bf16.mxu0 0
      %235 = vmatpush1.bf16.msra.mxu0 0
      %236 = vmatprep.subr.bf16.mxu0 0
      %237 = vmatpush1.bf16.msra.mxu0 0
      %238 = vmatprep.subr.bf16.mxu0 0
      %239 = vmatpush1.bf16.msra.mxu0 0
      %240 = vmatprep.mubr.bf16.mxu0 0
      %241 = vmatmul.mubr.bf16.gmra.mrb[0].mxu0 %v143
      %v242 = vpop.f32.mrb[0].mxu0
      %v243 = vadd.f32 0.0, %v242
      %v244 = vpop.f32.mrb[0].mxu0
      %v245 = vpop.f32.mrb[0].mxu0
      %v246 = vpop.f32.mrb[0].mxu0
      %247 = vdwg.mxu0
      %v248 = vmax.f32 %v243, 0.0
      %v249 = vpack.c.bf16 %v248, %v248
      %250 = vst [vmem:[%s141] sm:$0xf] %v249
      %p251 = scmp.lt.s32.totalorder %s13, 1
      %s252 = scalar_select %p251, %s13, 1
      %s253 = smul.addr %s252, 4
      %s254 = scalar_lea.vmem %s2, %s253
      // Predicated region
      $region29: #{dlptnet_seg_forward.12} parent=27 // pred_check
        %p255 = pneg %p78
      $region30: #{dlptnet_seg_forward.12} parent=27 // pred_check_branch
        %257 = sbr.rel (%p255) target = $region32
      $region31: #{dlptnet_seg_forward.12} parent=27 // pred_region
        _
      $region32: #{dlptnet_seg_forward.12} parent=27 // pred_fallthru
        _
    $region28: #{dlptnet_seg_forward.12} parent=5 // pred_fallthru
      _
    %p258 = scmp.le.s32.totalorder 2, %s8
    // Predicated region
    $region33: #{dlptnet_seg_forward.12} parent=5 // pred_check
      %p259 = pneg %p258
    $region34: #{dlptnet_seg_forward.12} parent=5 // pred_check_branch
      %261 = sbr.rel (%p259) target = $region36
    $region35: #{dlptnet_seg_forward.12} parent=5 // pred_region
      %s262 = ssub.s32 %s8, 2
      // Predicated region
      $region37: #{dlptnet_seg_forward.12} parent=35 // pred_check
        %p263 = pneg %p84
      $region38: #{dlptnet_seg_forward.12} parent=35 // pred_check_branch
        %265 = sbr.rel (%p263) target = $region40
      $region39: #{dlptnet_seg_forward.12} parent=35 // pred_region
        %p266 = scmp.lt.s32.totalorder %s14, 1
        %s267 = scalar_select %p266, %s14, 1
        %s268 = smul.addr %s267, 4
        %s269 = scalar_lea.vmem %s2, %s268
      $region40: #{dlptnet_seg_forward.12} parent=35 // pred_fallthru
        _
    $region36: #{dlptnet_seg_forward.12} parent=5 // pred_fallthru
      _
  $region6: #{dlptnet_seg_forward.12} parent=0 // loop_footer
    %s12 = sadd.s32 1, %s8
  $region7: #{dlptnet_seg_forward.12} parent=0 // loop_footer_branch
    %7 = sbr.rel target = $region3
  $region8: #{dlptnet_seg_forward.12} parent=0 // loop_exit
    _

// kernel: dlptnet_seg_forward.13
$region0: #{dlptnet_seg_forward.13}
  #allocation0 [shape = 'u32[]', space=smem, size = 0x4, offset = 0x4, fixed_abs, tag = 'smem constant byte address 0x4 - core index']
  #allocation1 [shape = 'u32[144,128]{1,0:T(1,128)}', space=vmem, size = 0x12000, scoped, tag = 'internal scratch']
  %s0 = inlined_call_operand.vmem [shape: bf16[8,256], index: 0, kind: input, shape index: {}]
  %s1 = inlined_call_operand.vmem [shape: bf16[128,128], index: 1, kind: input, shape index: {}]
  %s2 = inlined_call_operand.vmem [shape: bf16[8,128], index: 2, kind: output, shape index: {}]
  %s3 = sld [smem:[#allocation0]]
  $region18: #{dlptnet_seg_forward.13} parent=0
    _
  %s5 = ssub.s32 1, %s3
  %s6 = scalar_select 0, %s5, %s3
  // Predicated region
  $region2: #{dlptnet_seg_forward.13} parent=0 // pred_check
    _
  $region3: #{dlptnet_seg_forward.13} parent=0 // pred_check_branch
    %8 = sbr.rel (0) target = $region5
  $region4: #{dlptnet_seg_forward.13} parent=0 // pred_region
    _
  $region5: #{dlptnet_seg_forward.13} parent=0 // pred_fallthru
    _
  // Predicated region
  $region6: #{dlptnet_seg_forward.13} parent=0 // pred_check
    _
  $region7: #{dlptnet_seg_forward.13} parent=0 // pred_check_branch
    %10 = sbr.rel (0) target = $region9
  $region8: #{dlptnet_seg_forward.13} parent=0 // pred_region
    _
  $region9: #{dlptnet_seg_forward.13} parent=0 // pred_fallthru
    _
  %v12 = vld [vmem:[%s0] sm:$0xf]
  %v13 = vld [vmem:[%s1] sm:$0xf]
  %v14 = vld [vmem:[%s1 + $0x4] sm:$0xf]
  %v15 = vld [vmem:[%s1 + $0x8] sm:$0xf]
  %v16 = vld [vmem:[%s1 + $0xc] sm:$0xf]
  %v17 = vld [vmem:[%s1 + $0x10] sm:$0xf]
  %v18 = vld [vmem:[%s1 + $0x14] sm:$0xf]
  %v19 = vld [vmem:[%s1 + $0x18] sm:$0xf]
  %v20 = vld [vmem:[%s1 + $0x1c] sm:$0xf]
  %v21 = vld [vmem:[%s1 + $0x20] sm:$0xf]
  %v22 = vld [vmem:[%s1 + $0x24] sm:$0xf]
  %v23 = vld [vmem:[%s1 + $0x28] sm:$0xf]
  %v24 = vld [vmem:[%s1 + $0x2c] sm:$0xf]
  %v25 = vld [vmem:[%s1 + $0x30] sm:$0xf]
  %v26 = vld [vmem:[%s1 + $0x34] sm:$0xf]
  %v27 = vld [vmem:[%s1 + $0x38] sm:$0xf]
  %v28 = vld [vmem:[%s1 + $0x3c] sm:$0xf]
  %v45 = vunpack.c.l.b16 %v13
  %v46 = vunpack.c.l.b16 %v14
  %v47 = vunpack.c.l.b16 %v15
  %v48 = vunpack.c.l.b16 %v16
  %v49 = vunpack.c.l.b16 %v17
  %v50 = vunpack.c.l.b16 %v18
  %v51 = vunpack.c.l.b16 %v19
  %v52 = vunpack.c.l.b16 %v20
  %v53 = vunpack.c.l.b16 %v21
  %v54 = vunpack.c.l.b16 %v22
  %v55 = vunpack.c.l.b16 %v23
  %v56 = vunpack.c.l.b16 %v24
  %v57 = vunpack.c.l.b16 %v25
  %v58 = vunpack.c.l.b16 %v26
  %v59 = vunpack.c.l.b16 %v27
  %v60 = vunpack.c.l.b16 %v28
  %v61 = vpack.c.b16 %v46, %v45
  %v62 = vpack.c.b16 %v48, %v47
  %v63 = vpack.c.b16 %v50, %v49
  %v64 = vpack.c.b16 %v52, %v51
  %v65 = vpack.c.b16 %v54, %v53
  %v66 = vpack.c.b16 %v56, %v55
  %v67 = vpack.c.b16 %v58, %v57
  %v68 = vpack.c.b16 %v60, %v59
  %77 = vmatprep.subr.bf16.mxu0 0
  %78 = vmatpush1.bf16.msra.mxu0 %v61
  %79 = vmatprep.subr.bf16.mxu0 0
  %80 = vmatpush1.bf16.msra.mxu0 %v62
  %81 = vmatprep.subr.bf16.mxu0 0
  %82 = vmatpush1.bf16.msra.mxu0 %v63
  %83 = vmatprep.subr.bf16.mxu0 0
  %84 = vmatpush1.bf16.msra.mxu0 %v64
  %85 = vmatprep.subr.bf16.mxu0 0
  %86 = vmatpush1.bf16.msra.mxu0 %v65
  %87 = vmatprep.subr.bf16.mxu0 0
  %88 = vmatpush1.bf16.msra.mxu0 %v66
  %89 = vmatprep.subr.bf16.mxu0 0
  %90 = vmatpush1.bf16.msra.mxu0 %v67
  %91 = vmatprep.subr.bf16.mxu0 0
  %92 = vmatpush1.bf16.msra.mxu0 %v68
  %93 = vmatprep.subr.bf16.mxu0 0
  %94 = vmatpush1.bf16.msra.mxu0 0
  %95 = vmatprep.subr.bf16.mxu0 0
  %96 = vmatpush1.bf16.msra.mxu0 0
  %97 = vmatprep.subr.bf16.mxu0 0
  %98 = vmatpush1.bf16.msra.mxu0 0
  %99 = vmatprep.subr.bf16.mxu0 0
  %100 = vmatpush1.bf16.msra.mxu0 0
  %101 = vmatprep.subr.bf16.mxu0 0
  %102 = vmatpush1.bf16.msra.mxu0 0
  %103 = vmatprep.subr.bf16.mxu0 0
  %104 = vmatpush1.bf16.msra.mxu0 0
  %105 = vmatprep.subr.bf16.mxu0 0
  %106 = vmatpush1.bf16.msra.mxu0 0
  %107 = vmatprep.subr.bf16.mxu0 0
  %108 = vmatpush1.bf16.msra.mxu0 0
  %109 = vmatprep.mubr.bf16.mxu0 0
  %110 = vmatmul.mubr.bf16.gmra.mrb[0].mxu0 %v12
  %v111 = vpop.f32.mrb[0].mxu0
  %v112 = vadd.f32 0.0, %v111
  %v113 = vpop.f32.mrb[0].mxu0
  %v114 = vpop.f32.mrb[0].mxu0
  %v115 = vpop.f32.mrb[0].mxu0
  %116 = vdwg.mxu0
  %v117 = vmax.f32 %v112, 0.0
  %v118 = vpack.c.bf16 %v117, %v117
  %119 = vst [vmem:[%s2] sm:$0xf] %v118
  // Predicated region
  $region10: #{dlptnet_seg_forward.13} parent=0 // pred_check
    _
  $region11: #{dlptnet_seg_forward.13} parent=0 // pred_check_branch
    %121 = sbr.rel (0) target = $region13
  $region12: #{dlptnet_seg_forward.13} parent=0 // pred_region
    _
  $region13: #{dlptnet_seg_forward.13} parent=0 // pred_fallthru
    _
  // Predicated region
  $region14: #{dlptnet_seg_forward.13} parent=0 // pred_check
    _
  $region15: #{dlptnet_seg_forward.13} parent=0 // pred_check_branch
    %123 = sbr.rel (0) target = $region17
  $region16: #{dlptnet_seg_forward.13} parent=0 // pred_region
    _
  $region17: #{dlptnet_seg_forward.13} parent=0 // pred_fallthru
    _

// kernel: dlptnet_seg_forward.16
$region0: #{dlptnet_seg_forward.16}
  #allocation0 [shape = 'u32[]', space=smem, size = 0x4, offset = 0x4, fixed_abs, tag = 'smem constant byte address 0x4 - core index']
  #allocation1 [shape = 'u32[144,128]{1,0:T(1,128)}', space=vmem, size = 0x12000, scoped, tag = 'internal scratch']
  %s0 = inlined_call_operand.vmem [shape: bf16[32,128], index: 0, kind: input, shape index: {}]
  %s1 = inlined_call_operand.vmem [shape: bf16[32,256], index: 1, kind: input, shape index: {}]
  %s2 = inlined_call_operand.vmem [shape: bf16[128,128], index: 2, kind: input, shape index: {}]
  %s3 = inlined_call_operand.vmem [shape: bf16[32,256], index: 3, kind: output, shape index: {}]
  %s4 = sld [smem:[#allocation0]]
  $region45: #{dlptnet_seg_forward.16} parent=0
    _
  %s6 = ssub.s32 1, %s4
  %s7 = scalar_select 0, %s6, %s4
  loop: start=0, step=1, limit=4
  $region2: #{dlptnet_seg_forward.16} parent=0 // loop_pre_header
    _
  $region3: #{dlptnet_seg_forward.16} parent=0 // loop_header
    %s9 = sphi 0, %s13
    %p10 = scmp.ge.s32.totalorder %s9, 4
    %s19 = sphi 0, %s21
    %s22 = sphi 0, %s19
    %s23 = sphi 0, %s22
    %s39 = sphi 0, %s23
    %s45 = sphi 0, %s47
    %s48 = sphi 0, %s45
    %s49 = sphi 0, %s48
    %s65 = sphi 0, %s49
    %s69 = sphi 0, %s69
    %s71 = sphi 0, %s69
    %s72 = sphi 0, %s71
    %s86 = sphi 0, %s72
    %s92 = sphi 0, %s94
    %s95 = sphi 0, %s92
    %s96 = sphi 0, %s95
    %s112 = sphi 0, %s96
  $region4: #{dlptnet_seg_forward.16} parent=0 // loop_header_branch
    %12 = sbr.rel (%p10) target = $region8
  $region5: #{dlptnet_seg_forward.16} parent=0 // loop_body
    %s14 = ssub.s32 %s9, 1
    %s15 = ssub.s32 %s9, 2
    %s16 = sadd.s32 %s9, 1
    %s17 = ssub.s32 %s9, %s16
    %p18 = scmp.eq.s32.totalorder %s17, 0
    %s20 = sadd.s32 %s19, 1
    %s21 = scalar_select %p18, %s19, %s20
    %p24 = pneg %p18
    %p25 = scmp.eq.s32.totalorder %s9, 1
    %p26 = por %p24, %p25
    %p27 = scmp.ne.s32.totalorder %s19, %s22
    %p28 = scmp.eq.s32.totalorder %s9, 0
    %p29 = por %p27, %p28
    %p30 = scmp.ne.s32.totalorder %s19, %s22
    %p31 = scmp.eq.s32.totalorder %s14, 1
    %p32 = por %p30, %p31
    %p33 = scmp.ne.s32.totalorder %s22, %s23
    %p34 = scmp.eq.s32.totalorder %s14, 0
    %p35 = por %p33, %p34
    %p36 = scmp.ne.s32.totalorder %s22, %s23
    %p37 = scmp.eq.s32.totalorder %s15, 1
    %p38 = por %p36, %p37
    %p40 = scmp.ne.s32.totalorder %s23, %s39
    %p41 = scmp.eq.s32.totalorder %s15, 0
    %p42 = por %p40, %p41
    %s43 = ssub.s32 %s9, %s16
    %p44 = scmp.eq.s32.totalorder %s43, 0
    %s46 = sadd.s32 %s45, 1
    %s47 = scalar_select %p44, %s45, %s46
    %p50 = pneg %p44
    %p51 = scmp.eq.s32.totalorder %s9, 1
    %p52 = por %p50, %p51
    %p53 = scmp.ne.s32.totalorder %s45, %s48
    %p54 = scmp.eq.s32.totalorder %s9, 0
    %p55 = por %p53, %p54
    %p56 = scmp.ne.s32.totalorder %s45, %s48
    %p57 = scmp.eq.s32.totalorder %s14, 1
    %p58 = por %p56, %p57
    %p59 = scmp.ne.s32.totalorder %s48, %s49
    %p60 = scmp.eq.s32.totalorder %s14, 0
    %p61 = por %p59, %p60
    %p62 = scmp.ne.s32.totalorder %s48, %s49
    %p63 = scmp.eq.s32.totalorder %s15, 1
    %p64 = por %p62, %p63
    %p66 = scmp.ne.s32.totalorder %s49, %s65
    %p67 = scmp.eq.s32.totalorder %s15, 0
    %p68 = por %p66, %p67
    %s70 = sadd.s32 %s69, 1
    %p73 = scmp.eq.s32.totalorder %s9, 1
    %p74 = scmp.ne.s32.totalorder %s69, %s71
    %p75 = scmp.eq.s32.totalorder %s9, 0
    %p76 = por %p74, %p75
    %p77 = scmp.ne.s32.totalorder %s69, %s71
    %p78 = scmp.eq.s32.totalorder %s14, 1
    %p79 = por %p77, %p78
    %p80 = scmp.ne.s32.totalorder %s71, %s72
    %p81 = scmp.eq.s32.totalorder %s14, 0
    %p82 = por %p80, %p81
    %p83 = scmp.ne.s32.totalorder %s71, %s72
    %p84 = scmp.eq.s32.totalorder %s15, 1
    %p85 = por %p83, %p84
    %p87 = scmp.ne.s32.totalorder %s72, %s86
    %p88 = scmp.eq.s32.totalorder %s15, 0
    %p89 = por %p87, %p88
    %s90 = ssub.s32 %s9, %s16
    %p91 = scmp.eq.s32.totalorder %s90, 0
    %s93 = sadd.s32 %s92, 1
    %s94 = scalar_select %p91, %s92, %s93
    %p97 = pneg %p91
    %p98 = scmp.eq.s32.totalorder %s9, 1
    %p99 = por %p97, %p98
    %p100 = scmp.ne.s32.totalorder %s92, %s95
    %p101 = scmp.eq.s32.totalorder %s9, 0
    %p102 = por %p100, %p101
    %p103 = scmp.ne.s32.totalorder %s92, %s95
    %p104 = scmp.eq.s32.totalorder %s14, 1
    %p105 = por %p103, %p104
    %p106 = scmp.ne.s32.totalorder %s95, %s96
    %p107 = scmp.eq.s32.totalorder %s14, 0
    %p108 = por %p106, %p107
    %p109 = scmp.ne.s32.totalorder %s95, %s96
    %p110 = scmp.eq.s32.totalorder %s15, 1
    %p111 = por %p109, %p110
    %p113 = scmp.ne.s32.totalorder %s96, %s112
    %p114 = scmp.eq.s32.totalorder %s15, 0
    %p115 = por %p113, %p114
    %p116 = scmp.le.s32.totalorder 1, %s9
    %p117 = scmp.lt.s32.totalorder %s9, 3
    %p118 = pnand %p116, %p117
    %p119 = pneg %p118
    // Predicated region
    $region9: #{dlptnet_seg_forward.16} parent=5 // pred_check
      _
    $region10: #{dlptnet_seg_forward.16} parent=5 // pred_check_branch
      %121 = sbr.rel (%p118) target = $region12
    $region11: #{dlptnet_seg_forward.16} parent=5 // pred_region
      %s122 = ssub.s32 %s9, 1
      // Predicated region
      $region13: #{dlptnet_seg_forward.16} parent=11 // pred_check
        %p123 = pneg %p82
      $region14: #{dlptnet_seg_forward.16} parent=11 // pred_check_branch
        %125 = sbr.rel (%p123) target = $region16
      $region15: #{dlptnet_seg_forward.16} parent=11 // pred_region
        _
      $region16: #{dlptnet_seg_forward.16} parent=11 // pred_fallthru
        _
    $region12: #{dlptnet_seg_forward.16} parent=5 // pred_fallthru
      _
    %p126 = scmp.lt.s32.totalorder %s9, 2
    // Predicated region
    $region17: #{dlptnet_seg_forward.16} parent=5 // pred_check
      %p127 = pneg %p126
    $region18: #{dlptnet_seg_forward.16} parent=5 // pred_check_branch
      %129 = sbr.rel (%p127) target = $region20
    $region19: #{dlptnet_seg_forward.16} parent=5 // pred_region
      // Predicated region
      $region21: #{dlptnet_seg_forward.16} parent=19 // pred_check
        %p130 = pneg %p29
      $region22: #{dlptnet_seg_forward.16} parent=19 // pred_check_branch
        %132 = sbr.rel (%p130) target = $region24
      $region23: #{dlptnet_seg_forward.16} parent=19 // pred_region
        %s133 = smul.u32 2, %s9
        %p134 = scmp.lt.s32.totalorder %s133, 3
        %s135 = scalar_select %p134, %s133, 3
        %s136 = smul.addr %s135, 4
        %s137 = scalar_lea.vmem %s0, %s136
        %s138 = smul.u32 2, %s9
      $region24: #{dlptnet_seg_forward.16} parent=19 // pred_fallthru
        _
      // Predicated region
      $region25: #{dlptnet_seg_forward.16} parent=19 // pred_check
        %p139 = pneg %p55
      $region26: #{dlptnet_seg_forward.16} parent=19 // pred_check_branch
        %141 = sbr.rel (%p139) target = $region28
      $region27: #{dlptnet_seg_forward.16} parent=19 // pred_region
        %s142 = smul.u32 2, %s9
        %p143 = scmp.lt.s32.totalorder %s142, 3
        %s144 = scalar_select %p143, %s142, 3
        %s145 = smul.addr %s144, 2
        %s146 = smul.addr %s145, 4
        %s147 = scalar_lea.vmem %s1, %s146
        %s148 = smul.u32 2, %s9
      $region28: #{dlptnet_seg_forward.16} parent=19 // pred_fallthru
        _
    $region20: #{dlptnet_seg_forward.16} parent=5 // pred_fallthru
      _
    %p149 = scmp.le.s32.totalorder 1, %s9
    %p150 = scmp.lt.s32.totalorder %s9, 3
    %p151 = pnand %p149, %p150
    %p152 = pneg %p151
    // Predicated region
    $region29: #{dlptnet_seg_forward.16} parent=5 // pred_check
      _
    $region30: #{dlptnet_seg_forward.16} parent=5 // pred_check_branch
      %154 = sbr.rel (%p151) target = $region32
    $region31: #{dlptnet_seg_forward.16} parent=5 // pred_region
      %s155 = ssub.s32 %s9, 1
      %s156 = smul.u32 2, %s14
      %p157 = scmp.lt.s32.totalorder %s156, 3
      %s158 = scalar_select %p157, %s156, 3
      %s159 = smul.addr %s158, 4
      %s160 = scalar_lea.vmem %s0, %s159
      %p161 = pneg %p35
      %p162 = pneg %p32
      %s163 = smul.u32 2, %s14
      %p164 = scmp.lt.s32.totalorder %s163, 3
      %s165 = scalar_select %p164, %s163, 3
      %s166 = smul.addr %s165, 2
      %s167 = smul.addr %s166, 4
      %s168 = scalar_lea.vmem %s1, %s167
      %p169 = pneg %p61
      %p170 = pneg %p58
      %p171 = pneg %p82
      %p172 = pneg %p79
      %p173 = pneg %p108
      %p174 = pneg %p105
      %s175 = smul.u32 2, %s14
      %p176 = scmp.lt.s32.totalorder %s175, 3
      %s177 = scalar_select %p176, %s175, 3
      %s178 = smul.addr %s177, 2
      %s179 = smul.addr %s178, 4
      %s180 = scalar_lea.vmem %s3, %s179
      %s181 = smul.u32 2, %s14
      %p182 = scmp.lt.s32.totalorder %s181, 3
      %s183 = scalar_select %p182, %s181, 3
      %s184 = smul.addr %s183, 4
      %s185 = scalar_lea.vmem %s0, %s184
      %s186 = smul.u32 2, %s14
      %s187 = smul.u32 2, %s14
      %p188 = scmp.lt.s32.totalorder %s187, 3
      %s189 = scalar_select %p188, %s187, 3
      %s190 = smul.addr %s189, 2
      %s191 = smul.addr %s190, 4
      %s192 = scalar_lea.vmem %s1, %s191
      %s193 = smul.u32 2, %s14
      %s194 = smul.u32 2, %s14
      %p195 = scmp.lt.s32.totalorder %s194, 3
      %s196 = scalar_select %p195, %s194, 3
      %s197 = smul.addr %s196, 2
      %s198 = smul.addr %s197, 4
      %s199 = scalar_lea.vmem %s3, %s198
      %s200 = smul.u32 2, %s14
      %v202 = vld [vmem:[%s185] sm:$0xf]
      %v203 = vld [vmem:[%s185 + $0x4] sm:$0xf]
      %v204 = vld [vmem:[%s2] sm:$0xf]
      %v205 = vld [vmem:[%s2 + $0x4] sm:$0xf]
      %v206 = vld [vmem:[%s2 + $0x8] sm:$0xf]
      %v207 = vld [vmem:[%s2 + $0xc] sm:$0xf]
      %v208 = vld [vmem:[%s2 + $0x10] sm:$0xf]
      %v209 = vld [vmem:[%s2 + $0x14] sm:$0xf]
      %v210 = vld [vmem:[%s2 + $0x18] sm:$0xf]
      %v211 = vld [vmem:[%s2 + $0x1c] sm:$0xf]
      %v212 = vld [vmem:[%s2 + $0x20] sm:$0xf]
      %v213 = vld [vmem:[%s2 + $0x24] sm:$0xf]
      %v214 = vld [vmem:[%s2 + $0x28] sm:$0xf]
      %v215 = vld [vmem:[%s2 + $0x2c] sm:$0xf]
      %v216 = vld [vmem:[%s2 + $0x30] sm:$0xf]
      %v217 = vld [vmem:[%s2 + $0x34] sm:$0xf]
      %v218 = vld [vmem:[%s2 + $0x38] sm:$0xf]
      %v219 = vld [vmem:[%s2 + $0x3c] sm:$0xf]
      %v222 = vunpack.c.l.b16 %v202
      %v223 = vunpack.c.l.b16 %v203
      %v224 = vpack.c.b16 %v223, %v222
      %v242 = vunpack.c.l.b16 %v204
      %v243 = vunpack.c.l.b16 %v205
      %v244 = vunpack.c.l.b16 %v206
      %v245 = vunpack.c.l.b16 %v207
      %v246 = vunpack.c.l.b16 %v208
      %v247 = vunpack.c.l.b16 %v209
      %v248 = vunpack.c.l.b16 %v210
      %v249 = vunpack.c.l.b16 %v211
      %v250 = vunpack.c.l.b16 %v212
      %v251 = vunpack.c.l.b16 %v213
      %v252 = vunpack.c.l.b16 %v214
      %v253 = vunpack.c.l.b16 %v215
      %v254 = vunpack.c.l.b16 %v216
      %v255 = vunpack.c.l.b16 %v217
      %v256 = vunpack.c.l.b16 %v218
      %v257 = vunpack.c.l.b16 %v219
      %v258 = vpack.c.b16 %v243, %v242
      %v259 = vpack.c.b16 %v245, %v244
      %v260 = vpack.c.b16 %v247, %v246
      %v261 = vpack.c.b16 %v249, %v248
      %v262 = vpack.c.b16 %v251, %v250
      %v263 = vpack.c.b16 %v253, %v252
      %v264 = vpack.c.b16 %v255, %v254
      %v265 = vpack.c.b16 %v257, %v256
      %274 = vmatprep.subr.bf16.mxu0 0
      %275 = vmatpush1.bf16.msra.mxu0 %v258
      %276 = vmatprep.subr.bf16.mxu0 0
      %277 = vmatpush1.bf16.msra.mxu0 %v259
      %278 = vmatprep.subr.bf16.mxu0 0
      %279 = vmatpush1.bf16.msra.mxu0 %v260
      %280 = vmatprep.subr.bf16.mxu0 0
      %281 = vmatpush1.bf16.msra.mxu0 %v261
      %282 = vmatprep.subr.bf16.mxu0 0
      %283 = vmatpush1.bf16.msra.mxu0 %v262
      %284 = vmatprep.subr.bf16.mxu0 0
      %285 = vmatpush1.bf16.msra.mxu0 %v263
      %286 = vmatprep.subr.bf16.mxu0 0
      %287 = vmatpush1.bf16.msra.mxu0 %v264
      %288 = vmatprep.subr.bf16.mxu0 0
      %289 = vmatpush1.bf16.msra.mxu0 %v265
      %290 = vmatprep.subr.bf16.mxu0 0
      %291 = vmatpush1.bf16.msra.mxu0 0
      %292 = vmatprep.subr.bf16.mxu0 0
      %293 = vmatpush1.bf16.msra.mxu0 0
      %294 = vmatprep.subr.bf16.mxu0 0
      %295 = vmatpush1.bf16.msra.mxu0 0
      %296 = vmatprep.subr.bf16.mxu0 0
      %297 = vmatpush1.bf16.msra.mxu0 0
      %298 = vmatprep.subr.bf16.mxu0 0
      %299 = vmatpush1.bf16.msra.mxu0 0
      %300 = vmatprep.subr.bf16.mxu0 0
      %301 = vmatpush1.bf16.msra.mxu0 0
      %302 = vmatprep.subr.bf16.mxu0 0
      %303 = vmatpush1.bf16.msra.mxu0 0
      %304 = vmatprep.subr.bf16.mxu0 0
      %305 = vmatpush1.bf16.msra.mxu0 0
      %306 = vmatprep.mubr.bf16.mxu0 0
      %307 = vmatmul.mubr.bf16.gmra.mrb[0].mxu0 %v224
      %v308 = vpop.f32.mrb[0].mxu0
      %v309 = vadd.f32 0.0, %v308
      %v310 = vpop.f32.mrb[0].mxu0
      %v311 = vpop.f32.mrb[0].mxu0
      %v312 = vadd.f32 0.0, %v311
      %v313 = vpop.f32.mrb[0].mxu0
      %314 = vdwg.mxu0
      %v315 = vld [vmem:[%s192] sm:$0xff]
      %v316 = vld [vmem:[%s192 + $0x8] sm:$0xff]
      %v317 = vunpack.c.l.bf16 %v315
      %v318 = vunpack.c.h.bf16 %v315
      %v319 = vunpack.c.l.bf16 %v316
      %v320 = vunpack.c.h.bf16 %v316
      %v321 = vadd.f32 %v317, %v309
      %v322 = vadd.f32 %v318, %v309
      %v323 = vadd.f32 %v319, %v312
      %v324 = vadd.f32 %v320, %v312
      %v325 = vmax.f32 %v321, 0.0
      %v326 = vmax.f32 %v322, 0.0
      %v327 = vmax.f32 %v323, 0.0
      %v328 = vmax.f32 %v324, 0.0
      %v329 = vpack.c.bf16 %v327, %v325
      %v330 = vpack.c.bf16 %v328, %v326
      %v333 = vunpack.c.l.b16 %v329
      %v334 = vunpack.c.l.b16 %v330
      %v335 = vunpack.c.h.b16 %v329
      %v336 = vunpack.c.h.b16 %v330
      %v337 = vpack.c.b16 %v334, %v333
      %v338 = vpack.c.b16 %v336, %v335
      %341 = vst [vmem:[%s199] sm:$0xff] %v337
      %342 = vst [vmem:[%s199 + $0x8] sm:$0xff] %v338
      %s343 = smul.u32 2, %s14
      %p344 = scmp.lt.s32.totalorder %s343, 3
      %s345 = scalar_select %p344, %s343, 3
      %s346 = smul.addr %s345, 2
      %s347 = smul.addr %s346, 4
      %s348 = scalar_lea.vmem %s3, %s347
      // Predicated region
      $region33: #{dlptnet_seg_forward.16} parent=31 // pred_check
        %p349 = pneg %p105
      $region34: #{dlptnet_seg_forward.16} parent=31 // pred_check_branch
        %351 = sbr.rel (%p349) target = $region36
      $region35: #{dlptnet_seg_forward.16} parent=31 // pred_region
        %s352 = smul.u32 2, %s14
      $region36: #{dlptnet_seg_forward.16} parent=31 // pred_fallthru
        _
    $region32: #{dlptnet_seg_forward.16} parent=5 // pred_fallthru
      _
    %p353 = scmp.le.s32.totalorder 2, %s9
    // Predicated region
    $region37: #{dlptnet_seg_forward.16} parent=5 // pred_check
      %p354 = pneg %p353
    $region38: #{dlptnet_seg_forward.16} parent=5 // pred_check_branch
      %356 = sbr.rel (%p354) target = $region40
    $region39: #{dlptnet_seg_forward.16} parent=5 // pred_region
      %s357 = ssub.s32 %s9, 2
      // Predicated region
      $region41: #{dlptnet_seg_forward.16} parent=39 // pred_check
        %p358 = pneg %p111
      $region42: #{dlptnet_seg_forward.16} parent=39 // pred_check_branch
        %360 = sbr.rel (%p358) target = $region44
      $region43: #{dlptnet_seg_forward.16} parent=39 // pred_region
        %s361 = smul.u32 2, %s15
        %p362 = scmp.lt.s32.totalorder %s361, 3
        %s363 = scalar_select %p362, %s361, 3
        %s364 = smul.addr %s363, 2
        %s365 = smul.addr %s364, 4
        %s366 = scalar_lea.vmem %s3, %s365
      $region44: #{dlptnet_seg_forward.16} parent=39 // pred_fallthru
        _
    $region40: #{dlptnet_seg_forward.16} parent=5 // pred_fallthru
      _
  $region6: #{dlptnet_seg_forward.16} parent=0 // loop_footer
    %s13 = sadd.s32 1, %s9
  $region7: #{dlptnet_seg_forward.16} parent=0 // loop_footer_branch
    %8 = sbr.rel target = $region3
  $region8: #{dlptnet_seg_forward.16} parent=0 // loop_exit
    _

// kernel: dlptnet_seg_forward.14
$region0: #{dlptnet_seg_forward.14}
  #allocation0 [shape = 'u32[]', space=smem, size = 0x4, offset = 0x4, fixed_abs, tag = 'smem constant byte address 0x4 - core index']
  #allocation1 [shape = 'u32[144,128]{1,0:T(1,128)}', space=vmem, size = 0x12000, scoped, tag = 'internal scratch']
  %s0 = inlined_call_operand.vmem [shape: bf16[8,128], index: 0, kind: input, shape index: {}]
  %s1 = inlined_call_operand.vmem [shape: bf16[8,256], index: 1, kind: input, shape index: {}]
  %s2 = inlined_call_operand.vmem [shape: bf16[128,128], index: 2, kind: input, shape index: {}]
  %s3 = inlined_call_operand.vmem [shape: bf16[128,128], index: 3, kind: input, shape index: {}]
  %s4 = inlined_call_operand.vmem [shape: bf16[8,256], index: 4, kind: output, shape index: {}]
  %s5 = sld [smem:[#allocation0]]
  $region26: #{dlptnet_seg_forward.14} parent=0
    _
  %s7 = ssub.s32 1, %s5
  %s8 = scalar_select 0, %s7, %s5
  // Predicated region
  $region2: #{dlptnet_seg_forward.14} parent=0 // pred_check
    _
  $region3: #{dlptnet_seg_forward.14} parent=0 // pred_check_branch
    %10 = sbr.rel (0) target = $region5
  $region4: #{dlptnet_seg_forward.14} parent=0 // pred_region
    _
  $region5: #{dlptnet_seg_forward.14} parent=0 // pred_fallthru
    _
  // Predicated region
  $region6: #{dlptnet_seg_forward.14} parent=0 // pred_check
    _
  $region7: #{dlptnet_seg_forward.14} parent=0 // pred_check_branch
    %12 = sbr.rel (0) target = $region9
  $region8: #{dlptnet_seg_forward.14} parent=0 // pred_region
    _
  $region9: #{dlptnet_seg_forward.14} parent=0 // pred_fallthru
    _
  // Predicated region
  $region10: #{dlptnet_seg_forward.14} parent=0 // pred_check
    _
  $region11: #{dlptnet_seg_forward.14} parent=0 // pred_check_branch
    %14 = sbr.rel (0) target = $region13
  $region12: #{dlptnet_seg_forward.14} parent=0 // pred_region
    _
  $region13: #{dlptnet_seg_forward.14} parent=0 // pred_fallthru
    _
  // Predicated region
  $region14: #{dlptnet_seg_forward.14} parent=0 // pred_check
    _
  $region15: #{dlptnet_seg_forward.14} parent=0 // pred_check_branch
    %16 = sbr.rel (0) target = $region17
  $region16: #{dlptnet_seg_forward.14} parent=0 // pred_region
    _
  $region17: #{dlptnet_seg_forward.14} parent=0 // pred_fallthru
    _
  %v18 = vld [vmem:[%s0] sm:$0xf]
  %v19 = vld [vmem:[%s2] sm:$0xf]
  %v20 = vld [vmem:[%s2 + $0x4] sm:$0xf]
  %v21 = vld [vmem:[%s2 + $0x8] sm:$0xf]
  %v22 = vld [vmem:[%s2 + $0xc] sm:$0xf]
  %v23 = vld [vmem:[%s2 + $0x10] sm:$0xf]
  %v24 = vld [vmem:[%s2 + $0x14] sm:$0xf]
  %v25 = vld [vmem:[%s2 + $0x18] sm:$0xf]
  %v26 = vld [vmem:[%s2 + $0x1c] sm:$0xf]
  %v27 = vld [vmem:[%s2 + $0x20] sm:$0xf]
  %v28 = vld [vmem:[%s2 + $0x24] sm:$0xf]
  %v29 = vld [vmem:[%s2 + $0x28] sm:$0xf]
  %v30 = vld [vmem:[%s2 + $0x2c] sm:$0xf]
  %v31 = vld [vmem:[%s2 + $0x30] sm:$0xf]
  %v32 = vld [vmem:[%s2 + $0x34] sm:$0xf]
  %v33 = vld [vmem:[%s2 + $0x38] sm:$0xf]
  %v34 = vld [vmem:[%s2 + $0x3c] sm:$0xf]
  %v51 = vunpack.c.l.b16 %v19
  %v52 = vunpack.c.l.b16 %v20
  %v53 = vunpack.c.l.b16 %v21
  %v54 = vunpack.c.l.b16 %v22
  %v55 = vunpack.c.l.b16 %v23
  %v56 = vunpack.c.l.b16 %v24
  %v57 = vunpack.c.l.b16 %v25
  %v58 = vunpack.c.l.b16 %v26
  %v59 = vunpack.c.l.b16 %v27
  %v60 = vunpack.c.l.b16 %v28
  %v61 = vunpack.c.l.b16 %v29
  %v62 = vunpack.c.l.b16 %v30
  %v63 = vunpack.c.l.b16 %v31
  %v64 = vunpack.c.l.b16 %v32
  %v65 = vunpack.c.l.b16 %v33
  %v66 = vunpack.c.l.b16 %v34
  %v67 = vpack.c.b16 %v52, %v51
  %v68 = vpack.c.b16 %v54, %v53
  %v69 = vpack.c.b16 %v56, %v55
  %v70 = vpack.c.b16 %v58, %v57
  %v71 = vpack.c.b16 %v60, %v59
  %v72 = vpack.c.b16 %v62, %v61
  %v73 = vpack.c.b16 %v64, %v63
  %v74 = vpack.c.b16 %v66, %v65
  %83 = vmatprep.subr.bf16.mxu0 0
  %84 = vmatpush1.bf16.msra.mxu0 %v67
  %85 = vmatprep.subr.bf16.mxu0 0
  %86 = vmatpush1.bf16.msra.mxu0 %v68
  %87 = vmatprep.subr.bf16.mxu0 0
  %88 = vmatpush1.bf16.msra.mxu0 %v69
  %89 = vmatprep.subr.bf16.mxu0 0
  %90 = vmatpush1.bf16.msra.mxu0 %v70
  %91 = vmatprep.subr.bf16.mxu0 0
  %92 = vmatpush1.bf16.msra.mxu0 %v71
  %93 = vmatprep.subr.bf16.mxu0 0
  %94 = vmatpush1.bf16.msra.mxu0 %v72
  %95 = vmatprep.subr.bf16.mxu0 0
  %96 = vmatpush1.bf16.msra.mxu0 %v73
  %97 = vmatprep.subr.bf16.mxu0 0
  %98 = vmatpush1.bf16.msra.mxu0 %v74
  %99 = vmatprep.subr.bf16.mxu0 0
  %100 = vmatpush1.bf16.msra.mxu0 0
  %101 = vmatprep.subr.bf16.mxu0 0
  %102 = vmatpush1.bf16.msra.mxu0 0
  %103 = vmatprep.subr.bf16.mxu0 0
  %104 = vmatpush1.bf16.msra.mxu0 0
  %105 = vmatprep.subr.bf16.mxu0 0
  %106 = vmatpush1.bf16.msra.mxu0 0
  %107 = vmatprep.subr.bf16.mxu0 0
  %108 = vmatpush1.bf16.msra.mxu0 0
  %109 = vmatprep.subr.bf16.mxu0 0
  %110 = vmatpush1.bf16.msra.mxu0 0
  %111 = vmatprep.subr.bf16.mxu0 0
  %112 = vmatpush1.bf16.msra.mxu0 0
  %113 = vmatprep.subr.bf16.mxu0 0
  %114 = vmatpush1.bf16.msra.mxu0 0
  %115 = vmatprep.mubr.bf16.mxu0 0
  %116 = vmatmul.mubr.bf16.gmra.mrb[0].mxu0 %v18
  %v117 = vpop.f32.mrb[0].mxu0
  %v118 = vadd.f32 0.0, %v117
  %v119 = vpop.f32.mrb[0].mxu0
  %v120 = vpop.f32.mrb[0].mxu0
  %v121 = vpop.f32.mrb[0].mxu0
  %122 = vdwg.mxu0
  %v123 = vmax.f32 %v118, 0.0
  %v124 = vpack.c.bf16 %v123, %v123
  %v125 = vld [vmem:[%s3] sm:$0xf]
  %v126 = vld [vmem:[%s3 + $0x4] sm:$0xf]
  %v127 = vld [vmem:[%s3 + $0x8] sm:$0xf]
  %v128 = vld [vmem:[%s3 + $0xc] sm:$0xf]
  %v129 = vld [vmem:[%s3 + $0x10] sm:$0xf]
  %v130 = vld [vmem:[%s3 + $0x14] sm:$0xf]
  %v131 = vld [vmem:[%s3 + $0x18] sm:$0xf]
  %v132 = vld [vmem:[%s3 + $0x1c] sm:$0xf]
  %v133 = vld [vmem:[%s3 + $0x20] sm:$0xf]
  %v134 = vld [vmem:[%s3 + $0x24] sm:$0xf]
  %v135 = vld [vmem:[%s3 + $0x28] sm:$0xf]
  %v136 = vld [vmem:[%s3 + $0x2c] sm:$0xf]
  %v137 = vld [vmem:[%s3 + $0x30] sm:$0xf]
  %v138 = vld [vmem:[%s3 + $0x34] sm:$0xf]
  %v139 = vld [vmem:[%s3 + $0x38] sm:$0xf]
  %v140 = vld [vmem:[%s3 + $0x3c] sm:$0xf]
  %v157 = vunpack.c.l.b16 %v125
  %v158 = vunpack.c.l.b16 %v126
  %v159 = vunpack.c.l.b16 %v127
  %v160 = vunpack.c.l.b16 %v128
  %v161 = vunpack.c.l.b16 %v129
  %v162 = vunpack.c.l.b16 %v130
  %v163 = vunpack.c.l.b16 %v131
  %v164 = vunpack.c.l.b16 %v132
  %v165 = vunpack.c.l.b16 %v133
  %v166 = vunpack.c.l.b16 %v134
  %v167 = vunpack.c.l.b16 %v135
  %v168 = vunpack.c.l.b16 %v136
  %v169 = vunpack.c.l.b16 %v137
  %v170 = vunpack.c.l.b16 %v138
  %v171 = vunpack.c.l.b16 %v139
  %v172 = vunpack.c.l.b16 %v140
  %v173 = vpack.c.b16 %v158, %v157
  %v174 = vpack.c.b16 %v160, %v159
  %v175 = vpack.c.b16 %v162, %v161
  %v176 = vpack.c.b16 %v164, %v163
  %v177 = vpack.c.b16 %v166, %v165
  %v178 = vpack.c.b16 %v168, %v167
  %v179 = vpack.c.b16 %v170, %v169
  %v180 = vpack.c.b16 %v172, %v171
  %189 = vmatprep.subr.bf16.mxu0 0
  %190 = vmatpush1.bf16.msra.mxu0 %v173
  %191 = vmatprep.subr.bf16.mxu0 0
  %192 = vmatpush1.bf16.msra.mxu0 %v174
  %193 = vmatprep.subr.bf16.mxu0 0
  %194 = vmatpush1.bf16.msra.mxu0 %v175
  %195 = vmatprep.subr.bf16.mxu0 0
  %196 = vmatpush1.bf16.msra.mxu0 %v176
  %197 = vmatprep.subr.bf16.mxu0 0
  %198 = vmatpush1.bf16.msra.mxu0 %v177
  %199 = vmatprep.subr.bf16.mxu0 0
  %200 = vmatpush1.bf16.msra.mxu0 %v178
  %201 = vmatprep.subr.bf16.mxu0 0
  %202 = vmatpush1.bf16.msra.mxu0 %v179
  %203 = vmatprep.subr.bf16.mxu0 0
  %204 = vmatpush1.bf16.msra.mxu0 %v180
  %205 = vmatprep.subr.bf16.mxu0 0
  %206 = vmatpush1.bf16.msra.mxu0 0
  %207 = vmatprep.subr.bf16.mxu0 0
  %208 = vmatpush1.bf16.msra.mxu0 0
  %209 = vmatprep.subr.bf16.mxu0 0
  %210 = vmatpush1.bf16.msra.mxu0 0
  %211 = vmatprep.subr.bf16.mxu0 0
  %212 = vmatpush1.bf16.msra.mxu0 0
  %213 = vmatprep.subr.bf16.mxu0 0
  %214 = vmatpush1.bf16.msra.mxu0 0
  %215 = vmatprep.subr.bf16.mxu0 0
  %216 = vmatpush1.bf16.msra.mxu0 0
  %217 = vmatprep.subr.bf16.mxu0 0
  %218 = vmatpush1.bf16.msra.mxu0 0
  %219 = vmatprep.subr.bf16.mxu0 0
  %220 = vmatpush1.bf16.msra.mxu0 0
  %221 = vmatprep.mubr.bf16.mxu0 0
  %222 = vmatmul.mubr.bf16.gmra.mrb[0].mxu0 %v124
  %v223 = vpop.f32.mrb[0].mxu0
  %v224 = vadd.f32 0.0, %v223
  %v225 = vpop.f32.mrb[0].mxu0
  %v226 = vpop.f32.mrb[0].mxu0
  %v227 = vpop.f32.mrb[0].mxu0
  %228 = vdwg.mxu0
  %v229 = vld [vmem:[%s1] sm:$0xff]
  %v230 = vunpack.c.l.bf16 %v229
  %v231 = vunpack.c.h.bf16 %v229
  %v232 = vadd.f32 %v230, %v224
  %v233 = vadd.f32 %v231, %v224
  %v234 = vmax.f32 %v232, 0.0
  %v235 = vmax.f32 %v233, 0.0
  %v236 = vpack.c.bf16 %v234, %v234
  %v237 = vpack.c.bf16 %v235, %v235
  %v240 = vunpack.c.l.b16 %v236
  %v241 = vunpack.c.l.b16 %v237
  %v242 = vpack.c.b16 %v241, %v240
  %244 = vst [vmem:[%s4] sm:$0xff] %v242
  // Predicated region
  $region18: #{dlptnet_seg_forward.14} parent=0 // pred_check
    _
  $region19: #{dlptnet_seg_forward.14} parent=0 // pred_check_branch
    %246 = sbr.rel (0) target = $region21
  $region20: #{dlptnet_seg_forward.14} parent=0 // pred_region
    _
  $region21: #{dlptnet_seg_forward.14} parent=0 // pred_fallthru
    _
  // Predicated region
  $region22: #{dlptnet_seg_forward.14} parent=0 // pred_check
    _
  $region23: #{dlptnet_seg_forward.14} parent=0 // pred_check_branch
    %248 = sbr.rel (0) target = $region25
  $region24: #{dlptnet_seg_forward.14} parent=0 // pred_region
    _
  $region25: #{dlptnet_seg_forward.14} parent=0 // pred_fallthru
    _

// kernel: dlptnet_seg_forward.15
$region0: #{dlptnet_seg_forward.15}
  #allocation0 [shape = 'u32[]', space=smem, size = 0x4, offset = 0x4, fixed_abs, tag = 'smem constant byte address 0x4 - core index']
  #allocation1 [shape = 'u32[144,128]{1,0:T(1,128)}', space=vmem, size = 0x12000, scoped, tag = 'internal scratch']
  %s0 = inlined_call_operand.vmem [shape: bf16[16,128], index: 0, kind: input, shape index: {}]
  %s1 = inlined_call_operand.vmem [shape: bf16[16,256], index: 1, kind: input, shape index: {}]
  %s2 = inlined_call_operand.vmem [shape: bf16[128,128], index: 2, kind: input, shape index: {}]
  %s3 = inlined_call_operand.vmem [shape: bf16[16,256], index: 3, kind: output, shape index: {}]
  %s4 = sld [smem:[#allocation0]]
  $region45: #{dlptnet_seg_forward.15} parent=0
    _
  %s6 = ssub.s32 1, %s4
  %s7 = scalar_select 0, %s6, %s4
  loop: start=0, step=1, limit=4
  $region2: #{dlptnet_seg_forward.15} parent=0 // loop_pre_header
    _
  $region3: #{dlptnet_seg_forward.15} parent=0 // loop_header
    %s9 = sphi 0, %s13
    %p10 = scmp.ge.s32.totalorder %s9, 4
    %s19 = sphi 0, %s21
    %s22 = sphi 0, %s19
    %s23 = sphi 0, %s22
    %s39 = sphi 0, %s23
    %s45 = sphi 0, %s47
    %s48 = sphi 0, %s45
    %s49 = sphi 0, %s48
    %s65 = sphi 0, %s49
    %s69 = sphi 0, %s69
    %s71 = sphi 0, %s69
    %s72 = sphi 0, %s71
    %s86 = sphi 0, %s72
    %s92 = sphi 0, %s94
    %s95 = sphi 0, %s92
    %s96 = sphi 0, %s95
    %s112 = sphi 0, %s96
  $region4: #{dlptnet_seg_forward.15} parent=0 // loop_header_branch
    %12 = sbr.rel (%p10) target = $region8
  $region5: #{dlptnet_seg_forward.15} parent=0 // loop_body
    %s14 = ssub.s32 %s9, 1
    %s15 = ssub.s32 %s9, 2
    %s16 = sadd.s32 %s9, 1
    %s17 = ssub.s32 %s9, %s16
    %p18 = scmp.eq.s32.totalorder %s17, 0
    %s20 = sadd.s32 %s19, 1
    %s21 = scalar_select %p18, %s19, %s20
    %p24 = pneg %p18
    %p25 = scmp.eq.s32.totalorder %s9, 1
    %p26 = por %p24, %p25
    %p27 = scmp.ne.s32.totalorder %s19, %s22
    %p28 = scmp.eq.s32.totalorder %s9, 0
    %p29 = por %p27, %p28
    %p30 = scmp.ne.s32.totalorder %s19, %s22
    %p31 = scmp.eq.s32.totalorder %s14, 1
    %p32 = por %p30, %p31
    %p33 = scmp.ne.s32.totalorder %s22, %s23
    %p34 = scmp.eq.s32.totalorder %s14, 0
    %p35 = por %p33, %p34
    %p36 = scmp.ne.s32.totalorder %s22, %s23
    %p37 = scmp.eq.s32.totalorder %s15, 1
    %p38 = por %p36, %p37
    %p40 = scmp.ne.s32.totalorder %s23, %s39
    %p41 = scmp.eq.s32.totalorder %s15, 0
    %p42 = por %p40, %p41
    %s43 = ssub.s32 %s9, %s16
    %p44 = scmp.eq.s32.totalorder %s43, 0
    %s46 = sadd.s32 %s45, 1
    %s47 = scalar_select %p44, %s45, %s46
    %p50 = pneg %p44
    %p51 = scmp.eq.s32.totalorder %s9, 1
    %p52 = por %p50, %p51
    %p53 = scmp.ne.s32.totalorder %s45, %s48
    %p54 = scmp.eq.s32.totalorder %s9, 0
    %p55 = por %p53, %p54
    %p56 = scmp.ne.s32.totalorder %s45, %s48
    %p57 = scmp.eq.s32.totalorder %s14, 1
    %p58 = por %p56, %p57
    %p59 = scmp.ne.s32.totalorder %s48, %s49
    %p60 = scmp.eq.s32.totalorder %s14, 0
    %p61 = por %p59, %p60
    %p62 = scmp.ne.s32.totalorder %s48, %s49
    %p63 = scmp.eq.s32.totalorder %s15, 1
    %p64 = por %p62, %p63
    %p66 = scmp.ne.s32.totalorder %s49, %s65
    %p67 = scmp.eq.s32.totalorder %s15, 0
    %p68 = por %p66, %p67
    %s70 = sadd.s32 %s69, 1
    %p73 = scmp.eq.s32.totalorder %s9, 1
    %p74 = scmp.ne.s32.totalorder %s69, %s71
    %p75 = scmp.eq.s32.totalorder %s9, 0
    %p76 = por %p74, %p75
    %p77 = scmp.ne.s32.totalorder %s69, %s71
    %p78 = scmp.eq.s32.totalorder %s14, 1
    %p79 = por %p77, %p78
    %p80 = scmp.ne.s32.totalorder %s71, %s72
    %p81 = scmp.eq.s32.totalorder %s14, 0
    %p82 = por %p80, %p81
    %p83 = scmp.ne.s32.totalorder %s71, %s72
    %p84 = scmp.eq.s32.totalorder %s15, 1
    %p85 = por %p83, %p84
    %p87 = scmp.ne.s32.totalorder %s72, %s86
    %p88 = scmp.eq.s32.totalorder %s15, 0
    %p89 = por %p87, %p88
    %s90 = ssub.s32 %s9, %s16
    %p91 = scmp.eq.s32.totalorder %s90, 0
    %s93 = sadd.s32 %s92, 1
    %s94 = scalar_select %p91, %s92, %s93
    %p97 = pneg %p91
    %p98 = scmp.eq.s32.totalorder %s9, 1
    %p99 = por %p97, %p98
    %p100 = scmp.ne.s32.totalorder %s92, %s95
    %p101 = scmp.eq.s32.totalorder %s9, 0
    %p102 = por %p100, %p101
    %p103 = scmp.ne.s32.totalorder %s92, %s95
    %p104 = scmp.eq.s32.totalorder %s14, 1
    %p105 = por %p103, %p104
    %p106 = scmp.ne.s32.totalorder %s95, %s96
    %p107 = scmp.eq.s32.totalorder %s14, 0
    %p108 = por %p106, %p107
    %p109 = scmp.ne.s32.totalorder %s95, %s96
    %p110 = scmp.eq.s32.totalorder %s15, 1
    %p111 = por %p109, %p110
    %p113 = scmp.ne.s32.totalorder %s96, %s112
    %p114 = scmp.eq.s32.totalorder %s15, 0
    %p115 = por %p113, %p114
    %p116 = scmp.le.s32.totalorder 1, %s9
    %p117 = scmp.lt.s32.totalorder %s9, 3
    %p118 = pnand %p116, %p117
    %p119 = pneg %p118
    // Predicated region
    $region9: #{dlptnet_seg_forward.15} parent=5 // pred_check
      _
    $region10: #{dlptnet_seg_forward.15} parent=5 // pred_check_branch
      %121 = sbr.rel (%p118) target = $region12
    $region11: #{dlptnet_seg_forward.15} parent=5 // pred_region
      %s122 = ssub.s32 %s9, 1
      // Predicated region
      $region13: #{dlptnet_seg_forward.15} parent=11 // pred_check
        %p123 = pneg %p82
      $region14: #{dlptnet_seg_forward.15} parent=11 // pred_check_branch
        %125 = sbr.rel (%p123) target = $region16
      $region15: #{dlptnet_seg_forward.15} parent=11 // pred_region
        _
      $region16: #{dlptnet_seg_forward.15} parent=11 // pred_fallthru
        _
    $region12: #{dlptnet_seg_forward.15} parent=5 // pred_fallthru
      _
    %p126 = scmp.lt.s32.totalorder %s9, 2
    // Predicated region
    $region17: #{dlptnet_seg_forward.15} parent=5 // pred_check
      %p127 = pneg %p126
    $region18: #{dlptnet_seg_forward.15} parent=5 // pred_check_branch
      %129 = sbr.rel (%p127) target = $region20
    $region19: #{dlptnet_seg_forward.15} parent=5 // pred_region
      // Predicated region
      $region21: #{dlptnet_seg_forward.15} parent=19 // pred_check
        %p130 = pneg %p29
      $region22: #{dlptnet_seg_forward.15} parent=19 // pred_check_branch
        %132 = sbr.rel (%p130) target = $region24
      $region23: #{dlptnet_seg_forward.15} parent=19 // pred_region
        %p133 = scmp.lt.s32.totalorder %s9, 1
        %s134 = scalar_select %p133, %s9, 1
        %s135 = smul.addr %s134, 4
        %s136 = scalar_lea.vmem %s0, %s135
      $region24: #{dlptnet_seg_forward.15} parent=19 // pred_fallthru
        _
      // Predicated region
      $region25: #{dlptnet_seg_forward.15} parent=19 // pred_check
        %p137 = pneg %p55
      $region26: #{dlptnet_seg_forward.15} parent=19 // pred_check_branch
        %139 = sbr.rel (%p137) target = $region28
      $region27: #{dlptnet_seg_forward.15} parent=19 // pred_region
        %p140 = scmp.lt.s32.totalorder %s9, 1
        %s141 = scalar_select %p140, %s9, 1
        %s142 = smul.addr %s141, 2
        %s143 = smul.addr %s142, 4
        %s144 = scalar_lea.vmem %s1, %s143
      $region28: #{dlptnet_seg_forward.15} parent=19 // pred_fallthru
        _
    $region20: #{dlptnet_seg_forward.15} parent=5 // pred_fallthru
      _
    %p145 = scmp.le.s32.totalorder 1, %s9
    %p146 = scmp.lt.s32.totalorder %s9, 3
    %p147 = pnand %p145, %p146
    %p148 = pneg %p147
    // Predicated region
    $region29: #{dlptnet_seg_forward.15} parent=5 // pred_check
      _
    $region30: #{dlptnet_seg_forward.15} parent=5 // pred_check_branch
      %150 = sbr.rel (%p147) target = $region32
    $region31: #{dlptnet_seg_forward.15} parent=5 // pred_region
      %s151 = ssub.s32 %s9, 1
      %p152 = scmp.lt.s32.totalorder %s14, 1
      %s153 = scalar_select %p152, %s14, 1
      %s154 = smul.addr %s153, 4
      %s155 = scalar_lea.vmem %s0, %s154
      %p156 = pneg %p35
      %p157 = pneg %p32
      %p158 = scmp.lt.s32.totalorder %s14, 1
      %s159 = scalar_select %p158, %s14, 1
      %s160 = smul.addr %s159, 2
      %s161 = smul.addr %s160, 4
      %s162 = scalar_lea.vmem %s1, %s161
      %p163 = pneg %p61
      %p164 = pneg %p58
      %p165 = pneg %p82
      %p166 = pneg %p79
      %p167 = pneg %p108
      %p168 = pneg %p105
      %p169 = scmp.lt.s32.totalorder %s14, 1
      %s170 = scalar_select %p169, %s14, 1
      %s171 = smul.addr %s170, 2
      %s172 = smul.addr %s171, 4
      %s173 = scalar_lea.vmem %s3, %s172
      %p174 = scmp.lt.s32.totalorder %s14, 1
      %s175 = scalar_select %p174, %s14, 1
      %s176 = smul.addr %s175, 4
      %s177 = scalar_lea.vmem %s0, %s176
      %p178 = scmp.lt.s32.totalorder %s14, 1
      %s179 = scalar_select %p178, %s14, 1
      %s180 = smul.addr %s179, 2
      %s181 = smul.addr %s180, 4
      %s182 = scalar_lea.vmem %s1, %s181
      %p183 = scmp.lt.s32.totalorder %s14, 1
      %s184 = scalar_select %p183, %s14, 1
      %s185 = smul.addr %s184, 2
      %s186 = smul.addr %s185, 4
      %s187 = scalar_lea.vmem %s3, %s186
      %v189 = vld [vmem:[%s177] sm:$0xf]
      %v190 = vld [vmem:[%s2] sm:$0xf]
      %v191 = vld [vmem:[%s2 + $0x4] sm:$0xf]
      %v192 = vld [vmem:[%s2 + $0x8] sm:$0xf]
      %v193 = vld [vmem:[%s2 + $0xc] sm:$0xf]
      %v194 = vld [vmem:[%s2 + $0x10] sm:$0xf]
      %v195 = vld [vmem:[%s2 + $0x14] sm:$0xf]
      %v196 = vld [vmem:[%s2 + $0x18] sm:$0xf]
      %v197 = vld [vmem:[%s2 + $0x1c] sm:$0xf]
      %v198 = vld [vmem:[%s2 + $0x20] sm:$0xf]
      %v199 = vld [vmem:[%s2 + $0x24] sm:$0xf]
      %v200 = vld [vmem:[%s2 + $0x28] sm:$0xf]
      %v201 = vld [vmem:[%s2 + $0x2c] sm:$0xf]
      %v202 = vld [vmem:[%s2 + $0x30] sm:$0xf]
      %v203 = vld [vmem:[%s2 + $0x34] sm:$0xf]
      %v204 = vld [vmem:[%s2 + $0x38] sm:$0xf]
      %v205 = vld [vmem:[%s2 + $0x3c] sm:$0xf]
      %v222 = vunpack.c.l.b16 %v190
      %v223 = vunpack.c.l.b16 %v191
      %v224 = vunpack.c.l.b16 %v192
      %v225 = vunpack.c.l.b16 %v193
      %v226 = vunpack.c.l.b16 %v194
      %v227 = vunpack.c.l.b16 %v195
      %v228 = vunpack.c.l.b16 %v196
      %v229 = vunpack.c.l.b16 %v197
      %v230 = vunpack.c.l.b16 %v198
      %v231 = vunpack.c.l.b16 %v199
      %v232 = vunpack.c.l.b16 %v200
      %v233 = vunpack.c.l.b16 %v201
      %v234 = vunpack.c.l.b16 %v202
      %v235 = vunpack.c.l.b16 %v203
      %v236 = vunpack.c.l.b16 %v204
      %v237 = vunpack.c.l.b16 %v205
      %v238 = vpack.c.b16 %v223, %v222
      %v239 = vpack.c.b16 %v225, %v224
      %v240 = vpack.c.b16 %v227, %v226
      %v241 = vpack.c.b16 %v229, %v228
      %v242 = vpack.c.b16 %v231, %v230
      %v243 = vpack.c.b16 %v233, %v232
      %v244 = vpack.c.b16 %v235, %v234
      %v245 = vpack.c.b16 %v237, %v236
      %254 = vmatprep.subr.bf16.mxu0 0
      %255 = vmatpush1.bf16.msra.mxu0 %v238
      %256 = vmatprep.subr.bf16.mxu0 0
      %257 = vmatpush1.bf16.msra.mxu0 %v239
      %258 = vmatprep.subr.bf16.mxu0 0
      %259 = vmatpush1.bf16.msra.mxu0 %v240
      %260 = vmatprep.subr.bf16.mxu0 0
      %261 = vmatpush1.bf16.msra.mxu0 %v241
      %262 = vmatprep.subr.bf16.mxu0 0
      %263 = vmatpush1.bf16.msra.mxu0 %v242
      %264 = vmatprep.subr.bf16.mxu0 0
      %265 = vmatpush1.bf16.msra.mxu0 %v243
      %266 = vmatprep.subr.bf16.mxu0 0
      %267 = vmatpush1.bf16.msra.mxu0 %v244
      %268 = vmatprep.subr.bf16.mxu0 0
      %269 = vmatpush1.bf16.msra.mxu0 %v245
      %270 = vmatprep.subr.bf16.mxu0 0
      %271 = vmatpush1.bf16.msra.mxu0 0
      %272 = vmatprep.subr.bf16.mxu0 0
      %273 = vmatpush1.bf16.msra.mxu0 0
      %274 = vmatprep.subr.bf16.mxu0 0
      %275 = vmatpush1.bf16.msra.mxu0 0
      %276 = vmatprep.subr.bf16.mxu0 0
      %277 = vmatpush1.bf16.msra.mxu0 0
      %278 = vmatprep.subr.bf16.mxu0 0
      %279 = vmatpush1.bf16.msra.mxu0 0
      %280 = vmatprep.subr.bf16.mxu0 0
      %281 = vmatpush1.bf16.msra.mxu0 0
      %282 = vmatprep.subr.bf16.mxu0 0
      %283 = vmatpush1.bf16.msra.mxu0 0
      %284 = vmatprep.subr.bf16.mxu0 0
      %285 = vmatpush1.bf16.msra.mxu0 0
      %286 = vmatprep.mubr.bf16.mxu0 0
      %287 = vmatmul.mubr.bf16.gmra.mrb[0].mxu0 %v189
      %v288 = vpop.f32.mrb[0].mxu0
      %v289 = vadd.f32 0.0, %v288
      %v290 = vpop.f32.mrb[0].mxu0
      %v291 = vpop.f32.mrb[0].mxu0
      %v292 = vpop.f32.mrb[0].mxu0
      %293 = vdwg.mxu0
      %v294 = vld [vmem:[%s182] sm:$0xff]
      %v295 = vunpack.c.l.bf16 %v294
      %v296 = vunpack.c.h.bf16 %v294
      %v297 = vadd.f32 %v295, %v289
      %v298 = vadd.f32 %v296, %v289
      %v299 = vmax.f32 %v297, 0.0
      %v300 = vmax.f32 %v298, 0.0
      %v301 = vpack.c.bf16 %v299, %v299
      %v302 = vpack.c.bf16 %v300, %v300
      %v305 = vunpack.c.l.b16 %v301
      %v306 = vunpack.c.l.b16 %v302
      %v307 = vpack.c.b16 %v306, %v305
      %309 = vst [vmem:[%s187] sm:$0xff] %v307
      %p310 = scmp.lt.s32.totalorder %s14, 1
      %s311 = scalar_select %p310, %s14, 1
      %s312 = smul.addr %s311, 2
      %s313 = smul.addr %s312, 4
      %s314 = scalar_lea.vmem %s3, %s313
      // Predicated region
      $region33: #{dlptnet_seg_forward.15} parent=31 // pred_check
        %p315 = pneg %p105
      $region34: #{dlptnet_seg_forward.15} parent=31 // pred_check_branch
        %317 = sbr.rel (%p315) target = $region36
      $region35: #{dlptnet_seg_forward.15} parent=31 // pred_region
        _
      $region36: #{dlptnet_seg_forward.15} parent=31 // pred_fallthru
        _
    $region32: #{dlptnet_seg_forward.15} parent=5 // pred_fallthru
      _
    %p318 = scmp.le.s32.totalorder 2, %s9
    // Predicated region
    $region37: #{dlptnet_seg_forward.15} parent=5 // pred_check
      %p319 = pneg %p318
    $region38: #{dlptnet_seg_forward.15} parent=5 // pred_check_branch
      %321 = sbr.rel (%p319) target = $region40
    $region39: #{dlptnet_seg_forward.15} parent=5 // pred_region
      %s322 = ssub.s32 %s9, 2
      // Predicated region
      $region41: #{dlptnet_seg_forward.15} parent=39 // pred_check
        %p323 = pneg %p111
      $region42: #{dlptnet_seg_forward.15} parent=39 // pred_check_branch
        %325 = sbr.rel (%p323) target = $region44
      $region43: #{dlptnet_seg_forward.15} parent=39 // pred_region
        %p326 = scmp.lt.s32.totalorder %s15, 1
        %s327 = scalar_select %p326, %s15, 1
        %s328 = smul.addr %s327, 2
        %s329 = smul.addr %s328, 4
        %s330 = scalar_lea.vmem %s3, %s329
      $region44: #{dlptnet_seg_forward.15} parent=39 // pred_fallthru
        _
    $region40: #{dlptnet_seg_forward.15} parent=5 // pred_fallthru
      _
  $region6: #{dlptnet_seg_forward.15} parent=0 // loop_footer
    %s13 = sadd.s32 1, %s9
  $region7: #{dlptnet_seg_forward.15} parent=0 // loop_footer_branch
    %8 = sbr.rel target = $region3
  $region8: #{dlptnet_seg_forward.15} parent=0 // loop_exit
    _

// kernel: dlptnet_seg_forward.17
$region0: #{dlptnet_seg_forward.17}
  #allocation0 [shape = 'u32[]', space=smem, size = 0x4, offset = 0x4, fixed_abs, tag = 'smem constant byte address 0x4 - core index']
  #allocation1 [shape = 'u32[144,128]{1,0:T(1,128)}', space=vmem, size = 0x12000, scoped, tag = 'internal scratch']
  %s0 = inlined_call_operand.vmem [shape: bf16[64,128], index: 0, kind: input, shape index: {}]
  %s1 = inlined_call_operand.vmem [shape: bf16[64,256], index: 1, kind: input, shape index: {}]
  %s2 = inlined_call_operand.vmem [shape: bf16[128,128], index: 2, kind: input, shape index: {}]
  %s3 = inlined_call_operand.vmem [shape: bf16[128,128], index: 3, kind: input, shape index: {}]
  %s4 = inlined_call_operand.vmem [shape: bf16[128,128], index: 4, kind: input, shape index: {}]
  %s5 = inlined_call_operand.vmem [shape: f32[1,128], index: 5, kind: input, shape index: {}]
  %s6 = inlined_call_operand.vmem [shape: f32[64,256], index: 6, kind: output, shape index: {}]
  %s7 = sld [smem:[#allocation0]]
  $region57: #{dlptnet_seg_forward.17} parent=0
    _
  %s9 = ssub.s32 1, %s7
  %s10 = scalar_select 0, %s9, %s7
  loop: start=0, step=1, limit=4
  $region2: #{dlptnet_seg_forward.17} parent=0 // loop_pre_header
    _
  $region3: #{dlptnet_seg_forward.17} parent=0 // loop_header
    %s12 = sphi 0, %s16
    %p13 = scmp.ge.s32.totalorder %s12, 4
    %s22 = sphi 0, %s24
    %s25 = sphi 0, %s22
    %s26 = sphi 0, %s25
    %s42 = sphi 0, %s26
    %s48 = sphi 0, %s50
    %s51 = sphi 0, %s48
    %s52 = sphi 0, %s51
    %s68 = sphi 0, %s52
    %s72 = sphi 0, %s72
    %s74 = sphi 0, %s72
    %s75 = sphi 0, %s74
    %s89 = sphi 0, %s75
    %s93 = sphi 0, %s93
    %s95 = sphi 0, %s93
    %s96 = sphi 0, %s95
    %s110 = sphi 0, %s96
    %s114 = sphi 0, %s114
    %s116 = sphi 0, %s114
    %s117 = sphi 0, %s116
    %s131 = sphi 0, %s117
    %s135 = sphi 0, %s135
    %s137 = sphi 0, %s135
    %s138 = sphi 0, %s137
    %s152 = sphi 0, %s138
    %s158 = sphi 0, %s160
    %s161 = sphi 0, %s158
    %s162 = sphi 0, %s161
    %s178 = sphi 0, %s162
  $region4: #{dlptnet_seg_forward.17} parent=0 // loop_header_branch
    %15 = sbr.rel (%p13) target = $region8
  $region5: #{dlptnet_seg_forward.17} parent=0 // loop_body
    %s17 = ssub.s32 %s12, 1
    %s18 = ssub.s32 %s12, 2
    %s19 = sadd.s32 %s12, 1
    %s20 = ssub.s32 %s12, %s19
    %p21 = scmp.eq.s32.totalorder %s20, 0
    %s23 = sadd.s32 %s22, 1
    %s24 = scalar_select %p21, %s22, %s23
    %p27 = pneg %p21
    %p28 = scmp.eq.s32.totalorder %s12, 1
    %p29 = por %p27, %p28
    %p30 = scmp.ne.s32.totalorder %s22, %s25
    %p31 = scmp.eq.s32.totalorder %s12, 0
    %p32 = por %p30, %p31
    %p33 = scmp.ne.s32.totalorder %s22, %s25
    %p34 = scmp.eq.s32.totalorder %s17, 1
    %p35 = por %p33, %p34
    %p36 = scmp.ne.s32.totalorder %s25, %s26
    %p37 = scmp.eq.s32.totalorder %s17, 0
    %p38 = por %p36, %p37
    %p39 = scmp.ne.s32.totalorder %s25, %s26
    %p40 = scmp.eq.s32.totalorder %s18, 1
    %p41 = por %p39, %p40
    %p43 = scmp.ne.s32.totalorder %s26, %s42
    %p44 = scmp.eq.s32.totalorder %s18, 0
    %p45 = por %p43, %p44
    %s46 = ssub.s32 %s12, %s19
    %p47 = scmp.eq.s32.totalorder %s46, 0
    %s49 = sadd.s32 %s48, 1
    %s50 = scalar_select %p47, %s48, %s49
    %p53 = pneg %p47
    %p54 = scmp.eq.s32.totalorder %s12, 1
    %p55 = por %p53, %p54
    %p56 = scmp.ne.s32.totalorder %s48, %s51
    %p57 = scmp.eq.s32.totalorder %s12, 0
    %p58 = por %p56, %p57
    %p59 = scmp.ne.s32.totalorder %s48, %s51
    %p60 = scmp.eq.s32.totalorder %s17, 1
    %p61 = por %p59, %p60
    %p62 = scmp.ne.s32.totalorder %s51, %s52
    %p63 = scmp.eq.s32.totalorder %s17, 0
    %p64 = por %p62, %p63
    %p65 = scmp.ne.s32.totalorder %s51, %s52
    %p66 = scmp.eq.s32.totalorder %s18, 1
    %p67 = por %p65, %p66
    %p69 = scmp.ne.s32.totalorder %s52, %s68
    %p70 = scmp.eq.s32.totalorder %s18, 0
    %p71 = por %p69, %p70
    %s73 = sadd.s32 %s72, 1
    %p76 = scmp.eq.s32.totalorder %s12, 1
    %p77 = scmp.ne.s32.totalorder %s72, %s74
    %p78 = scmp.eq.s32.totalorder %s12, 0
    %p79 = por %p77, %p78
    %p80 = scmp.ne.s32.totalorder %s72, %s74
    %p81 = scmp.eq.s32.totalorder %s17, 1
    %p82 = por %p80, %p81
    %p83 = scmp.ne.s32.totalorder %s74, %s75
    %p84 = scmp.eq.s32.totalorder %s17, 0
    %p85 = por %p83, %p84
    %p86 = scmp.ne.s32.totalorder %s74, %s75
    %p87 = scmp.eq.s32.totalorder %s18, 1
    %p88 = por %p86, %p87
    %p90 = scmp.ne.s32.totalorder %s75, %s89
    %p91 = scmp.eq.s32.totalorder %s18, 0
    %p92 = por %p90, %p91
    %s94 = sadd.s32 %s93, 1
    %p97 = scmp.eq.s32.totalorder %s12, 1
    %p98 = scmp.ne.s32.totalorder %s93, %s95
    %p99 = scmp.eq.s32.totalorder %s12, 0
    %p100 = por %p98, %p99
    %p101 = scmp.ne.s32.totalorder %s93, %s95
    %p102 = scmp.eq.s32.totalorder %s17, 1
    %p103 = por %p101, %p102
    %p104 = scmp.ne.s32.totalorder %s95, %s96
    %p105 = scmp.eq.s32.totalorder %s17, 0
    %p106 = por %p104, %p105
    %p107 = scmp.ne.s32.totalorder %s95, %s96
    %p108 = scmp.eq.s32.totalorder %s18, 1
    %p109 = por %p107, %p108
    %p111 = scmp.ne.s32.totalorder %s96, %s110
    %p112 = scmp.eq.s32.totalorder %s18, 0
    %p113 = por %p111, %p112
    %s115 = sadd.s32 %s114, 1
    %p118 = scmp.eq.s32.totalorder %s12, 1
    %p119 = scmp.ne.s32.totalorder %s114, %s116
    %p120 = scmp.eq.s32.totalorder %s12, 0
    %p121 = por %p119, %p120
    %p122 = scmp.ne.s32.totalorder %s114, %s116
    %p123 = scmp.eq.s32.totalorder %s17, 1
    %p124 = por %p122, %p123
    %p125 = scmp.ne.s32.totalorder %s116, %s117
    %p126 = scmp.eq.s32.totalorder %s17, 0
    %p127 = por %p125, %p126
    %p128 = scmp.ne.s32.totalorder %s116, %s117
    %p129 = scmp.eq.s32.totalorder %s18, 1
    %p130 = por %p128, %p129
    %p132 = scmp.ne.s32.totalorder %s117, %s131
    %p133 = scmp.eq.s32.totalorder %s18, 0
    %p134 = por %p132, %p133
    %s136 = sadd.s32 %s135, 1
    %p139 = scmp.eq.s32.totalorder %s12, 1
    %p140 = scmp.ne.s32.totalorder %s135, %s137
    %p141 = scmp.eq.s32.totalorder %s12, 0
    %p142 = por %p140, %p141
    %p143 = scmp.ne.s32.totalorder %s135, %s137
    %p144 = scmp.eq.s32.totalorder %s17, 1
    %p145 = por %p143, %p144
    %p146 = scmp.ne.s32.totalorder %s137, %s138
    %p147 = scmp.eq.s32.totalorder %s17, 0
    %p148 = por %p146, %p147
    %p149 = scmp.ne.s32.totalorder %s137, %s138
    %p150 = scmp.eq.s32.totalorder %s18, 1
    %p151 = por %p149, %p150
    %p153 = scmp.ne.s32.totalorder %s138, %s152
    %p154 = scmp.eq.s32.totalorder %s18, 0
    %p155 = por %p153, %p154
    %s156 = ssub.s32 %s12, %s19
    %p157 = scmp.eq.s32.totalorder %s156, 0
    %s159 = sadd.s32 %s158, 1
    %s160 = scalar_select %p157, %s158, %s159
    %p163 = pneg %p157
    %p164 = scmp.eq.s32.totalorder %s12, 1
    %p165 = por %p163, %p164
    %p166 = scmp.ne.s32.totalorder %s158, %s161
    %p167 = scmp.eq.s32.totalorder %s12, 0
    %p168 = por %p166, %p167
    %p169 = scmp.ne.s32.totalorder %s158, %s161
    %p170 = scmp.eq.s32.totalorder %s17, 1
    %p171 = por %p169, %p170
    %p172 = scmp.ne.s32.totalorder %s161, %s162
    %p173 = scmp.eq.s32.totalorder %s17, 0
    %p174 = por %p172, %p173
    %p175 = scmp.ne.s32.totalorder %s161, %s162
    %p176 = scmp.eq.s32.totalorder %s18, 1
    %p177 = por %p175, %p176
    %p179 = scmp.ne.s32.totalorder %s162, %s178
    %p180 = scmp.eq.s32.totalorder %s18, 0
    %p181 = por %p179, %p180
    %p182 = scmp.le.s32.totalorder 1, %s12
    %p183 = scmp.lt.s32.totalorder %s12, 3
    %p184 = pnand %p182, %p183
    %p185 = pneg %p184
    // Predicated region
    $region9: #{dlptnet_seg_forward.17} parent=5 // pred_check
      _
    $region10: #{dlptnet_seg_forward.17} parent=5 // pred_check_branch
      %187 = sbr.rel (%p184) target = $region12
    $region11: #{dlptnet_seg_forward.17} parent=5 // pred_region
      %s188 = ssub.s32 %s12, 1
      // Predicated region
      $region13: #{dlptnet_seg_forward.17} parent=11 // pred_check
        %p189 = pneg %p85
      $region14: #{dlptnet_seg_forward.17} parent=11 // pred_check_branch
        %191 = sbr.rel (%p189) target = $region16
      $region15: #{dlptnet_seg_forward.17} parent=11 // pred_region
        _
      $region16: #{dlptnet_seg_forward.17} parent=11 // pred_fallthru
        _
      // Predicated region
      $region17: #{dlptnet_seg_forward.17} parent=11 // pred_check
        %p192 = pneg %p106
      $region18: #{dlptnet_seg_forward.17} parent=11 // pred_check_branch
        %194 = sbr.rel (%p192) target = $region20
      $region19: #{dlptnet_seg_forward.17} parent=11 // pred_region
        _
      $region20: #{dlptnet_seg_forward.17} parent=11 // pred_fallthru
        _
      // Predicated region
      $region21: #{dlptnet_seg_forward.17} parent=11 // pred_check
        %p195 = pneg %p127
      $region22: #{dlptnet_seg_forward.17} parent=11 // pred_check_branch
        %197 = sbr.rel (%p195) target = $region24
      $region23: #{dlptnet_seg_forward.17} parent=11 // pred_region
        _
      $region24: #{dlptnet_seg_forward.17} parent=11 // pred_fallthru
        _
      // Predicated region
      $region25: #{dlptnet_seg_forward.17} parent=11 // pred_check
        %p198 = pneg %p148
      $region26: #{dlptnet_seg_forward.17} parent=11 // pred_check_branch
        %200 = sbr.rel (%p198) target = $region28
      $region27: #{dlptnet_seg_forward.17} parent=11 // pred_region
        _
      $region28: #{dlptnet_seg_forward.17} parent=11 // pred_fallthru
        _
    $region12: #{dlptnet_seg_forward.17} parent=5 // pred_fallthru
      _
    %p201 = scmp.lt.s32.totalorder %s12, 2
    // Predicated region
    $region29: #{dlptnet_seg_forward.17} parent=5 // pred_check
      %p202 = pneg %p201
    $region30: #{dlptnet_seg_forward.17} parent=5 // pred_check_branch
      %204 = sbr.rel (%p202) target = $region32
    $region31: #{dlptnet_seg_forward.17} parent=5 // pred_region
      // Predicated region
      $region33: #{dlptnet_seg_forward.17} parent=31 // pred_check
        %p205 = pneg %p32
      $region34: #{dlptnet_seg_forward.17} parent=31 // pred_check_branch
        %207 = sbr.rel (%p205) target = $region36
      $region35: #{dlptnet_seg_forward.17} parent=31 // pred_region
        %s208 = smul.u32 4, %s12
        %p209 = scmp.lt.s32.totalorder %s208, 7
        %s210 = scalar_select %p209, %s208, 7
        %s211 = smul.addr %s210, 4
        %s212 = scalar_lea.vmem %s0, %s211
        %s213 = smul.u32 4, %s12
      $region36: #{dlptnet_seg_forward.17} parent=31 // pred_fallthru
        _
      // Predicated region
      $region37: #{dlptnet_seg_forward.17} parent=31 // pred_check
        %p214 = pneg %p58
      $region38: #{dlptnet_seg_forward.17} parent=31 // pred_check_branch
        %216 = sbr.rel (%p214) target = $region40
      $region39: #{dlptnet_seg_forward.17} parent=31 // pred_region
        %s217 = smul.u32 4, %s12
        %p218 = scmp.lt.s32.totalorder %s217, 7
        %s219 = scalar_select %p218, %s217, 7
        %s220 = smul.addr %s219, 2
        %s221 = smul.addr %s220, 4
        %s222 = scalar_lea.vmem %s1, %s221
        %s223 = smul.u32 4, %s12
      $region40: #{dlptnet_seg_forward.17} parent=31 // pred_fallthru
        _
    $region32: #{dlptnet_seg_forward.17} parent=5 // pred_fallthru
      _
    %p224 = scmp.le.s32.totalorder 1, %s12
    %p225 = scmp.lt.s32.totalorder %s12, 3
    %p226 = pnand %p224, %p225
    %p227 = pneg %p226
    // Predicated region
    $region41: #{dlptnet_seg_forward.17} parent=5 // pred_check
      _
    $region42: #{dlptnet_seg_forward.17} parent=5 // pred_check_branch
      %229 = sbr.rel (%p226) target = $region44
    $region43: #{dlptnet_seg_forward.17} parent=5 // pred_region
      %s230 = ssub.s32 %s12, 1
      %s231 = smul.u32 4, %s17
      %p232 = scmp.lt.s32.totalorder %s231, 7
      %s233 = scalar_select %p232, %s231, 7
      %s234 = smul.addr %s233, 4
      %s235 = scalar_lea.vmem %s0, %s234
      %p236 = pneg %p38
      %p237 = pneg %p35
      %s238 = smul.u32 4, %s17
      %p239 = scmp.lt.s32.totalorder %s238, 7
      %s240 = scalar_select %p239, %s238, 7
      %s241 = smul.addr %s240, 2
      %s242 = smul.addr %s241, 4
      %s243 = scalar_lea.vmem %s1, %s242
      %p244 = pneg %p64
      %p245 = pneg %p61
      %p246 = pneg %p85
      %p247 = pneg %p82
      %p248 = pneg %p106
      %p249 = pneg %p103
      %p250 = pneg %p127
      %p251 = pneg %p124
      %p252 = pneg %p148
      %p253 = pneg %p145
      %p254 = pneg %p174
      %p255 = pneg %p171
      %s256 = smul.u32 4, %s17
      %p257 = scmp.lt.s32.totalorder %s256, 7
      %s258 = scalar_select %p257, %s256, 7
      %s259 = smul.addr %s258, 2
      %s260 = smul.addr %s259, 8
      %s261 = scalar_lea.vmem %s6, %s260
      %s262 = smul.u32 4, %s17
      %p263 = scmp.lt.s32.totalorder %s262, 7
      %s264 = scalar_select %p263, %s262, 7
      %s265 = smul.addr %s264, 4
      %s266 = scalar_lea.vmem %s0, %s265
      %s267 = smul.u32 4, %s17
      %s268 = smul.u32 4, %s17
      %p269 = scmp.lt.s32.totalorder %s268, 7
      %s270 = scalar_select %p269, %s268, 7
      %s271 = smul.addr %s270, 2
      %s272 = smul.addr %s271, 4
      %s273 = scalar_lea.vmem %s1, %s272
      %s274 = smul.u32 4, %s17
      %s275 = smul.u32 4, %s17
      %p276 = scmp.lt.s32.totalorder %s275, 7
      %s277 = scalar_select %p276, %s275, 7
      %s278 = smul.addr %s277, 2
      %s279 = smul.addr %s278, 8
      %s280 = scalar_lea.vmem %s6, %s279
      %s281 = smul.u32 4, %s17
      %v283 = vld [vmem:[%s266] sm:$0xf]
      %v284 = vld [vmem:[%s266 + $0x4] sm:$0xf]
      %v285 = vld [vmem:[%s266 + $0x8] sm:$0xf]
      %v286 = vld [vmem:[%s266 + $0xc] sm:$0xf]
      %v287 = vld [vmem:[%s2] sm:$0xf]
      %v288 = vld [vmem:[%s2 + $0x4] sm:$0xf]
      %v289 = vld [vmem:[%s2 + $0x8] sm:$0xf]
      %v290 = vld [vmem:[%s2 + $0xc] sm:$0xf]
      %v291 = vld [vmem:[%s2 + $0x10] sm:$0xf]
      %v292 = vld [vmem:[%s2 + $0x14] sm:$0xf]
      %v293 = vld [vmem:[%s2 + $0x18] sm:$0xf]
      %v294 = vld [vmem:[%s2 + $0x1c] sm:$0xf]
      %v295 = vld [vmem:[%s2 + $0x20] sm:$0xf]
      %v296 = vld [vmem:[%s2 + $0x24] sm:$0xf]
      %v297 = vld [vmem:[%s2 + $0x28] sm:$0xf]
      %v298 = vld [vmem:[%s2 + $0x2c] sm:$0xf]
      %v299 = vld [vmem:[%s2 + $0x30] sm:$0xf]
      %v300 = vld [vmem:[%s2 + $0x34] sm:$0xf]
      %v301 = vld [vmem:[%s2 + $0x38] sm:$0xf]
      %v302 = vld [vmem:[%s2 + $0x3c] sm:$0xf]
      %v307 = vunpack.c.l.b16 %v283
      %v308 = vunpack.c.l.b16 %v284
      %v309 = vunpack.c.l.b16 %v285
      %v310 = vunpack.c.l.b16 %v286
      %v311 = vpack.c.b16 %v308, %v307
      %v312 = vpack.c.b16 %v310, %v309
      %v331 = vunpack.c.l.b16 %v287
      %v332 = vunpack.c.l.b16 %v288
      %v333 = vunpack.c.l.b16 %v289
      %v334 = vunpack.c.l.b16 %v290
      %v335 = vunpack.c.l.b16 %v291
      %v336 = vunpack.c.l.b16 %v292
      %v337 = vunpack.c.l.b16 %v293
      %v338 = vunpack.c.l.b16 %v294
      %v339 = vunpack.c.l.b16 %v295
      %v340 = vunpack.c.l.b16 %v296
      %v341 = vunpack.c.l.b16 %v297
      %v342 = vunpack.c.l.b16 %v298
      %v343 = vunpack.c.l.b16 %v299
      %v344 = vunpack.c.l.b16 %v300
      %v345 = vunpack.c.l.b16 %v301
      %v346 = vunpack.c.l.b16 %v302
      %v347 = vpack.c.b16 %v332, %v331
      %v348 = vpack.c.b16 %v334, %v333
      %v349 = vpack.c.b16 %v336, %v335
      %v350 = vpack.c.b16 %v338, %v337
      %v351 = vpack.c.b16 %v340, %v339
      %v352 = vpack.c.b16 %v342, %v341
      %v353 = vpack.c.b16 %v344, %v343
      %v354 = vpack.c.b16 %v346, %v345
      %363 = vmatprep.subr.bf16.mxu0 0
      %364 = vmatpush1.bf16.msra.mxu0 %v347
      %365 = vmatprep.subr.bf16.mxu0 0
      %366 = vmatpush1.bf16.msra.mxu0 %v348
      %367 = vmatprep.subr.bf16.mxu0 0
      %368 = vmatpush1.bf16.msra.mxu0 %v349
      %369 = vmatprep.subr.bf16.mxu0 0
      %370 = vmatpush1.bf16.msra.mxu0 %v350
      %371 = vmatprep.subr.bf16.mxu0 0
      %372 = vmatpush1.bf16.msra.mxu0 %v351
      %373 = vmatprep.subr.bf16.mxu0 0
      %374 = vmatpush1.bf16.msra.mxu0 %v352
      %375 = vmatprep.subr.bf16.mxu0 0
      %376 = vmatpush1.bf16.msra.mxu0 %v353
      %377 = vmatprep.subr.bf16.mxu0 0
      %378 = vmatpush1.bf16.msra.mxu0 %v354
      %379 = vmatprep.subr.bf16.mxu0 0
      %380 = vmatpush1.bf16.msra.mxu0 0
      %381 = vmatprep.subr.bf16.mxu0 0
      %382 = vmatpush1.bf16.msra.mxu0 0
      %383 = vmatprep.subr.bf16.mxu0 0
      %384 = vmatpush1.bf16.msra.mxu0 0
      %385 = vmatprep.subr.bf16.mxu0 0
      %386 = vmatpush1.bf16.msra.mxu0 0
      %387 = vmatprep.subr.bf16.mxu0 0
      %388 = vmatpush1.bf16.msra.mxu0 0
      %389 = vmatprep.subr.bf16.mxu0 0
      %390 = vmatpush1.bf16.msra.mxu0 0
      %391 = vmatprep.subr.bf16.mxu0 0
      %392 = vmatpush1.bf16.msra.mxu0 0
      %393 = vmatprep.subr.bf16.mxu0 0
      %394 = vmatpush1.bf16.msra.mxu0 0
      %395 = vmatprep.mubr.bf16.mxu0 0
      %396 = vmatmul.mubr.bf16.gmra.mrb[0].mxu0 %v311
      %v397 = vpop.f32.mrb[0].mxu0
      %v398 = vadd.f32 0.0, %v397
      %v399 = vpop.f32.mrb[0].mxu0
      %v400 = vpop.f32.mrb[0].mxu0
      %v401 = vadd.f32 0.0, %v400
      %v402 = vpop.f32.mrb[0].mxu0
      %403 = vmatprep.mubr.bf16.mxu0 0
      %404 = vmatmul.mubr.bf16.gmra.mrb[0].mxu0 %v312
      %v405 = vpop.f32.mrb[0].mxu0
      %v406 = vadd.f32 0.0, %v405
      %v407 = vpop.f32.mrb[0].mxu0
      %v408 = vpop.f32.mrb[0].mxu0
      %v409 = vadd.f32 0.0, %v408
      %v410 = vpop.f32.mrb[0].mxu0
      %411 = vdwg.mxu0
      %v412 = vld [vmem:[%s273] sm:$0xff]
      %v413 = vld [vmem:[%s273 + $0x8] sm:$0xff]
      %v414 = vld [vmem:[%s273 + $0x10] sm:$0xff]
      %v415 = vld [vmem:[%s273 + $0x18] sm:$0xff]
      %v416 = vunpack.c.l.bf16 %v412
      %v417 = vunpack.c.h.bf16 %v412
      %v418 = vunpack.c.l.bf16 %v413
      %v419 = vunpack.c.h.bf16 %v413
      %v420 = vunpack.c.l.bf16 %v414
      %v421 = vunpack.c.h.bf16 %v414
      %v422 = vunpack.c.l.bf16 %v415
      %v423 = vunpack.c.h.bf16 %v415
      %v424 = vadd.f32 %v416, %v398
      %v425 = vadd.f32 %v417, %v398
      %v426 = vadd.f32 %v418, %v401
      %v427 = vadd.f32 %v419, %v401
      %v428 = vadd.f32 %v420, %v406
      %v429 = vadd.f32 %v421, %v406
      %v430 = vadd.f32 %v422, %v409
      %v431 = vadd.f32 %v423, %v409
      %v432 = vmax.f32 %v424, 0.0
      %v433 = vmax.f32 %v425, 0.0
      %v434 = vmax.f32 %v426, 0.0
      %v435 = vmax.f32 %v427, 0.0
      %v436 = vmax.f32 %v428, 0.0
      %v437 = vmax.f32 %v429, 0.0
      %v438 = vmax.f32 %v430, 0.0
      %v439 = vmax.f32 %v431, 0.0
      %v440 = vpack.c.bf16 %v434, %v432
      %v441 = vpack.c.bf16 %v435, %v433
      %v442 = vpack.c.bf16 %v438, %v436
      %v443 = vpack.c.bf16 %v439, %v437
      %v444 = vld [vmem:[%s3] sm:$0xf]
      %v445 = vld [vmem:[%s3 + $0x4] sm:$0xf]
      %v446 = vld [vmem:[%s3 + $0x8] sm:$0xf]
      %v447 = vld [vmem:[%s3 + $0xc] sm:$0xf]
      %v448 = vld [vmem:[%s3 + $0x10] sm:$0xf]
      %v449 = vld [vmem:[%s3 + $0x14] sm:$0xf]
      %v450 = vld [vmem:[%s3 + $0x18] sm:$0xf]
      %v451 = vld [vmem:[%s3 + $0x1c] sm:$0xf]
      %v452 = vld [vmem:[%s3 + $0x20] sm:$0xf]
      %v453 = vld [vmem:[%s3 + $0x24] sm:$0xf]
      %v454 = vld [vmem:[%s3 + $0x28] sm:$0xf]
      %v455 = vld [vmem:[%s3 + $0x2c] sm:$0xf]
      %v456 = vld [vmem:[%s3 + $0x30] sm:$0xf]
      %v457 = vld [vmem:[%s3 + $0x34] sm:$0xf]
      %v458 = vld [vmem:[%s3 + $0x38] sm:$0xf]
      %v459 = vld [vmem:[%s3 + $0x3c] sm:$0xf]
      %v476 = vunpack.c.l.b16 %v444
      %v477 = vunpack.c.l.b16 %v445
      %v478 = vunpack.c.l.b16 %v446
      %v479 = vunpack.c.l.b16 %v447
      %v480 = vunpack.c.l.b16 %v448
      %v481 = vunpack.c.l.b16 %v449
      %v482 = vunpack.c.l.b16 %v450
      %v483 = vunpack.c.l.b16 %v451
      %v484 = vunpack.c.l.b16 %v452
      %v485 = vunpack.c.l.b16 %v453
      %v486 = vunpack.c.l.b16 %v454
      %v487 = vunpack.c.l.b16 %v455
      %v488 = vunpack.c.l.b16 %v456
      %v489 = vunpack.c.l.b16 %v457
      %v490 = vunpack.c.l.b16 %v458
      %v491 = vunpack.c.l.b16 %v459
      %v492 = vpack.c.b16 %v477, %v476
      %v493 = vpack.c.b16 %v479, %v478
      %v494 = vpack.c.b16 %v481, %v480
      %v495 = vpack.c.b16 %v483, %v482
      %v496 = vpack.c.b16 %v485, %v484
      %v497 = vpack.c.b16 %v487, %v486
      %v498 = vpack.c.b16 %v489, %v488
      %v499 = vpack.c.b16 %v491, %v490
      %508 = vmatprep.subr.bf16.mxu0 0
      %509 = vmatpush1.bf16.msra.mxu0 %v492
      %510 = vmatprep.subr.bf16.mxu0 0
      %511 = vmatpush1.bf16.msra.mxu0 %v493
      %512 = vmatprep.subr.bf16.mxu0 0
      %513 = vmatpush1.bf16.msra.mxu0 %v494
      %514 = vmatprep.subr.bf16.mxu0 0
      %515 = vmatpush1.bf16.msra.mxu0 %v495
      %516 = vmatprep.subr.bf16.mxu0 0
      %517 = vmatpush1.bf16.msra.mxu0 %v496
      %518 = vmatprep.subr.bf16.mxu0 0
      %519 = vmatpush1.bf16.msra.mxu0 %v497
      %520 = vmatprep.subr.bf16.mxu0 0
      %521 = vmatpush1.bf16.msra.mxu0 %v498
      %522 = vmatprep.subr.bf16.mxu0 0
      %523 = vmatpush1.bf16.msra.mxu0 %v499
      %524 = vmatprep.subr.bf16.mxu0 0
      %525 = vmatpush1.bf16.msra.mxu0 0
      %526 = vmatprep.subr.bf16.mxu0 0
      %527 = vmatpush1.bf16.msra.mxu0 0
      %528 = vmatprep.subr.bf16.mxu0 0
      %529 = vmatpush1.bf16.msra.mxu0 0
      %530 = vmatprep.subr.bf16.mxu0 0
      %531 = vmatpush1.bf16.msra.mxu0 0
      %532 = vmatprep.subr.bf16.mxu0 0
      %533 = vmatpush1.bf16.msra.mxu0 0
      %534 = vmatprep.subr.bf16.mxu0 0
      %535 = vmatpush1.bf16.msra.mxu0 0
      %536 = vmatprep.subr.bf16.mxu0 0
      %537 = vmatpush1.bf16.msra.mxu0 0
      %538 = vmatprep.subr.bf16.mxu0 0
      %539 = vmatpush1.bf16.msra.mxu0 0
      %540 = vmatprep.mubr.bf16.mxu0 0
      %541 = vmatmul.mubr.bf16.gmra.mrb[0].mxu0 %v440
      %v542 = vpop.f32.mrb[0].mxu0
      %v543 = vadd.f32 0.0, %v542
      %v544 = vpop.f32.mrb[0].mxu0
      %v545 = vpop.f32.mrb[0].mxu0
      %v546 = vadd.f32 0.0, %v545
      %v547 = vpop.f32.mrb[0].mxu0
      %548 = vmatprep.mubr.bf16.mxu0 0
      %549 = vmatmul.mubr.bf16.gmra.mrb[0].mxu0 %v442
      %v550 = vpop.f32.mrb[0].mxu0
      %v551 = vadd.f32 0.0, %v550
      %v552 = vpop.f32.mrb[0].mxu0
      %v553 = vpop.f32.mrb[0].mxu0
      %v554 = vadd.f32 0.0, %v553
      %v555 = vpop.f32.mrb[0].mxu0
      %556 = vdwg.mxu0
      %v557 = vmax.f32 %v543, 0.0
      %v558 = vmax.f32 %v546, 0.0
      %v559 = vmax.f32 %v551, 0.0
      %v560 = vmax.f32 %v554, 0.0
      %v561 = vpack.c.bf16 %v558, %v557
      %v562 = vpack.c.bf16 %v560, %v559
      %v563 = vld [vmem:[%s4] sm:$0xf]
      %v564 = vld [vmem:[%s4 + $0x4] sm:$0xf]
      %v565 = vld [vmem:[%s4 + $0x8] sm:$0xf]
      %v566 = vld [vmem:[%s4 + $0xc] sm:$0xf]
      %v567 = vld [vmem:[%s4 + $0x10] sm:$0xf]
      %v568 = vld [vmem:[%s4 + $0x14] sm:$0xf]
      %v569 = vld [vmem:[%s4 + $0x18] sm:$0xf]
      %v570 = vld [vmem:[%s4 + $0x1c] sm:$0xf]
      %v571 = vld [vmem:[%s4 + $0x20] sm:$0xf]
      %v572 = vld [vmem:[%s4 + $0x24] sm:$0xf]
      %v573 = vld [vmem:[%s4 + $0x28] sm:$0xf]
      %v574 = vld [vmem:[%s4 + $0x2c] sm:$0xf]
      %v575 = vld [vmem:[%s4 + $0x30] sm:$0xf]
      %v576 = vld [vmem:[%s4 + $0x34] sm:$0xf]
      %v577 = vld [vmem:[%s4 + $0x38] sm:$0xf]
      %v578 = vld [vmem:[%s4 + $0x3c] sm:$0xf]
      %v579 = vld [vmem:[%s5] sm:$0x1]
      %v581 = vlaneseq
      %v582 = vshrl.u32 %v581, 7
      %v583 = vsub.s32 0, %v582
      %v584 = vrot.slane %v579, %v583
      %v602 = vunpack.c.l.b16 %v563
      %v603 = vunpack.c.l.b16 %v564
      %v604 = vunpack.c.l.b16 %v565
      %v605 = vunpack.c.l.b16 %v566
      %v606 = vunpack.c.l.b16 %v567
      %v607 = vunpack.c.l.b16 %v568
      %v608 = vunpack.c.l.b16 %v569
      %v609 = vunpack.c.l.b16 %v570
      %v610 = vunpack.c.l.b16 %v571
      %v611 = vunpack.c.l.b16 %v572
      %v612 = vunpack.c.l.b16 %v573
      %v613 = vunpack.c.l.b16 %v574
      %v614 = vunpack.c.l.b16 %v575
      %v615 = vunpack.c.l.b16 %v576
      %v616 = vunpack.c.l.b16 %v577
      %v617 = vunpack.c.l.b16 %v578
      %v618 = vpack.c.b16 %v603, %v602
      %v619 = vpack.c.b16 %v605, %v604
      %v620 = vpack.c.b16 %v607, %v606
      %v621 = vpack.c.b16 %v609, %v608
      %v622 = vpack.c.b16 %v611, %v610
      %v623 = vpack.c.b16 %v613, %v612
      %v624 = vpack.c.b16 %v615, %v614
      %v625 = vpack.c.b16 %v617, %v616
      %634 = vmatprep.subr.bf16.mxu0 0
      %635 = vmatpush1.bf16.msra.mxu0 %v618
      %636 = vmatprep.subr.bf16.mxu0 0
      %637 = vmatpush1.bf16.msra.mxu0 %v619
      %638 = vmatprep.subr.bf16.mxu0 0
      %639 = vmatpush1.bf16.msra.mxu0 %v620
      %640 = vmatprep.subr.bf16.mxu0 0
      %641 = vmatpush1.bf16.msra.mxu0 %v621
      %642 = vmatprep.subr.bf16.mxu0 0
      %643 = vmatpush1.bf16.msra.mxu0 %v622
      %644 = vmatprep.subr.bf16.mxu0 0
      %645 = vmatpush1.bf16.msra.mxu0 %v623
      %646 = vmatprep.subr.bf16.mxu0 0
      %647 = vmatpush1.bf16.msra.mxu0 %v624
      %648 = vmatprep.subr.bf16.mxu0 0
      %649 = vmatpush1.bf16.msra.mxu0 %v625
      %650 = vmatprep.subr.bf16.mxu0 0
      %651 = vmatpush1.bf16.msra.mxu0 0
      %652 = vmatprep.subr.bf16.mxu0 0
      %653 = vmatpush1.bf16.msra.mxu0 0
      %654 = vmatprep.subr.bf16.mxu0 0
      %655 = vmatpush1.bf16.msra.mxu0 0
      %656 = vmatprep.subr.bf16.mxu0 0
      %657 = vmatpush1.bf16.msra.mxu0 0
      %658 = vmatprep.subr.bf16.mxu0 0
      %659 = vmatpush1.bf16.msra.mxu0 0
      %660 = vmatprep.subr.bf16.mxu0 0
      %661 = vmatpush1.bf16.msra.mxu0 0
      %662 = vmatprep.subr.bf16.mxu0 0
      %663 = vmatpush1.bf16.msra.mxu0 0
      %664 = vmatprep.subr.bf16.mxu0 0
      %665 = vmatpush1.bf16.msra.mxu0 0
      %666 = vmatprep.mubr.bf16.mxu0 0
      %667 = vmatmul.mubr.bf16.gmra.mrb[0].mxu0 %v561
      %v668 = vpop.f32.mrb[0].mxu0
      %v669 = vadd.f32 %v584, %v668
      %v670 = vpop.f32.mrb[0].mxu0
      %v671 = vpop.f32.mrb[0].mxu0
      %v672 = vadd.f32 %v584, %v671
      %v673 = vpop.f32.mrb[0].mxu0
      %674 = vmatprep.mubr.bf16.mxu0 0
      %675 = vmatmul.mubr.bf16.gmra.mrb[0].mxu0 %v562
      %v676 = vpop.f32.mrb[0].mxu0
      %v677 = vadd.f32 %v584, %v676
      %v678 = vpop.f32.mrb[0].mxu0
      %v679 = vpop.f32.mrb[0].mxu0
      %v680 = vadd.f32 %v584, %v679
      %v681 = vpop.f32.mrb[0].mxu0
      %682 = vdwg.mxu0
      %683 = vmatprep.subr.bf16.mxu0 0
      %684 = vmatpush1.bf16.msra.mxu0 %v492
      %685 = vmatprep.subr.bf16.mxu0 0
      %686 = vmatpush1.bf16.msra.mxu0 %v493
      %687 = vmatprep.subr.bf16.mxu0 0
      %688 = vmatpush1.bf16.msra.mxu0 %v494
      %689 = vmatprep.subr.bf16.mxu0 0
      %690 = vmatpush1.bf16.msra.mxu0 %v495
      %691 = vmatprep.subr.bf16.mxu0 0
      %692 = vmatpush1.bf16.msra.mxu0 %v496
      %693 = vmatprep.subr.bf16.mxu0 0
      %694 = vmatpush1.bf16.msra.mxu0 %v497
      %695 = vmatprep.subr.bf16.mxu0 0
      %696 = vmatpush1.bf16.msra.mxu0 %v498
      %697 = vmatprep.subr.bf16.mxu0 0
      %698 = vmatpush1.bf16.msra.mxu0 %v499
      %699 = vmatprep.subr.bf16.mxu0 0
      %700 = vmatpush1.bf16.msra.mxu0 0
      %701 = vmatprep.subr.bf16.mxu0 0
      %702 = vmatpush1.bf16.msra.mxu0 0
      %703 = vmatprep.subr.bf16.mxu0 0
      %704 = vmatpush1.bf16.msra.mxu0 0
      %705 = vmatprep.subr.bf16.mxu0 0
      %706 = vmatpush1.bf16.msra.mxu0 0
      %707 = vmatprep.subr.bf16.mxu0 0
      %708 = vmatpush1.bf16.msra.mxu0 0
      %709 = vmatprep.subr.bf16.mxu0 0
      %710 = vmatpush1.bf16.msra.mxu0 0
      %711 = vmatprep.subr.bf16.mxu0 0
      %712 = vmatpush1.bf16.msra.mxu0 0
      %713 = vmatprep.subr.bf16.mxu0 0
      %714 = vmatpush1.bf16.msra.mxu0 0
      %715 = vmatprep.mubr.bf16.mxu0 0
      %716 = vmatmul.mubr.bf16.gmra.mrb[0].mxu0 %v441
      %v717 = vpop.f32.mrb[0].mxu0
      %v718 = vadd.f32 0.0, %v717
      %v719 = vpop.f32.mrb[0].mxu0
      %v720 = vpop.f32.mrb[0].mxu0
      %v721 = vadd.f32 0.0, %v720
      %v722 = vpop.f32.mrb[0].mxu0
      %723 = vmatprep.mubr.bf16.mxu0 0
      %724 = vmatmul.mubr.bf16.gmra.mrb[0].mxu0 %v443
      %v725 = vpop.f32.mrb[0].mxu0
      %v726 = vadd.f32 0.0, %v725
      %v727 = vpop.f32.mrb[0].mxu0
      %v728 = vpop.f32.mrb[0].mxu0
      %v729 = vadd.f32 0.0, %v728
      %v730 = vpop.f32.mrb[0].mxu0
      %731 = vdwg.mxu0
      %v732 = vmax.f32 %v718, 0.0
      %v733 = vmax.f32 %v721, 0.0
      %v734 = vmax.f32 %v726, 0.0
      %v735 = vmax.f32 %v729, 0.0
      %v736 = vpack.c.bf16 %v733, %v732
      %v737 = vpack.c.bf16 %v735, %v734
      %738 = vmatprep.subr.bf16.mxu0 0
      %739 = vmatpush1.bf16.msra.mxu0 %v618
      %740 = vmatprep.subr.bf16.mxu0 0
      %741 = vmatpush1.bf16.msra.mxu0 %v619
      %742 = vmatprep.subr.bf16.mxu0 0
      %743 = vmatpush1.bf16.msra.mxu0 %v620
      %744 = vmatprep.subr.bf16.mxu0 0
      %745 = vmatpush1.bf16.msra.mxu0 %v621
      %746 = vmatprep.subr.bf16.mxu0 0
      %747 = vmatpush1.bf16.msra.mxu0 %v622
      %748 = vmatprep.subr.bf16.mxu0 0
      %749 = vmatpush1.bf16.msra.mxu0 %v623
      %750 = vmatprep.subr.bf16.mxu0 0
      %751 = vmatpush1.bf16.msra.mxu0 %v624
      %752 = vmatprep.subr.bf16.mxu0 0
      %753 = vmatpush1.bf16.msra.mxu0 %v625
      %754 = vmatprep.subr.bf16.mxu0 0
      %755 = vmatpush1.bf16.msra.mxu0 0
      %756 = vmatprep.subr.bf16.mxu0 0
      %757 = vmatpush1.bf16.msra.mxu0 0
      %758 = vmatprep.subr.bf16.mxu0 0
      %759 = vmatpush1.bf16.msra.mxu0 0
      %760 = vmatprep.subr.bf16.mxu0 0
      %761 = vmatpush1.bf16.msra.mxu0 0
      %762 = vmatprep.subr.bf16.mxu0 0
      %763 = vmatpush1.bf16.msra.mxu0 0
      %764 = vmatprep.subr.bf16.mxu0 0
      %765 = vmatpush1.bf16.msra.mxu0 0
      %766 = vmatprep.subr.bf16.mxu0 0
      %767 = vmatpush1.bf16.msra.mxu0 0
      %768 = vmatprep.subr.bf16.mxu0 0
      %769 = vmatpush1.bf16.msra.mxu0 0
      %770 = vmatprep.mubr.bf16.mxu0 0
      %771 = vmatmul.mubr.bf16.gmra.mrb[0].mxu0 %v736
      %v772 = vpop.f32.mrb[0].mxu0
      %v773 = vadd.f32 %v584, %v772
      %v774 = vpop.f32.mrb[0].mxu0
      %v775 = vpop.f32.mrb[0].mxu0
      %v776 = vadd.f32 %v584, %v775
      %v777 = vpop.f32.mrb[0].mxu0
      %778 = vmatprep.mubr.bf16.mxu0 0
      %779 = vmatmul.mubr.bf16.gmra.mrb[0].mxu0 %v737
      %v780 = vpop.f32.mrb[0].mxu0
      %v781 = vadd.f32 %v584, %v780
      %v782 = vpop.f32.mrb[0].mxu0
      %v783 = vpop.f32.mrb[0].mxu0
      %v784 = vadd.f32 %v584, %v783
      %v785 = vpop.f32.mrb[0].mxu0
      %786 = vdwg.mxu0
      %787 = vst [vmem:[%s280] sm:$0xff] %v669
      %788 = vst [vmem:[%s280 + $0x8] sm:$0xff] %v773
      %789 = vst [vmem:[%s280 + $0x10] sm:$0xff] %v672
      %790 = vst [vmem:[%s280 + $0x18] sm:$0xff] %v776
      %791 = vst [vmem:[%s280 + $0x20] sm:$0xff] %v677
      %792 = vst [vmem:[%s280 + $0x28] sm:$0xff] %v781
      %793 = vst [vmem:[%s280 + $0x30] sm:$0xff] %v680
      %794 = vst [vmem:[%s280 + $0x38] sm:$0xff] %v784
      %s795 = smul.u32 4, %s17
      %p796 = scmp.lt.s32.totalorder %s795, 7
      %s797 = scalar_select %p796, %s795, 7
      %s798 = smul.addr %s797, 2
      %s799 = smul.addr %s798, 8
      %s800 = scalar_lea.vmem %s6, %s799
      // Predicated region
      $region45: #{dlptnet_seg_forward.17} parent=43 // pred_check
        %p801 = pneg %p171
      $region46: #{dlptnet_seg_forward.17} parent=43 // pred_check_branch
        %803 = sbr.rel (%p801) target = $region48
      $region47: #{dlptnet_seg_forward.17} parent=43 // pred_region
        %s804 = smul.u32 4, %s17
      $region48: #{dlptnet_seg_forward.17} parent=43 // pred_fallthru
        _
    $region44: #{dlptnet_seg_forward.17} parent=5 // pred_fallthru
      _
    %p805 = scmp.le.s32.totalorder 2, %s12
    // Predicated region
    $region49: #{dlptnet_seg_forward.17} parent=5 // pred_check
      %p806 = pneg %p805
    $region50: #{dlptnet_seg_forward.17} parent=5 // pred_check_branch
      %808 = sbr.rel (%p806) target = $region52
    $region51: #{dlptnet_seg_forward.17} parent=5 // pred_region
      %s809 = ssub.s32 %s12, 2
      // Predicated region
      $region53: #{dlptnet_seg_forward.17} parent=51 // pred_check
        %p810 = pneg %p177
      $region54: #{dlptnet_seg_forward.17} parent=51 // pred_check_branch
        %812 = sbr.rel (%p810) target = $region56
      $region55: #{dlptnet_seg_forward.17} parent=51 // pred_region
        %s813 = smul.u32 4, %s18
        %p814 = scmp.lt.s32.totalorder %s813, 7
        %s815 = scalar_select %p814, %s813, 7
        %s816 = smul.addr %s815, 2
        %s817 = smul.addr %s816, 8
        %s818 = scalar_lea.vmem %s6, %s817
      $region56: #{dlptnet_seg_forward.17} parent=51 // pred_fallthru
        _
    $region52: #{dlptnet_seg_forward.17} parent=5 // pred_fallthru
      _
  $region6: #{dlptnet_seg_forward.17} parent=0 // loop_footer
    %s16 = sadd.s32 1, %s12
  $region7: #{dlptnet_seg_forward.17} parent=0 // loop_footer_branch
    %11 = sbr.rel target = $region3
  $region8: #{dlptnet_seg_forward.17} parent=0 // loop_exit
    _

</llo_original>
